<compile_context>
chip_gen: v5e
topology: v5e:2x2
jax: 0.10.0
libtpu: 0.0.40
codegen_flags: <defaults>
</compile_context>

<pallas_src>
import jax
import jax.numpy as jnp
from jax.experimental import pallas as pl
from jax.experimental.pallas import tpu as pltpu

# ----- model hyper-parameters (module defaults, small synthetic shapes) -----
IN_CH = 65                     # in_channels
AUDIO = 1                      # audio_num
C_TOT = IN_CH + AUDIO          # 66 total input channels
MID_CH = IN_CH * 3 // 2        # 97  (conv_1 out)
HALF_CH = IN_CH // 2           # 32  (conv_11 out)
CAT_CH = HALF_CH + AUDIO       # 33  (conv_2 in)
HID_CH = 64                    # hidden_channels (conv_2 out)
OUT_CH = 2                     # conv_3 out channels
K1 = 5                         # kernel_size_1
K2 = 5                         # kernel_size_2
INPUT_SIZE = 64                # time samples per example
HIDDEN = 32                    # hidden_size
OUT_SIZE = 2                   # output_size
BATCH = 2
EPS = 1e-5

T1 = INPUT_SIZE - (K1 - 1)     # 60 after conv_1
T2 = T1 - (K1 - 1)             # 56 after conv_11
T3 = T2 - (K2 - 1)             # 52 after conv_2
TP2 = T3 // 2                  # 26 after MaxPool m2
FC_T = TP2 // 2                # 13 after MaxPool m3 (== fc_in_size)
FC_IN = OUT_CH * FC_T          # 26 flattened features


def _elu(x):
    return jnp.where(x > 0, x, jnp.exp(jnp.minimum(x, 0.0)) - 1.0)


def _conv1d(x, w_ref, t_out):
    # x: (T_in, C_in) value, w_ref: (K, C_in, C_out) VMEM ref
    c_out = w_ref.shape[2]
    acc = jnp.zeros((t_out, c_out), jnp.float32)
    for k in range(w_ref.shape[0]):
        acc = acc + jnp.dot(x[k:k + t_out, :], w_ref[k],
                            preferred_element_type=jnp.float32)
    return acc


# --------------------------- single fused kernel -----------------------------
def fused_kernel(x_ref, vrow_ref, vcol_ref, w1_ref, w11_ref, w2_ref, w3_ref,
                 wmlp_ref, out_ref, pool2_ref, pool3_ref, zbuf_ref):
    vrow = vrow_ref[...]                    # (4, 128)  packed conv biases (rows)
    vcol = vcol_ref[...]                    # (64, 4)   packed MLP biases (cols)
    b1 = vrow[0:1, 0:MID_CH]                # (1, 97)  conv_1 bias (+bn_l0 fold)
    b11 = vrow[1:2, 0:HALF_CH]              # (1, 32)  conv_11 bias
    b2 = vrow[2:3, 0:HID_CH]                # (1, 64)  conv_2 bias (+bn folds)
    b3 = vrow[3:4, 0:OUT_CH]                # (1, 2)   conv_3 bias
    w3 = w3_ref[...]                        # (64, 2)

    for b in range(BATCH):                  # batch unrolled, single invocation
        xb = x_ref[b]                       # (64, 66)
        x_brain = xb[:, :IN_CH]             # (64, 65)  raw (bn_l0 folded away)
        x_audio = xb[:, IN_CH:C_TOT]        # (64, 1)   raw audio channel

        h = _elu(_conv1d(x_brain, w1_ref, T1) + b1)     # conv_1  -> (60, 97)
        h = _elu(_conv1d(h, w11_ref, T2) + b11)         # conv_11 -> (56, 32)

        # TODO(synk): the original torch.cat mixes a length-56 brain tensor with
        # the length-64 audio channel and would raise; we crop the audio channel
        # to the leading T2 samples so conv_2 is well defined.
        hc = jnp.concatenate([h, x_audio[:T2, :]], axis=1)   # (56, 33)

        h3 = _elu(_conv1d(hc, w2_ref, T3) + b2)         # conv_2  -> (52, 64)

        # m2: MaxPool1d(2, 2) along time via strided VMEM reads
        pool2_ref[...] = h3
        p2 = jnp.maximum(pool2_ref[pl.ds(0, TP2, stride=2), :],
                         pool2_ref[pl.ds(1, TP2, stride=2), :])   # (26, 64)

        # conv_3 is 1x1 -> plain matmul
        h4 = _elu(jnp.dot(p2, w3, preferred_element_type=jnp.float32) + b3)

        # m3: MaxPool1d(2, 2)
        pool3_ref[...] = h4
        p3 = jnp.maximum(pool3_ref[pl.ds(0, FC_T, stride=2), :],
                         pool3_ref[pl.ds(1, FC_T, stride=2), :])  # (13, 2)

        # flatten channel-major (== torch .view order) as column b of zbuf
        zbuf_ref[0:FC_T, b:b + 1] = p3[:, 0:1]
        zbuf_ref[FC_T:FC_IN, b:b + 1] = p3[:, 1:2]

    # ---- MLP head, feature-major: activations are (features, batch) ----
    z = zbuf_ref[...]                                   # (26, B)
    wl1t = wmlp_ref[0][:, 0:FC_IN]                      # (64, 26)
    wl2t = wmlp_ref[1]                                  # (64, 64)
    wl3t = wmlp_ref[2][0:HIDDEN, :]                     # (32, 64)
    wl4t = wmlp_ref[3][0:OUT_SIZE, 0:HIDDEN]            # (2, 32)

    z1 = _elu(jnp.dot(wl1t, z, preferred_element_type=jnp.float32)
              + vcol[:, 0:1])                           # (64, B)
    z2 = _elu(jnp.dot(wl2t, z1, preferred_element_type=jnp.float32)
              + vcol[:, 1:2])                           # (64, B)
    z3 = _elu(jnp.dot(wl3t, z2, preferred_element_type=jnp.float32)
              + vcol[0:HIDDEN, 2:3])                    # (32, B)
    out_ref[...] = (jnp.dot(wl4t, z3, preferred_element_type=jnp.float32)
                    + vcol[0:OUT_SIZE, 3:4])            # (2, B)


def nn_forward_pallas(kp, x_ncl):
    # (B, 66, L) -> (B, L, 66); single fused pallas_call, no grid.
    x_nlc = jnp.transpose(x_ncl, (0, 2, 1)).astype(jnp.float32)
    vmem = [pl.BlockSpec(memory_space=pltpu.MemorySpace.VMEM) for _ in range(8)]
    out_t = pl.pallas_call(
        fused_kernel,
        out_shape=jax.ShapeDtypeStruct((OUT_SIZE, BATCH), jnp.float32),
        in_specs=vmem,
        out_specs=pl.BlockSpec(memory_space=pltpu.MemorySpace.VMEM),
        scratch_shapes=[pltpu.VMEM((T3, HID_CH), jnp.float32),
                        pltpu.VMEM((TP2, OUT_CH), jnp.float32),
                        pltpu.VMEM((FC_IN, BATCH), jnp.float32)],
    )(x_nlc, kp["vrow"], kp["vcol"], kp["w1"], kp["w11"], kp["w2"],
      kp["w3"], kp["wmlp"])
    return out_t.T                                       # (B, output_size)


nn_forward = jax.jit(nn_forward_pallas)


# ------------------------------- parameters ---------------------------------
def init_raw_params(key):
    """PyTorch-convention synthetic parameters (eval-mode BN as scale/shift)."""
    keys = iter(jax.random.split(key, 64))

    def nrm(shape, scale=0.1):
        return scale * jax.random.normal(next(keys), shape, jnp.float32)

    def uni(shape, lo=0.5, hi=1.5):
        return jax.random.uniform(next(keys), shape, jnp.float32, lo, hi)

    raw = dict(
        conv1_w=nrm((MID_CH, IN_CH, K1)), conv1_b=nrm((MID_CH,)),
        conv11_w=nrm((HALF_CH, MID_CH, K1)), conv11_b=nrm((HALF_CH,)),
        conv2_w=nrm((HID_CH, CAT_CH, K2)), conv2_b=nrm((HID_CH,)),
        conv3_w=nrm((OUT_CH, HID_CH, 1)), conv3_b=nrm((OUT_CH,)),
        l1_w=nrm((2 * HIDDEN, FC_IN)), l1_b=nrm((2 * HIDDEN,)),
        l2_w=nrm((2 * HIDDEN, 2 * HIDDEN)), l2_b=nrm((2 * HIDDEN,)),
        l3_w=nrm((HIDDEN, 2 * HIDDEN)), l3_b=nrm((HIDDEN,)),
        l4_w=nrm((OUT_SIZE, HIDDEN)), l4_b=nrm((OUT_SIZE,)),
    )
    for name, c in (("bn0", C_TOT), ("bn11", HALF_CH), ("bn1", FC_IN),
                    ("bn2", 2 * HIDDEN), ("bn3", 2 * HIDDEN)):
        g, b, m, v = uni((c,)), nrm((c,)), nrm((c,)), uni((c,))
        s = g / jnp.sqrt(v + EPS)
        raw[name + "_s"], raw[name + "_t"] = s, b - m * s
    return raw


def pack_kernel_params(raw):
    """Fold eval-mode BNs into neighbouring weights and pack kernel operands."""
    # conv weights: (Cout, Cin, K) -> (K, Cin, Cout)
    w1 = jnp.transpose(raw["conv1_w"], (2, 1, 0))              # (5, 65, 97)
    s0b, t0b = raw["bn0_s"][:IN_CH], raw["bn0_t"][:IN_CH]
    w1f = w1 * s0b[None, :, None]                              # bn_l0 -> conv_1
    b1f = raw["conv1_b"] + t0b @ w1.sum(axis=0)

    w11 = jnp.transpose(raw["conv11_w"], (2, 1, 0))            # (5, 97, 32)
    b11 = raw["conv11_b"]

    w2 = jnp.transpose(raw["conv2_w"], (2, 1, 0))              # (5, 33, 64)
    s2 = jnp.concatenate([raw["bn11_s"], raw["bn0_s"][IN_CH:]])
    t2 = jnp.concatenate([raw["bn11_t"], raw["bn0_t"][IN_CH:]])
    w2f = w2 * s2[None, :, None]                               # bn_l11 + bn_l0(audio)
    b2f = raw["conv2_b"] + t2 @ w2.sum(axis=0)

    w3 = jnp.transpose(raw["conv3_w"], (2, 1, 0))[0]           # (64, 2)
    b3 = raw["conv3_b"]

    # MLP: fold bn_l1/2/3 into the linears; store transposed (out, in).
    wl1t = raw["l1_w"] * raw["bn1_s"][None, :]                 # (64, 26)
    bl1 = raw["l1_b"] + raw["bn1_t"] @ raw["l1_w"].T
    wl2t = raw["l2_w"] * raw["bn2_s"][None, :]                 # (64, 64)
    bl2 = raw["l2_b"] + raw["bn2_t"] @ raw["l2_w"].T
    wl3t = raw["l3_w"] * raw["bn3_s"][None, :]                 # (32, 64)
    bl3 = raw["l3_b"] + raw["bn3_t"] @ raw["l3_w"].T
    wl4t = raw["l4_w"]                                         # (2, 32)
    bl4 = raw["l4_b"]

    # pack small vectors: conv biases as rows of (4,128), MLP biases as cols of (64,4)
    def pad_row(v):
        return jnp.pad(v, (0, 128 - v.shape[0]))[None, :]

    def pad_col(v):
        return jnp.pad(v, (0, 2 * HIDDEN - v.shape[0]))[:, None]

    vrow = jnp.concatenate([pad_row(b1f), pad_row(b11), pad_row(b2f),
                            pad_row(b3)], axis=0)              # (4, 128)
    vcol = jnp.concatenate([pad_col(bl1), pad_col(bl2), pad_col(bl3),
                            pad_col(bl4)], axis=1)             # (64, 4)

    # pack the transposed MLP weights into one zero-padded (4, 64, 64) slab
    def pad_blk(w):
        return jnp.pad(w, ((0, 2 * HIDDEN - w.shape[0]),
                           (0, 2 * HIDDEN - w.shape[1])))

    wmlp = jnp.stack([pad_blk(wl1t), pad_blk(wl2t), pad_blk(wl3t),
                      pad_blk(wl4t)])                          # (4, 64, 64)

    return dict(w1=w1f, w11=w11, w2=w2f, w3=w3, wmlp=wmlp, vrow=vrow, vcol=vcol)


# ----------------------- plain-JAX module-faithful reference -----------------
def nn_forward_reference(raw, x_ncl):
    """Mirror of the PyTorch module (eval mode, unfolded BN), f32 precision."""
    P = jax.lax.Precision.HIGHEST
    x = x_ncl.astype(jnp.float32)                                # (B, 66, L)
    bn = lambda v, s, t: v * s[None, :, None] + t[None, :, None]
    x = bn(x, raw["bn0_s"], raw["bn0_t"])
    xb, xa = x[:, :IN_CH, :], x[:, IN_CH, :]

    def conv(v, w, b):
        o = jax.lax.conv_general_dilated(
            v, w, (1,), "VALID",
            dimension_numbers=("NCH", "OIH", "NCH"), precision=P)
        return o + b[None, :, None]

    h = jax.nn.elu(conv(xb, raw["conv1_w"], raw["conv1_b"]))
    h = jax.nn.elu(conv(h, raw["conv11_w"], raw["conv11_b"]))
    h = bn(h, raw["bn11_s"], raw["bn11_t"])
    # TODO(synk): same audio-length crop as the kernel (torch would raise here).
    h = jnp.concatenate([h, xa[:, None, :T2]], axis=1)
    h = jax.nn.elu(conv(h, raw["conv2_w"], raw["conv2_b"]))
    h = jnp.maximum(h[:, :, 0::2], h[:, :, 1::2])                # m2
    h = jax.nn.elu(conv(h, raw["conv3_w"], raw["conv3_b"]))
    h = jnp.maximum(h[:, :, 0::2], h[:, :, 1::2])                # m3
    f = h.reshape(x.shape[0], -1)                                # (B, 26) c-major

    lin = lambda v, w, b: jnp.dot(v, w.T, precision=P) + b
    h = jax.nn.elu(lin(f * raw["bn1_s"] + raw["bn1_t"], raw["l1_w"], raw["l1_b"]))
    h = jax.nn.elu(lin(h * raw["bn2_s"] + raw["bn2_t"], raw["l2_w"], raw["l2_b"]))
    h = jax.nn.elu(lin(h * raw["bn3_s"] + raw["bn3_t"], raw["l3_w"], raw["l3_b"]))
    return lin(h, raw["l4_w"], raw["l4_b"])


if __name__ == "__main__":
    key = jax.random.PRNGKey(0)
    pkey, xkey = jax.random.split(key)
    raw = init_raw_params(pkey)
    kp = pack_kernel_params(raw)
    x = jax.random.normal(xkey, (BATCH, C_TOT, INPUT_SIZE), jnp.float32)

    out = jax.block_until_ready(nn_forward(kp, x))
    ref = jax.block_until_ready(nn_forward_reference(raw, x))

    assert out.shape == (BATCH, OUT_SIZE), out.shape
    assert bool(jnp.all(jnp.isfinite(out)))
    # Kernel matmuls use default (bf16 MXU) precision per perf guidance, the
    # reference runs at full f32 with unfolded BN, hence the modest tolerance.
    assert bool(jnp.allclose(out, ref, rtol=5e-2, atol=5e-2)), (out, ref)
    print("KERNEL_OK")
</pallas_src>

<mosaic_0001>
module attributes {stable_mosaic.version = 11 : i64} {
  func.func @fused_kernel(%arg0: memref<2x64x66xf32, #tpu.memory_space<vmem>>, %arg1: memref<4x128xf32, #tpu.memory_space<vmem>>, %arg2: memref<64x4xf32, #tpu.memory_space<vmem>>, %arg3: memref<5x65x97xf32, #tpu.memory_space<vmem>>, %arg4: memref<5x97x32xf32, #tpu.memory_space<vmem>>, %arg5: memref<5x33x64xf32, #tpu.memory_space<vmem>>, %arg6: memref<64x2xf32, #tpu.memory_space<vmem>>, %arg7: memref<4x64x64xf32, #tpu.memory_space<vmem>>, %arg8: memref<2x2xf32, #tpu.memory_space<vmem>>, %arg9: memref<52x64xf32, #tpu.memory_space<vmem>>, %arg10: memref<26x2xf32, #tpu.memory_space<vmem>>, %arg11: memref<26x2xf32, #tpu.memory_space<vmem>>) attributes {dimension_semantics = [], scalar_prefetch = 0 : i64, scratch_operands = 3 : i64, tpu.core_type = #tpu.core_type<tc>} {
    %c0 = arith.constant 0 : index
    %c0_0 = arith.constant 0 : index
    %0 = vector.load %arg1[%c0, %c0_0] : memref<4x128xf32, #tpu.memory_space<vmem>>, vector<4x128xf32>
    %c0_1 = arith.constant 0 : index
    %c0_2 = arith.constant 0 : index
    %1 = vector.load %arg2[%c0_1, %c0_2] : memref<64x4xf32, #tpu.memory_space<vmem>>, vector<64x4xf32>
    %2 = vector.extract_strided_slice %0 {offsets = [0, 0], sizes = [1, 97], strides = [1, 1]} : vector<4x128xf32> to vector<1x97xf32>
    %3 = vector.extract_strided_slice %0 {offsets = [1, 0], sizes = [1, 32], strides = [1, 1]} : vector<4x128xf32> to vector<1x32xf32>
    %4 = vector.extract_strided_slice %0 {offsets = [2, 0], sizes = [1, 64], strides = [1, 1]} : vector<4x128xf32> to vector<1x64xf32>
    %5 = vector.extract_strided_slice %0 {offsets = [3, 0], sizes = [1, 2], strides = [1, 1]} : vector<4x128xf32> to vector<1x2xf32>
    %c0_3 = arith.constant 0 : index
    %c0_4 = arith.constant 0 : index
    %6 = vector.load %arg6[%c0_3, %c0_4] : memref<64x2xf32, #tpu.memory_space<vmem>>, vector<64x2xf32>
    %c0_5 = arith.constant 0 : index
    %c0_6 = arith.constant 0 : index
    %c0_7 = arith.constant 0 : index
    %7 = vector.load %arg0[%c0_5, %c0_6, %c0_7] : memref<2x64x66xf32, #tpu.memory_space<vmem>>, vector<1x64x66xf32>
    %8 = vector.shape_cast %7 : vector<1x64x66xf32> to vector<64x66xf32>
    %9 = vector.extract_strided_slice %8 {offsets = [0, 0], sizes = [64, 65], strides = [1, 1]} : vector<64x66xf32> to vector<64x65xf32>
    %10 = vector.extract_strided_slice %8 {offsets = [0, 65], sizes = [64, 1], strides = [1, 1]} : vector<64x66xf32> to vector<64x1xf32>
    %cst = arith.constant 0.000000e+00 : f32
    %11 = vector.broadcast %cst : f32 to vector<60x97xf32>
    %12 = vector.extract_strided_slice %9 {offsets = [0, 0], sizes = [60, 65], strides = [1, 1]} : vector<64x65xf32> to vector<60x65xf32>
    %c0_8 = arith.constant 0 : index
    %c0_9 = arith.constant 0 : index
    %c0_10 = arith.constant 0 : index
    %13 = vector.load %arg3[%c0_8, %c0_9, %c0_10] : memref<5x65x97xf32, #tpu.memory_space<vmem>>, vector<1x65x97xf32>
    %14 = vector.shape_cast %13 : vector<1x65x97xf32> to vector<65x97xf32>
    %cst_11 = arith.constant dense<0.000000e+00> : vector<60x97xf32>
    %15 = tpu.matmul %12, %14, %cst_11 {dimension_numbers = #tpu.dot_dimension_numbers<[1], [0], [0], [1], [0, 0, 1, 1], [], []>} : vector<60x65xf32>, vector<65x97xf32>, vector<60x97xf32> -> vector<60x97xf32>
    %16 = arith.addf %11, %15 : vector<60x97xf32>
    %17 = vector.extract_strided_slice %9 {offsets = [1, 0], sizes = [60, 65], strides = [1, 1]} : vector<64x65xf32> to vector<60x65xf32>
    %c1 = arith.constant 1 : index
    %c0_12 = arith.constant 0 : index
    %c0_13 = arith.constant 0 : index
    %18 = vector.load %arg3[%c1, %c0_12, %c0_13] : memref<5x65x97xf32, #tpu.memory_space<vmem>>, vector<1x65x97xf32>
    %19 = vector.shape_cast %18 : vector<1x65x97xf32> to vector<65x97xf32>
    %cst_14 = arith.constant dense<0.000000e+00> : vector<60x97xf32>
    %20 = tpu.matmul %17, %19, %cst_14 {dimension_numbers = #tpu.dot_dimension_numbers<[1], [0], [0], [1], [0, 0, 1, 1], [], []>} : vector<60x65xf32>, vector<65x97xf32>, vector<60x97xf32> -> vector<60x97xf32>
    %21 = arith.addf %16, %20 : vector<60x97xf32>
    %22 = vector.extract_strided_slice %9 {offsets = [2, 0], sizes = [60, 65], strides = [1, 1]} : vector<64x65xf32> to vector<60x65xf32>
    %c2 = arith.constant 2 : index
    %c0_15 = arith.constant 0 : index
    %c0_16 = arith.constant 0 : index
    %23 = vector.load %arg3[%c2, %c0_15, %c0_16] : memref<5x65x97xf32, #tpu.memory_space<vmem>>, vector<1x65x97xf32>
    %24 = vector.shape_cast %23 : vector<1x65x97xf32> to vector<65x97xf32>
    %cst_17 = arith.constant dense<0.000000e+00> : vector<60x97xf32>
    %25 = tpu.matmul %22, %24, %cst_17 {dimension_numbers = #tpu.dot_dimension_numbers<[1], [0], [0], [1], [0, 0, 1, 1], [], []>} : vector<60x65xf32>, vector<65x97xf32>, vector<60x97xf32> -> vector<60x97xf32>
    %26 = arith.addf %21, %25 : vector<60x97xf32>
    %27 = vector.extract_strided_slice %9 {offsets = [3, 0], sizes = [60, 65], strides = [1, 1]} : vector<64x65xf32> to vector<60x65xf32>
    %c3 = arith.constant 3 : index
    %c0_18 = arith.constant 0 : index
    %c0_19 = arith.constant 0 : index
    %28 = vector.load %arg3[%c3, %c0_18, %c0_19] : memref<5x65x97xf32, #tpu.memory_space<vmem>>, vector<1x65x97xf32>
    %29 = vector.shape_cast %28 : vector<1x65x97xf32> to vector<65x97xf32>
    %cst_20 = arith.constant dense<0.000000e+00> : vector<60x97xf32>
    %30 = tpu.matmul %27, %29, %cst_20 {dimension_numbers = #tpu.dot_dimension_numbers<[1], [0], [0], [1], [0, 0, 1, 1], [], []>} : vector<60x65xf32>, vector<65x97xf32>, vector<60x97xf32> -> vector<60x97xf32>
    %31 = arith.addf %26, %30 : vector<60x97xf32>
    %32 = vector.extract_strided_slice %9 {offsets = [4, 0], sizes = [60, 65], strides = [1, 1]} : vector<64x65xf32> to vector<60x65xf32>
    %c4 = arith.constant 4 : index
    %c0_21 = arith.constant 0 : index
    %c0_22 = arith.constant 0 : index
    %33 = vector.load %arg3[%c4, %c0_21, %c0_22] : memref<5x65x97xf32, #tpu.memory_space<vmem>>, vector<1x65x97xf32>
    %34 = vector.shape_cast %33 : vector<1x65x97xf32> to vector<65x97xf32>
    %cst_23 = arith.constant dense<0.000000e+00> : vector<60x97xf32>
    %35 = tpu.matmul %32, %34, %cst_23 {dimension_numbers = #tpu.dot_dimension_numbers<[1], [0], [0], [1], [0, 0, 1, 1], [], []>} : vector<60x65xf32>, vector<65x97xf32>, vector<60x97xf32> -> vector<60x97xf32>
    %36 = arith.addf %31, %35 : vector<60x97xf32>
    %37 = vector.broadcast %2 : vector<1x97xf32> to vector<60x97xf32>
    %38 = arith.addf %36, %37 : vector<60x97xf32>
    %cst_24 = arith.constant 0.000000e+00 : f32
    %39 = vector.broadcast %cst_24 : f32 to vector<60x97xf32>
    %40 = arith.cmpf ogt, %38, %39 : vector<60x97xf32>
    %cst_25 = arith.constant 0.000000e+00 : f32
    %41 = vector.broadcast %cst_25 : f32 to vector<60x97xf32>
    %42 = arith.minimumf %38, %41 : vector<60x97xf32>
    %43 = math.exp %42 : vector<60x97xf32>
    %cst_26 = arith.constant 1.000000e+00 : f32
    %44 = vector.broadcast %cst_26 : f32 to vector<60x97xf32>
    %45 = arith.subf %43, %44 : vector<60x97xf32>
    %46 = arith.select %40, %38, %45 : vector<60x97xi1>, vector<60x97xf32>
    %cst_27 = arith.constant 0.000000e+00 : f32
    %47 = vector.broadcast %cst_27 : f32 to vector<56x32xf32>
    %48 = vector.extract_strided_slice %46 {offsets = [0, 0], sizes = [56, 97], strides = [1, 1]} : vector<60x97xf32> to vector<56x97xf32>
    %c0_28 = arith.constant 0 : index
    %c0_29 = arith.constant 0 : index
    %c0_30 = arith.constant 0 : index
    %49 = vector.load %arg4[%c0_28, %c0_29, %c0_30] : memref<5x97x32xf32, #tpu.memory_space<vmem>>, vector<1x97x32xf32>
    %50 = vector.shape_cast %49 : vector<1x97x32xf32> to vector<97x32xf32>
    %cst_31 = arith.constant dense<0.000000e+00> : vector<56x32xf32>
    %51 = tpu.matmul %48, %50, %cst_31 {dimension_numbers = #tpu.dot_dimension_numbers<[1], [0], [0], [1], [0, 0, 1, 1], [], []>} : vector<56x97xf32>, vector<97x32xf32>, vector<56x32xf32> -> vector<56x32xf32>
    %52 = arith.addf %47, %51 : vector<56x32xf32>
    %53 = vector.extract_strided_slice %46 {offsets = [1, 0], sizes = [56, 97], strides = [1, 1]} : vector<60x97xf32> to vector<56x97xf32>
    %c1_32 = arith.constant 1 : index
    %c0_33 = arith.constant 0 : index
    %c0_34 = arith.constant 0 : index
    %54 = vector.load %arg4[%c1_32, %c0_33, %c0_34] : memref<5x97x32xf32, #tpu.memory_space<vmem>>, vector<1x97x32xf32>
    %55 = vector.shape_cast %54 : vector<1x97x32xf32> to vector<97x32xf32>
    %cst_35 = arith.constant dense<0.000000e+00> : vector<56x32xf32>
    %56 = tpu.matmul %53, %55, %cst_35 {dimension_numbers = #tpu.dot_dimension_numbers<[1], [0], [0], [1], [0, 0, 1, 1], [], []>} : vector<56x97xf32>, vector<97x32xf32>, vector<56x32xf32> -> vector<56x32xf32>
    %57 = arith.addf %52, %56 : vector<56x32xf32>
    %58 = vector.extract_strided_slice %46 {offsets = [2, 0], sizes = [56, 97], strides = [1, 1]} : vector<60x97xf32> to vector<56x97xf32>
    %c2_36 = arith.constant 2 : index
    %c0_37 = arith.constant 0 : index
    %c0_38 = arith.constant 0 : index
    %59 = vector.load %arg4[%c2_36, %c0_37, %c0_38] : memref<5x97x32xf32, #tpu.memory_space<vmem>>, vector<1x97x32xf32>
    %60 = vector.shape_cast %59 : vector<1x97x32xf32> to vector<97x32xf32>
    %cst_39 = arith.constant dense<0.000000e+00> : vector<56x32xf32>
    %61 = tpu.matmul %58, %60, %cst_39 {dimension_numbers = #tpu.dot_dimension_numbers<[1], [0], [0], [1], [0, 0, 1, 1], [], []>} : vector<56x97xf32>, vector<97x32xf32>, vector<56x32xf32> -> vector<56x32xf32>
    %62 = arith.addf %57, %61 : vector<56x32xf32>
    %63 = vector.extract_strided_slice %46 {offsets = [3, 0], sizes = [56, 97], strides = [1, 1]} : vector<60x97xf32> to vector<56x97xf32>
    %c3_40 = arith.constant 3 : index
    %c0_41 = arith.constant 0 : index
    %c0_42 = arith.constant 0 : index
    %64 = vector.load %arg4[%c3_40, %c0_41, %c0_42] : memref<5x97x32xf32, #tpu.memory_space<vmem>>, vector<1x97x32xf32>
    %65 = vector.shape_cast %64 : vector<1x97x32xf32> to vector<97x32xf32>
    %cst_43 = arith.constant dense<0.000000e+00> : vector<56x32xf32>
    %66 = tpu.matmul %63, %65, %cst_43 {dimension_numbers = #tpu.dot_dimension_numbers<[1], [0], [0], [1], [0, 0, 1, 1], [], []>} : vector<56x97xf32>, vector<97x32xf32>, vector<56x32xf32> -> vector<56x32xf32>
    %67 = arith.addf %62, %66 : vector<56x32xf32>
    %68 = vector.extract_strided_slice %46 {offsets = [4, 0], sizes = [56, 97], strides = [1, 1]} : vector<60x97xf32> to vector<56x97xf32>
    %c4_44 = arith.constant 4 : index
    %c0_45 = arith.constant 0 : index
    %c0_46 = arith.constant 0 : index
    %69 = vector.load %arg4[%c4_44, %c0_45, %c0_46] : memref<5x97x32xf32, #tpu.memory_space<vmem>>, vector<1x97x32xf32>
    %70 = vector.shape_cast %69 : vector<1x97x32xf32> to vector<97x32xf32>
    %cst_47 = arith.constant dense<0.000000e+00> : vector<56x32xf32>
    %71 = tpu.matmul %68, %70, %cst_47 {dimension_numbers = #tpu.dot_dimension_numbers<[1], [0], [0], [1], [0, 0, 1, 1], [], []>} : vector<56x97xf32>, vector<97x32xf32>, vector<56x32xf32> -> vector<56x32xf32>
    %72 = arith.addf %67, %71 : vector<56x32xf32>
    %73 = vector.broadcast %3 : vector<1x32xf32> to vector<56x32xf32>
    %74 = arith.addf %72, %73 : vector<56x32xf32>
    %cst_48 = arith.constant 0.000000e+00 : f32
    %75 = vector.broadcast %cst_48 : f32 to vector<56x32xf32>
    %76 = arith.cmpf ogt, %74, %75 : vector<56x32xf32>
    %cst_49 = arith.constant 0.000000e+00 : f32
    %77 = vector.broadcast %cst_49 : f32 to vector<56x32xf32>
    %78 = arith.minimumf %74, %77 : vector<56x32xf32>
    %79 = math.exp %78 : vector<56x32xf32>
    %cst_50 = arith.constant 1.000000e+00 : f32
    %80 = vector.broadcast %cst_50 : f32 to vector<56x32xf32>
    %81 = arith.subf %79, %80 : vector<56x32xf32>
    %82 = arith.select %76, %74, %81 : vector<56x32xi1>, vector<56x32xf32>
    %83 = vector.extract_strided_slice %10 {offsets = [0, 0], sizes = [56, 1], strides = [1, 1]} : vector<64x1xf32> to vector<56x1xf32>
    %84 = tpu.concatenate %82, %83 in 1 : vector<56x32xf32>, vector<56x1xf32> -> vector<56x33xf32>
    %cst_51 = arith.constant 0.000000e+00 : f32
    %85 = vector.broadcast %cst_51 : f32 to vector<52x64xf32>
    %86 = vector.extract_strided_slice %84 {offsets = [0, 0], sizes = [52, 33], strides = [1, 1]} : vector<56x33xf32> to vector<52x33xf32>
    %c0_52 = arith.constant 0 : index
    %c0_53 = arith.constant 0 : index
    %c0_54 = arith.constant 0 : index
    %87 = vector.load %arg5[%c0_52, %c0_53, %c0_54] : memref<5x33x64xf32, #tpu.memory_space<vmem>>, vector<1x33x64xf32>
    %88 = vector.shape_cast %87 : vector<1x33x64xf32> to vector<33x64xf32>
    %cst_55 = arith.constant dense<0.000000e+00> : vector<52x64xf32>
    %89 = tpu.matmul %86, %88, %cst_55 {dimension_numbers = #tpu.dot_dimension_numbers<[1], [0], [0], [1], [0, 0, 1, 1], [], []>} : vector<52x33xf32>, vector<33x64xf32>, vector<52x64xf32> -> vector<52x64xf32>
    %90 = arith.addf %85, %89 : vector<52x64xf32>
    %91 = vector.extract_strided_slice %84 {offsets = [1, 0], sizes = [52, 33], strides = [1, 1]} : vector<56x33xf32> to vector<52x33xf32>
    %c1_56 = arith.constant 1 : index
    %c0_57 = arith.constant 0 : index
    %c0_58 = arith.constant 0 : index
    %92 = vector.load %arg5[%c1_56, %c0_57, %c0_58] : memref<5x33x64xf32, #tpu.memory_space<vmem>>, vector<1x33x64xf32>
    %93 = vector.shape_cast %92 : vector<1x33x64xf32> to vector<33x64xf32>
    %cst_59 = arith.constant dense<0.000000e+00> : vector<52x64xf32>
    %94 = tpu.matmul %91, %93, %cst_59 {dimension_numbers = #tpu.dot_dimension_numbers<[1], [0], [0], [1], [0, 0, 1, 1], [], []>} : vector<52x33xf32>, vector<33x64xf32>, vector<52x64xf32> -> vector<52x64xf32>
    %95 = arith.addf %90, %94 : vector<52x64xf32>
    %96 = vector.extract_strided_slice %84 {offsets = [2, 0], sizes = [52, 33], strides = [1, 1]} : vector<56x33xf32> to vector<52x33xf32>
    %c2_60 = arith.constant 2 : index
    %c0_61 = arith.constant 0 : index
    %c0_62 = arith.constant 0 : index
    %97 = vector.load %arg5[%c2_60, %c0_61, %c0_62] : memref<5x33x64xf32, #tpu.memory_space<vmem>>, vector<1x33x64xf32>
    %98 = vector.shape_cast %97 : vector<1x33x64xf32> to vector<33x64xf32>
    %cst_63 = arith.constant dense<0.000000e+00> : vector<52x64xf32>
    %99 = tpu.matmul %96, %98, %cst_63 {dimension_numbers = #tpu.dot_dimension_numbers<[1], [0], [0], [1], [0, 0, 1, 1], [], []>} : vector<52x33xf32>, vector<33x64xf32>, vector<52x64xf32> -> vector<52x64xf32>
    %100 = arith.addf %95, %99 : vector<52x64xf32>
    %101 = vector.extract_strided_slice %84 {offsets = [3, 0], sizes = [52, 33], strides = [1, 1]} : vector<56x33xf32> to vector<52x33xf32>
    %c3_64 = arith.constant 3 : index
    %c0_65 = arith.constant 0 : index
    %c0_66 = arith.constant 0 : index
    %102 = vector.load %arg5[%c3_64, %c0_65, %c0_66] : memref<5x33x64xf32, #tpu.memory_space<vmem>>, vector<1x33x64xf32>
    %103 = vector.shape_cast %102 : vector<1x33x64xf32> to vector<33x64xf32>
    %cst_67 = arith.constant dense<0.000000e+00> : vector<52x64xf32>
    %104 = tpu.matmul %101, %103, %cst_67 {dimension_numbers = #tpu.dot_dimension_numbers<[1], [0], [0], [1], [0, 0, 1, 1], [], []>} : vector<52x33xf32>, vector<33x64xf32>, vector<52x64xf32> -> vector<52x64xf32>
    %105 = arith.addf %100, %104 : vector<52x64xf32>
    %106 = vector.extract_strided_slice %84 {offsets = [4, 0], sizes = [52, 33], strides = [1, 1]} : vector<56x33xf32> to vector<52x33xf32>
    %c4_68 = arith.constant 4 : index
    %c0_69 = arith.constant 0 : index
    %c0_70 = arith.constant 0 : index
    %107 = vector.load %arg5[%c4_68, %c0_69, %c0_70] : memref<5x33x64xf32, #tpu.memory_space<vmem>>, vector<1x33x64xf32>
    %108 = vector.shape_cast %107 : vector<1x33x64xf32> to vector<33x64xf32>
    %cst_71 = arith.constant dense<0.000000e+00> : vector<52x64xf32>
    %109 = tpu.matmul %106, %108, %cst_71 {dimension_numbers = #tpu.dot_dimension_numbers<[1], [0], [0], [1], [0, 0, 1, 1], [], []>} : vector<52x33xf32>, vector<33x64xf32>, vector<52x64xf32> -> vector<52x64xf32>
    %110 = arith.addf %105, %109 : vector<52x64xf32>
    %111 = vector.broadcast %4 : vector<1x64xf32> to vector<52x64xf32>
    %112 = arith.addf %110, %111 : vector<52x64xf32>
    %cst_72 = arith.constant 0.000000e+00 : f32
    %113 = vector.broadcast %cst_72 : f32 to vector<52x64xf32>
    %114 = arith.cmpf ogt, %112, %113 : vector<52x64xf32>
    %cst_73 = arith.constant 0.000000e+00 : f32
    %115 = vector.broadcast %cst_73 : f32 to vector<52x64xf32>
    %116 = arith.minimumf %112, %115 : vector<52x64xf32>
    %117 = math.exp %116 : vector<52x64xf32>
    %cst_74 = arith.constant 1.000000e+00 : f32
    %118 = vector.broadcast %cst_74 : f32 to vector<52x64xf32>
    %119 = arith.subf %117, %118 : vector<52x64xf32>
    %120 = arith.select %114, %112, %119 : vector<52x64xi1>, vector<52x64xf32>
    %c0_75 = arith.constant 0 : index
    %c0_76 = arith.constant 0 : index
    %121 = vector.load %arg9[%c0_75, %c0_76] : memref<52x64xf32, #tpu.memory_space<vmem>>, vector<52x64xf32>
    tpu.vector_store %arg9[%c0_75, %c0_76], %120 {strides = array<i32>} : memref<52x64xf32, #tpu.memory_space<vmem>>, vector<52x64xf32>,
    %c0_77 = arith.constant 0 : index
    %c0_78 = arith.constant 0 : index
    %122 = tpu.strided_load %arg9[%c0_77, %c0_78] {strides = array<i32: 2, 1>} : memref<52x64xf32, #tpu.memory_space<vmem>>, vector<26x64xf32>
    %c1_79 = arith.constant 1 : index
    %c0_80 = arith.constant 0 : index
    %123 = tpu.strided_load %arg9[%c1_79, %c0_80] {strides = array<i32: 2, 1>} : memref<52x64xf32, #tpu.memory_space<vmem>>, vector<26x64xf32>
    %124 = arith.maximumf %122, %123 : vector<26x64xf32>
    %cst_81 = arith.constant dense<0.000000e+00> : vector<26x2xf32>
    %125 = tpu.matmul %124, %6, %cst_81 {dimension_numbers = #tpu.dot_dimension_numbers<[1], [0], [0], [1], [0, 0, 1, 1], [], []>} : vector<26x64xf32>, vector<64x2xf32>, vector<26x2xf32> -> vector<26x2xf32>
    %126 = vector.broadcast %5 : vector<1x2xf32> to vector<26x2xf32>
    %127 = arith.addf %125, %126 : vector<26x2xf32>
    %cst_82 = arith.constant 0.000000e+00 : f32
    %128 = vector.broadcast %cst_82 : f32 to vector<26x2xf32>
    %129 = arith.cmpf ogt, %127, %128 : vector<26x2xf32>
    %cst_83 = arith.constant 0.000000e+00 : f32
    %130 = vector.broadcast %cst_83 : f32 to vector<26x2xf32>
    %131 = arith.minimumf %127, %130 : vector<26x2xf32>
    %132 = math.exp %131 : vector<26x2xf32>
    %cst_84 = arith.constant 1.000000e+00 : f32
    %133 = vector.broadcast %cst_84 : f32 to vector<26x2xf32>
    %134 = arith.subf %132, %133 : vector<26x2xf32>
    %135 = arith.select %129, %127, %134 : vector<26x2xi1>, vector<26x2xf32>
    %c0_85 = arith.constant 0 : index
    %c0_86 = arith.constant 0 : index
    %136 = vector.load %arg10[%c0_85, %c0_86] : memref<26x2xf32, #tpu.memory_space<vmem>>, vector<26x2xf32>
    tpu.vector_store %arg10[%c0_85, %c0_86], %135 {strides = array<i32>} : memref<26x2xf32, #tpu.memory_space<vmem>>, vector<26x2xf32>,
    %c0_87 = arith.constant 0 : index
    %c0_88 = arith.constant 0 : index
    %137 = tpu.strided_load %arg10[%c0_87, %c0_88] {strides = array<i32: 2, 1>} : memref<26x2xf32, #tpu.memory_space<vmem>>, vector<13x2xf32>
    %c1_89 = arith.constant 1 : index
    %c0_90 = arith.constant 0 : index
    %138 = tpu.strided_load %arg10[%c1_89, %c0_90] {strides = array<i32: 2, 1>} : memref<26x2xf32, #tpu.memory_space<vmem>>, vector<13x2xf32>
    %139 = arith.maximumf %137, %138 : vector<13x2xf32>
    %140 = vector.extract_strided_slice %139 {offsets = [0, 0], sizes = [13, 1], strides = [1, 1]} : vector<13x2xf32> to vector<13x1xf32>
    %c0_91 = arith.constant 0 : index
    %c0_92 = arith.constant 0 : index
    %141 = vector.load %arg11[%c0_91, %c0_92] : memref<26x2xf32, #tpu.memory_space<vmem>>, vector<13x1xf32>
    tpu.vector_store %arg11[%c0_91, %c0_92], %140 {strides = array<i32>} : memref<26x2xf32, #tpu.memory_space<vmem>>, vector<13x1xf32>,
    %142 = vector.extract_strided_slice %139 {offsets = [0, 1], sizes = [13, 1], strides = [1, 1]} : vector<13x2xf32> to vector<13x1xf32>
    %c13 = arith.constant 13 : index
    %c0_93 = arith.constant 0 : index
    %143 = vector.load %arg11[%c13, %c0_93] : memref<26x2xf32, #tpu.memory_space<vmem>>, vector<13x1xf32>
    tpu.vector_store %arg11[%c13, %c0_93], %142 {strides = array<i32>} : memref<26x2xf32, #tpu.memory_space<vmem>>, vector<13x1xf32>,
    %c1_94 = arith.constant 1 : index
    %c0_95 = arith.constant 0 : index
    %c0_96 = arith.constant 0 : index
    %144 = vector.load %arg0[%c1_94, %c0_95, %c0_96] : memref<2x64x66xf32, #tpu.memory_space<vmem>>, vector<1x64x66xf32>
    %145 = vector.shape_cast %144 : vector<1x64x66xf32> to vector<64x66xf32>
    %146 = vector.extract_strided_slice %145 {offsets = [0, 0], sizes = [64, 65], strides = [1, 1]} : vector<64x66xf32> to vector<64x65xf32>
    %147 = vector.extract_strided_slice %145 {offsets = [0, 65], sizes = [64, 1], strides = [1, 1]} : vector<64x66xf32> to vector<64x1xf32>
    %cst_97 = arith.constant 0.000000e+00 : f32
    %148 = vector.broadcast %cst_97 : f32 to vector<60x97xf32>
    %149 = vector.extract_strided_slice %146 {offsets = [0, 0], sizes = [60, 65], strides = [1, 1]} : vector<64x65xf32> to vector<60x65xf32>
    %c0_98 = arith.constant 0 : index
    %c0_99 = arith.constant 0 : index
    %c0_100 = arith.constant 0 : index
    %150 = vector.load %arg3[%c0_98, %c0_99, %c0_100] : memref<5x65x97xf32, #tpu.memory_space<vmem>>, vector<1x65x97xf32>
    %151 = vector.shape_cast %150 : vector<1x65x97xf32> to vector<65x97xf32>
    %cst_101 = arith.constant dense<0.000000e+00> : vector<60x97xf32>
    %152 = tpu.matmul %149, %151, %cst_101 {dimension_numbers = #tpu.dot_dimension_numbers<[1], [0], [0], [1], [0, 0, 1, 1], [], []>} : vector<60x65xf32>, vector<65x97xf32>, vector<60x97xf32> -> vector<60x97xf32>
    %153 = arith.addf %148, %152 : vector<60x97xf32>
    %154 = vector.extract_strided_slice %146 {offsets = [1, 0], sizes = [60, 65], strides = [1, 1]} : vector<64x65xf32> to vector<60x65xf32>
    %c1_102 = arith.constant 1 : index
    %c0_103 = arith.constant 0 : index
    %c0_104 = arith.constant 0 : index
    %155 = vector.load %arg3[%c1_102, %c0_103, %c0_104] : memref<5x65x97xf32, #tpu.memory_space<vmem>>, vector<1x65x97xf32>
    %156 = vector.shape_cast %155 : vector<1x65x97xf32> to vector<65x97xf32>
    %cst_105 = arith.constant dense<0.000000e+00> : vector<60x97xf32>
    %157 = tpu.matmul %154, %156, %cst_105 {dimension_numbers = #tpu.dot_dimension_numbers<[1], [0], [0], [1], [0, 0, 1, 1], [], []>} : vector<60x65xf32>, vector<65x97xf32>, vector<60x97xf32> -> vector<60x97xf32>
    %158 = arith.addf %153, %157 : vector<60x97xf32>
    %159 = vector.extract_strided_slice %146 {offsets = [2, 0], sizes = [60, 65], strides = [1, 1]} : vector<64x65xf32> to vector<60x65xf32>
    %c2_106 = arith.constant 2 : index
    %c0_107 = arith.constant 0 : index
    %c0_108 = arith.constant 0 : index
    %160 = vector.load %arg3[%c2_106, %c0_107, %c0_108] : memref<5x65x97xf32, #tpu.memory_space<vmem>>, vector<1x65x97xf32>
    %161 = vector.shape_cast %160 : vector<1x65x97xf32> to vector<65x97xf32>
    %cst_109 = arith.constant dense<0.000000e+00> : vector<60x97xf32>
    %162 = tpu.matmul %159, %161, %cst_109 {dimension_numbers = #tpu.dot_dimension_numbers<[1], [0], [0], [1], [0, 0, 1, 1], [], []>} : vector<60x65xf32>, vector<65x97xf32>, vector<60x97xf32> -> vector<60x97xf32>
    %163 = arith.addf %158, %162 : vector<60x97xf32>
    %164 = vector.extract_strided_slice %146 {offsets = [3, 0], sizes = [60, 65], strides = [1, 1]} : vector<64x65xf32> to vector<60x65xf32>
    %c3_110 = arith.constant 3 : index
    %c0_111 = arith.constant 0 : index
    %c0_112 = arith.constant 0 : index
    %165 = vector.load %arg3[%c3_110, %c0_111, %c0_112] : memref<5x65x97xf32, #tpu.memory_space<vmem>>, vector<1x65x97xf32>
    %166 = vector.shape_cast %165 : vector<1x65x97xf32> to vector<65x97xf32>
    %cst_113 = arith.constant dense<0.000000e+00> : vector<60x97xf32>
    %167 = tpu.matmul %164, %166, %cst_113 {dimension_numbers = #tpu.dot_dimension_numbers<[1], [0], [0], [1], [0, 0, 1, 1], [], []>} : vector<60x65xf32>, vector<65x97xf32>, vector<60x97xf32> -> vector<60x97xf32>
    %168 = arith.addf %163, %167 : vector<60x97xf32>
    %169 = vector.extract_strided_slice %146 {offsets = [4, 0], sizes = [60, 65], strides = [1, 1]} : vector<64x65xf32> to vector<60x65xf32>
    %c4_114 = arith.constant 4 : index
    %c0_115 = arith.constant 0 : index
    %c0_116 = arith.constant 0 : index
    %170 = vector.load %arg3[%c4_114, %c0_115, %c0_116] : memref<5x65x97xf32, #tpu.memory_space<vmem>>, vector<1x65x97xf32>
    %171 = vector.shape_cast %170 : vector<1x65x97xf32> to vector<65x97xf32>
    %cst_117 = arith.constant dense<0.000000e+00> : vector<60x97xf32>
    %172 = tpu.matmul %169, %171, %cst_117 {dimension_numbers = #tpu.dot_dimension_numbers<[1], [0], [0], [1], [0, 0, 1, 1], [], []>} : vector<60x65xf32>, vector<65x97xf32>, vector<60x97xf32> -> vector<60x97xf32>
    %173 = arith.addf %168, %172 : vector<60x97xf32>
    %174 = vector.broadcast %2 : vector<1x97xf32> to vector<60x97xf32>
    %175 = arith.addf %173, %174 : vector<60x97xf32>
    %cst_118 = arith.constant 0.000000e+00 : f32
    %176 = vector.broadcast %cst_118 : f32 to vector<60x97xf32>
    %177 = arith.cmpf ogt, %175, %176 : vector<60x97xf32>
    %cst_119 = arith.constant 0.000000e+00 : f32
    %178 = vector.broadcast %cst_119 : f32 to vector<60x97xf32>
    %179 = arith.minimumf %175, %178 : vector<60x97xf32>
    %180 = math.exp %179 : vector<60x97xf32>
    %cst_120 = arith.constant 1.000000e+00 : f32
    %181 = vector.broadcast %cst_120 : f32 to vector<60x97xf32>
    %182 = arith.subf %180, %181 : vector<60x97xf32>
    %183 = arith.select %177, %175, %182 : vector<60x97xi1>, vector<60x97xf32>
    %cst_121 = arith.constant 0.000000e+00 : f32
    %184 = vector.broadcast %cst_121 : f32 to vector<56x32xf32>
    %185 = vector.extract_strided_slice %183 {offsets = [0, 0], sizes = [56, 97], strides = [1, 1]} : vector<60x97xf32> to vector<56x97xf32>
    %c0_122 = arith.constant 0 : index
    %c0_123 = arith.constant 0 : index
    %c0_124 = arith.constant 0 : index
    %186 = vector.load %arg4[%c0_122, %c0_123, %c0_124] : memref<5x97x32xf32, #tpu.memory_space<vmem>>, vector<1x97x32xf32>
    %187 = vector.shape_cast %186 : vector<1x97x32xf32> to vector<97x32xf32>
    %cst_125 = arith.constant dense<0.000000e+00> : vector<56x32xf32>
    %188 = tpu.matmul %185, %187, %cst_125 {dimension_numbers = #tpu.dot_dimension_numbers<[1], [0], [0], [1], [0, 0, 1, 1], [], []>} : vector<56x97xf32>, vector<97x32xf32>, vector<56x32xf32> -> vector<56x32xf32>
    %189 = arith.addf %184, %188 : vector<56x32xf32>
    %190 = vector.extract_strided_slice %183 {offsets = [1, 0], sizes = [56, 97], strides = [1, 1]} : vector<60x97xf32> to vector<56x97xf32>
    %c1_126 = arith.constant 1 : index
    %c0_127 = arith.constant 0 : index
    %c0_128 = arith.constant 0 : index
    %191 = vector.load %arg4[%c1_126, %c0_127, %c0_128] : memref<5x97x32xf32, #tpu.memory_space<vmem>>, vector<1x97x32xf32>
    %192 = vector.shape_cast %191 : vector<1x97x32xf32> to vector<97x32xf32>
    %cst_129 = arith.constant dense<0.000000e+00> : vector<56x32xf32>
    %193 = tpu.matmul %190, %192, %cst_129 {dimension_numbers = #tpu.dot_dimension_numbers<[1], [0], [0], [1], [0, 0, 1, 1], [], []>} : vector<56x97xf32>, vector<97x32xf32>, vector<56x32xf32> -> vector<56x32xf32>
    %194 = arith.addf %189, %193 : vector<56x32xf32>
    %195 = vector.extract_strided_slice %183 {offsets = [2, 0], sizes = [56, 97], strides = [1, 1]} : vector<60x97xf32> to vector<56x97xf32>
    %c2_130 = arith.constant 2 : index
    %c0_131 = arith.constant 0 : index
    %c0_132 = arith.constant 0 : index
    %196 = vector.load %arg4[%c2_130, %c0_131, %c0_132] : memref<5x97x32xf32, #tpu.memory_space<vmem>>, vector<1x97x32xf32>
    %197 = vector.shape_cast %196 : vector<1x97x32xf32> to vector<97x32xf32>
    %cst_133 = arith.constant dense<0.000000e+00> : vector<56x32xf32>
    %198 = tpu.matmul %195, %197, %cst_133 {dimension_numbers = #tpu.dot_dimension_numbers<[1], [0], [0], [1], [0, 0, 1, 1], [], []>} : vector<56x97xf32>, vector<97x32xf32>, vector<56x32xf32> -> vector<56x32xf32>
    %199 = arith.addf %194, %198 : vector<56x32xf32>
    %200 = vector.extract_strided_slice %183 {offsets = [3, 0], sizes = [56, 97], strides = [1, 1]} : vector<60x97xf32> to vector<56x97xf32>
    %c3_134 = arith.constant 3 : index
    %c0_135 = arith.constant 0 : index
    %c0_136 = arith.constant 0 : index
    %201 = vector.load %arg4[%c3_134, %c0_135, %c0_136] : memref<5x97x32xf32, #tpu.memory_space<vmem>>, vector<1x97x32xf32>
    %202 = vector.shape_cast %201 : vector<1x97x32xf32> to vector<97x32xf32>
    %cst_137 = arith.constant dense<0.000000e+00> : vector<56x32xf32>
    %203 = tpu.matmul %200, %202, %cst_137 {dimension_numbers = #tpu.dot_dimension_numbers<[1], [0], [0], [1], [0, 0, 1, 1], [], []>} : vector<56x97xf32>, vector<97x32xf32>, vector<56x32xf32> -> vector<56x32xf32>
    %204 = arith.addf %199, %203 : vector<56x32xf32>
    %205 = vector.extract_strided_slice %183 {offsets = [4, 0], sizes = [56, 97], strides = [1, 1]} : vector<60x97xf32> to vector<56x97xf32>
    %c4_138 = arith.constant 4 : index
    %c0_139 = arith.constant 0 : index
    %c0_140 = arith.constant 0 : index
    %206 = vector.load %arg4[%c4_138, %c0_139, %c0_140] : memref<5x97x32xf32, #tpu.memory_space<vmem>>, vector<1x97x32xf32>
    %207 = vector.shape_cast %206 : vector<1x97x32xf32> to vector<97x32xf32>
    %cst_141 = arith.constant dense<0.000000e+00> : vector<56x32xf32>
    %208 = tpu.matmul %205, %207, %cst_141 {dimension_numbers = #tpu.dot_dimension_numbers<[1], [0], [0], [1], [0, 0, 1, 1], [], []>} : vector<56x97xf32>, vector<97x32xf32>, vector<56x32xf32> -> vector<56x32xf32>
    %209 = arith.addf %204, %208 : vector<56x32xf32>
    %210 = vector.broadcast %3 : vector<1x32xf32> to vector<56x32xf32>
    %211 = arith.addf %209, %210 : vector<56x32xf32>
    %cst_142 = arith.constant 0.000000e+00 : f32
    %212 = vector.broadcast %cst_142 : f32 to vector<56x32xf32>
    %213 = arith.cmpf ogt, %211, %212 : vector<56x32xf32>
    %cst_143 = arith.constant 0.000000e+00 : f32
    %214 = vector.broadcast %cst_143 : f32 to vector<56x32xf32>
    %215 = arith.minimumf %211, %214 : vector<56x32xf32>
    %216 = math.exp %215 : vector<56x32xf32>
    %cst_144 = arith.constant 1.000000e+00 : f32
    %217 = vector.broadcast %cst_144 : f32 to vector<56x32xf32>
    %218 = arith.subf %216, %217 : vector<56x32xf32>
    %219 = arith.select %213, %211, %218 : vector<56x32xi1>, vector<56x32xf32>
    %220 = vector.extract_strided_slice %147 {offsets = [0, 0], sizes = [56, 1], strides = [1, 1]} : vector<64x1xf32> to vector<56x1xf32>
    %221 = tpu.concatenate %219, %220 in 1 : vector<56x32xf32>, vector<56x1xf32> -> vector<56x33xf32>
    %cst_145 = arith.constant 0.000000e+00 : f32
    %222 = vector.broadcast %cst_145 : f32 to vector<52x64xf32>
    %223 = vector.extract_strided_slice %221 {offsets = [0, 0], sizes = [52, 33], strides = [1, 1]} : vector<56x33xf32> to vector<52x33xf32>
    %c0_146 = arith.constant 0 : index
    %c0_147 = arith.constant 0 : index
    %c0_148 = arith.constant 0 : index
    %224 = vector.load %arg5[%c0_146, %c0_147, %c0_148] : memref<5x33x64xf32, #tpu.memory_space<vmem>>, vector<1x33x64xf32>
    %225 = vector.shape_cast %224 : vector<1x33x64xf32> to vector<33x64xf32>
    %cst_149 = arith.constant dense<0.000000e+00> : vector<52x64xf32>
    %226 = tpu.matmul %223, %225, %cst_149 {dimension_numbers = #tpu.dot_dimension_numbers<[1], [0], [0], [1], [0, 0, 1, 1], [], []>} : vector<52x33xf32>, vector<33x64xf32>, vector<52x64xf32> -> vector<52x64xf32>
    %227 = arith.addf %222, %226 : vector<52x64xf32>
    %228 = vector.extract_strided_slice %221 {offsets = [1, 0], sizes = [52, 33], strides = [1, 1]} : vector<56x33xf32> to vector<52x33xf32>
    %c1_150 = arith.constant 1 : index
    %c0_151 = arith.constant 0 : index
    %c0_152 = arith.constant 0 : index
    %229 = vector.load %arg5[%c1_150, %c0_151, %c0_152] : memref<5x33x64xf32, #tpu.memory_space<vmem>>, vector<1x33x64xf32>
    %230 = vector.shape_cast %229 : vector<1x33x64xf32> to vector<33x64xf32>
    %cst_153 = arith.constant dense<0.000000e+00> : vector<52x64xf32>
    %231 = tpu.matmul %228, %230, %cst_153 {dimension_numbers = #tpu.dot_dimension_numbers<[1], [0], [0], [1], [0, 0, 1, 1], [], []>} : vector<52x33xf32>, vector<33x64xf32>, vector<52x64xf32> -> vector<52x64xf32>
    %232 = arith.addf %227, %231 : vector<52x64xf32>
    %233 = vector.extract_strided_slice %221 {offsets = [2, 0], sizes = [52, 33], strides = [1, 1]} : vector<56x33xf32> to vector<52x33xf32>
    %c2_154 = arith.constant 2 : index
    %c0_155 = arith.constant 0 : index
    %c0_156 = arith.constant 0 : index
    %234 = vector.load %arg5[%c2_154, %c0_155, %c0_156] : memref<5x33x64xf32, #tpu.memory_space<vmem>>, vector<1x33x64xf32>
    %235 = vector.shape_cast %234 : vector<1x33x64xf32> to vector<33x64xf32>
    %cst_157 = arith.constant dense<0.000000e+00> : vector<52x64xf32>
    %236 = tpu.matmul %233, %235, %cst_157 {dimension_numbers = #tpu.dot_dimension_numbers<[1], [0], [0], [1], [0, 0, 1, 1], [], []>} : vector<52x33xf32>, vector<33x64xf32>, vector<52x64xf32> -> vector<52x64xf32>
    %237 = arith.addf %232, %236 : vector<52x64xf32>
    %238 = vector.extract_strided_slice %221 {offsets = [3, 0], sizes = [52, 33], strides = [1, 1]} : vector<56x33xf32> to vector<52x33xf32>
    %c3_158 = arith.constant 3 : index
    %c0_159 = arith.constant 0 : index
    %c0_160 = arith.constant 0 : index
    %239 = vector.load %arg5[%c3_158, %c0_159, %c0_160] : memref<5x33x64xf32, #tpu.memory_space<vmem>>, vector<1x33x64xf32>
    %240 = vector.shape_cast %239 : vector<1x33x64xf32> to vector<33x64xf32>
    %cst_161 = arith.constant dense<0.000000e+00> : vector<52x64xf32>
    %241 = tpu.matmul %238, %240, %cst_161 {dimension_numbers = #tpu.dot_dimension_numbers<[1], [0], [0], [1], [0, 0, 1, 1], [], []>} : vector<52x33xf32>, vector<33x64xf32>, vector<52x64xf32> -> vector<52x64xf32>
    %242 = arith.addf %237, %241 : vector<52x64xf32>
    %243 = vector.extract_strided_slice %221 {offsets = [4, 0], sizes = [52, 33], strides = [1, 1]} : vector<56x33xf32> to vector<52x33xf32>
    %c4_162 = arith.constant 4 : index
    %c0_163 = arith.constant 0 : index
    %c0_164 = arith.constant 0 : index
    %244 = vector.load %arg5[%c4_162, %c0_163, %c0_164] : memref<5x33x64xf32, #tpu.memory_space<vmem>>, vector<1x33x64xf32>
    %245 = vector.shape_cast %244 : vector<1x33x64xf32> to vector<33x64xf32>
    %cst_165 = arith.constant dense<0.000000e+00> : vector<52x64xf32>
    %246 = tpu.matmul %243, %245, %cst_165 {dimension_numbers = #tpu.dot_dimension_numbers<[1], [0], [0], [1], [0, 0, 1, 1], [], []>} : vector<52x33xf32>, vector<33x64xf32>, vector<52x64xf32> -> vector<52x64xf32>
    %247 = arith.addf %242, %246 : vector<52x64xf32>
    %248 = vector.broadcast %4 : vector<1x64xf32> to vector<52x64xf32>
    %249 = arith.addf %247, %248 : vector<52x64xf32>
    %cst_166 = arith.constant 0.000000e+00 : f32
    %250 = vector.broadcast %cst_166 : f32 to vector<52x64xf32>
    %251 = arith.cmpf ogt, %249, %250 : vector<52x64xf32>
    %cst_167 = arith.constant 0.000000e+00 : f32
    %252 = vector.broadcast %cst_167 : f32 to vector<52x64xf32>
    %253 = arith.minimumf %249, %252 : vector<52x64xf32>
    %254 = math.exp %253 : vector<52x64xf32>
    %cst_168 = arith.constant 1.000000e+00 : f32
    %255 = vector.broadcast %cst_168 : f32 to vector<52x64xf32>
    %256 = arith.subf %254, %255 : vector<52x64xf32>
    %257 = arith.select %251, %249, %256 : vector<52x64xi1>, vector<52x64xf32>
    %c0_169 = arith.constant 0 : index
    %c0_170 = arith.constant 0 : index
    %258 = vector.load %arg9[%c0_169, %c0_170] : memref<52x64xf32, #tpu.memory_space<vmem>>, vector<52x64xf32>
    tpu.vector_store %arg9[%c0_169, %c0_170], %257 {strides = array<i32>} : memref<52x64xf32, #tpu.memory_space<vmem>>, vector<52x64xf32>,
    %c0_171 = arith.constant 0 : index
    %c0_172 = arith.constant 0 : index
    %259 = tpu.strided_load %arg9[%c0_171, %c0_172] {strides = array<i32: 2, 1>} : memref<52x64xf32, #tpu.memory_space<vmem>>, vector<26x64xf32>
    %c1_173 = arith.constant 1 : index
    %c0_174 = arith.constant 0 : index
    %260 = tpu.strided_load %arg9[%c1_173, %c0_174] {strides = array<i32: 2, 1>} : memref<52x64xf32, #tpu.memory_space<vmem>>, vector<26x64xf32>
    %261 = arith.maximumf %259, %260 : vector<26x64xf32>
    %cst_175 = arith.constant dense<0.000000e+00> : vector<26x2xf32>
    %262 = tpu.matmul %261, %6, %cst_175 {dimension_numbers = #tpu.dot_dimension_numbers<[1], [0], [0], [1], [0, 0, 1, 1], [], []>} : vector<26x64xf32>, vector<64x2xf32>, vector<26x2xf32> -> vector<26x2xf32>
    %263 = vector.broadcast %5 : vector<1x2xf32> to vector<26x2xf32>
    %264 = arith.addf %262, %263 : vector<26x2xf32>
    %cst_176 = arith.constant 0.000000e+00 : f32
    %265 = vector.broadcast %cst_176 : f32 to vector<26x2xf32>
    %266 = arith.cmpf ogt, %264, %265 : vector<26x2xf32>
    %cst_177 = arith.constant 0.000000e+00 : f32
    %267 = vector.broadcast %cst_177 : f32 to vector<26x2xf32>
    %268 = arith.minimumf %264, %267 : vector<26x2xf32>
    %269 = math.exp %268 : vector<26x2xf32>
    %cst_178 = arith.constant 1.000000e+00 : f32
    %270 = vector.broadcast %cst_178 : f32 to vector<26x2xf32>
    %271 = arith.subf %269, %270 : vector<26x2xf32>
    %272 = arith.select %266, %264, %271 : vector<26x2xi1>, vector<26x2xf32>
    %c0_179 = arith.constant 0 : index
    %c0_180 = arith.constant 0 : index
    %273 = vector.load %arg10[%c0_179, %c0_180] : memref<26x2xf32, #tpu.memory_space<vmem>>, vector<26x2xf32>
    tpu.vector_store %arg10[%c0_179, %c0_180], %272 {strides = array<i32>} : memref<26x2xf32, #tpu.memory_space<vmem>>, vector<26x2xf32>,
    %c0_181 = arith.constant 0 : index
    %c0_182 = arith.constant 0 : index
    %274 = tpu.strided_load %arg10[%c0_181, %c0_182] {strides = array<i32: 2, 1>} : memref<26x2xf32, #tpu.memory_space<vmem>>, vector<13x2xf32>
    %c1_183 = arith.constant 1 : index
    %c0_184 = arith.constant 0 : index
    %275 = tpu.strided_load %arg10[%c1_183, %c0_184] {strides = array<i32: 2, 1>} : memref<26x2xf32, #tpu.memory_space<vmem>>, vector<13x2xf32>
    %276 = arith.maximumf %274, %275 : vector<13x2xf32>
    %277 = vector.extract_strided_slice %276 {offsets = [0, 0], sizes = [13, 1], strides = [1, 1]} : vector<13x2xf32> to vector<13x1xf32>
    %c0_185 = arith.constant 0 : index
    %c1_186 = arith.constant 1 : index
    %278 = vector.load %arg11[%c0_185, %c1_186] : memref<26x2xf32, #tpu.memory_space<vmem>>, vector<13x1xf32>
    tpu.vector_store %arg11[%c0_185, %c1_186], %277 {strides = array<i32>} : memref<26x2xf32, #tpu.memory_space<vmem>>, vector<13x1xf32>,
    %279 = vector.extract_strided_slice %276 {offsets = [0, 1], sizes = [13, 1], strides = [1, 1]} : vector<13x2xf32> to vector<13x1xf32>
    %c13_187 = arith.constant 13 : index
    %c1_188 = arith.constant 1 : index
    %280 = vector.load %arg11[%c13_187, %c1_188] : memref<26x2xf32, #tpu.memory_space<vmem>>, vector<13x1xf32>
    tpu.vector_store %arg11[%c13_187, %c1_188], %279 {strides = array<i32>} : memref<26x2xf32, #tpu.memory_space<vmem>>, vector<13x1xf32>,
    %c0_189 = arith.constant 0 : index
    %c0_190 = arith.constant 0 : index
    %281 = vector.load %arg11[%c0_189, %c0_190] : memref<26x2xf32, #tpu.memory_space<vmem>>, vector<26x2xf32>
    %c0_191 = arith.constant 0 : index
    %c0_192 = arith.constant 0 : index
    %c0_193 = arith.constant 0 : index
    %282 = vector.load %arg7[%c0_191, %c0_192, %c0_193] : memref<4x64x64xf32, #tpu.memory_space<vmem>>, vector<1x64x64xf32>
    %283 = vector.shape_cast %282 : vector<1x64x64xf32> to vector<64x64xf32>
    %284 = vector.extract_strided_slice %283 {offsets = [0, 0], sizes = [64, 26], strides = [1, 1]} : vector<64x64xf32> to vector<64x26xf32>
    %c1_194 = arith.constant 1 : index
    %c0_195 = arith.constant 0 : index
    %c0_196 = arith.constant 0 : index
    %285 = vector.load %arg7[%c1_194, %c0_195, %c0_196] : memref<4x64x64xf32, #tpu.memory_space<vmem>>, vector<1x64x64xf32>
    %286 = vector.shape_cast %285 : vector<1x64x64xf32> to vector<64x64xf32>
    %c2_197 = arith.constant 2 : index
    %c0_198 = arith.constant 0 : index
    %c0_199 = arith.constant 0 : index
    %287 = vector.load %arg7[%c2_197, %c0_198, %c0_199] : memref<4x64x64xf32, #tpu.memory_space<vmem>>, vector<1x64x64xf32>
    %288 = vector.shape_cast %287 : vector<1x64x64xf32> to vector<64x64xf32>
    %289 = vector.extract_strided_slice %288 {offsets = [0, 0], sizes = [32, 64], strides = [1, 1]} : vector<64x64xf32> to vector<32x64xf32>
    %c3_200 = arith.constant 3 : index
    %c0_201 = arith.constant 0 : index
    %c0_202 = arith.constant 0 : index
    %290 = vector.load %arg7[%c3_200, %c0_201, %c0_202] : memref<4x64x64xf32, #tpu.memory_space<vmem>>, vector<1x64x64xf32>
    %291 = vector.shape_cast %290 : vector<1x64x64xf32> to vector<64x64xf32>
    %292 = vector.extract_strided_slice %291 {offsets = [0, 0], sizes = [2, 32], strides = [1, 1]} : vector<64x64xf32> to vector<2x32xf32>
    %cst_203 = arith.constant dense<0.000000e+00> : vector<64x2xf32>
    %293 = tpu.matmul %284, %281, %cst_203 {dimension_numbers = #tpu.dot_dimension_numbers<[1], [0], [0], [1], [0, 0, 1, 1], [], []>} : vector<64x26xf32>, vector<26x2xf32>, vector<64x2xf32> -> vector<64x2xf32>
    %294 = vector.extract_strided_slice %1 {offsets = [0, 0], sizes = [64, 1], strides = [1, 1]} : vector<64x4xf32> to vector<64x1xf32>
    %295 = vector.broadcast %294 : vector<64x1xf32> to vector<64x2xf32>
    %296 = arith.addf %293, %295 : vector<64x2xf32>
    %cst_204 = arith.constant 0.000000e+00 : f32
    %297 = vector.broadcast %cst_204 : f32 to vector<64x2xf32>
    %298 = arith.cmpf ogt, %296, %297 : vector<64x2xf32>
    %cst_205 = arith.constant 0.000000e+00 : f32
    %299 = vector.broadcast %cst_205 : f32 to vector<64x2xf32>
    %300 = arith.minimumf %296, %299 : vector<64x2xf32>
    %301 = math.exp %300 : vector<64x2xf32>
    %cst_206 = arith.constant 1.000000e+00 : f32
    %302 = vector.broadcast %cst_206 : f32 to vector<64x2xf32>
    %303 = arith.subf %301, %302 : vector<64x2xf32>
    %304 = arith.select %298, %296, %303 : vector<64x2xi1>, vector<64x2xf32>
    %cst_207 = arith.constant dense<0.000000e+00> : vector<64x2xf32>
    %305 = tpu.matmul %286, %304, %cst_207 {dimension_numbers = #tpu.dot_dimension_numbers<[1], [0], [0], [1], [0, 0, 1, 1], [], []>} : vector<64x64xf32>, vector<64x2xf32>, vector<64x2xf32> -> vector<64x2xf32>
    %306 = vector.extract_strided_slice %1 {offsets = [0, 1], sizes = [64, 1], strides = [1, 1]} : vector<64x4xf32> to vector<64x1xf32>
    %307 = vector.broadcast %306 : vector<64x1xf32> to vector<64x2xf32>
    %308 = arith.addf %305, %307 : vector<64x2xf32>
    %cst_208 = arith.constant 0.000000e+00 : f32
    %309 = vector.broadcast %cst_208 : f32 to vector<64x2xf32>
    %310 = arith.cmpf ogt, %308, %309 : vector<64x2xf32>
    %cst_209 = arith.constant 0.000000e+00 : f32
    %311 = vector.broadcast %cst_209 : f32 to vector<64x2xf32>
    %312 = arith.minimumf %308, %311 : vector<64x2xf32>
    %313 = math.exp %312 : vector<64x2xf32>
    %cst_210 = arith.constant 1.000000e+00 : f32
    %314 = vector.broadcast %cst_210 : f32 to vector<64x2xf32>
    %315 = arith.subf %313, %314 : vector<64x2xf32>
    %316 = arith.select %310, %308, %315 : vector<64x2xi1>, vector<64x2xf32>
    %cst_211 = arith.constant dense<0.000000e+00> : vector<32x2xf32>
    %317 = tpu.matmul %289, %316, %cst_211 {dimension_numbers = #tpu.dot_dimension_numbers<[1], [0], [0], [1], [0, 0, 1, 1], [], []>} : vector<32x64xf32>, vector<64x2xf32>, vector<32x2xf32> -> vector<32x2xf32>
    %318 = vector.extract_strided_slice %1 {offsets = [0, 2], sizes = [32, 1], strides = [1, 1]} : vector<64x4xf32> to vector<32x1xf32>
    %319 = vector.broadcast %318 : vector<32x1xf32> to vector<32x2xf32>
    %320 = arith.addf %317, %319 : vector<32x2xf32>
    %cst_212 = arith.constant 0.000000e+00 : f32
    %321 = vector.broadcast %cst_212 : f32 to vector<32x2xf32>
    %322 = arith.cmpf ogt, %320, %321 : vector<32x2xf32>
    %cst_213 = arith.constant 0.000000e+00 : f32
    %323 = vector.broadcast %cst_213 : f32 to vector<32x2xf32>
    %324 = arith.minimumf %320, %323 : vector<32x2xf32>
    %325 = math.exp %324 : vector<32x2xf32>
    %cst_214 = arith.constant 1.000000e+00 : f32
    %326 = vector.broadcast %cst_214 : f32 to vector<32x2xf32>
    %327 = arith.subf %325, %326 : vector<32x2xf32>
    %328 = arith.select %322, %320, %327 : vector<32x2xi1>, vector<32x2xf32>
    %cst_215 = arith.constant dense<0.000000e+00> : vector<2x2xf32>
    %329 = tpu.matmul %292, %328, %cst_215 {dimension_numbers = #tpu.dot_dimension_numbers<[1], [0], [0], [1], [0, 0, 1, 1], [], []>} : vector<2x32xf32>, vector<32x2xf32>, vector<2x2xf32> -> vector<2x2xf32>
    %330 = vector.extract_strided_slice %1 {offsets = [0, 3], sizes = [2, 1], strides = [1, 1]} : vector<64x4xf32> to vector<2x1xf32>
    %331 = vector.broadcast %330 : vector<2x1xf32> to vector<2x2xf32>
    %332 = arith.addf %329, %331 : vector<2x2xf32>
    %c0_216 = arith.constant 0 : index
    %c0_217 = arith.constant 0 : index
    %333 = vector.load %arg8[%c0_216, %c0_217] : memref<2x2xf32, #tpu.memory_space<vmem>>, vector<2x2xf32>
    tpu.vector_store %arg8[%c0_216, %c0_217], %332 {strides = array<i32>} : memref<2x2xf32, #tpu.memory_space<vmem>>, vector<2x2xf32>,
    return
  }
}

</mosaic_0001>

<llo_original>
// kernel: nn_forward_pallas.1
$region0: #{nn_forward_pallas.1}
  #allocation0 [shape = 'u32[]', space=smem, size = 0x4, offset = 0x4, fixed_abs, tag = 'smem constant byte address 0x4 - core index']
  #allocation1 [shape = 'u32[72,128]{1,0:T(1,128)}', space=vmem, size = 0x9000, scoped, tag = 'internal scratch']
  #allocation2 [shape = 'f32[52,64]{1,0:T(8,128)}', space=vmem, size = 0x7000, scoped, tag = 'scratch operand']
  #allocation3 [shape = 'f32[26,2]{1,0:T(8,128)}', space=vmem, size = 0x4000, scoped, tag = 'scratch operand']
  #allocation4 [shape = 'f32[26,2]{1,0:T(8,128)}', space=vmem, size = 0x4000, scoped, tag = 'scratch operand']
  %s0 = inlined_call_operand.vmem [shape: f32[2,64,66], index: 0, kind: input, shape index: {}]
  %s1 = inlined_call_operand.vmem [shape: f32[4,128], index: 1, kind: input, shape index: {}]
  %s2 = inlined_call_operand.vmem [shape: f32[64,4], index: 2, kind: input, shape index: {}]
  %s3 = inlined_call_operand.vmem [shape: f32[5,65,97], index: 3, kind: input, shape index: {}]
  %s4 = inlined_call_operand.vmem [shape: f32[5,97,32], index: 4, kind: input, shape index: {}]
  %s5 = inlined_call_operand.hbm [shape: f32[5,33,64], index: 5, kind: input, shape index: {}]
  %s6 = inlined_call_operand.vmem [shape: f32[64,2], index: 6, kind: input, shape index: {}]
  %s7 = inlined_call_operand.vmem [shape: f32[4,64,64], index: 7, kind: input, shape index: {}]
  %s8 = inlined_call_operand.vmem [shape: f32[2,2], index: 8, kind: output, shape index: {}]
  %s9 = sld [smem:[#allocation0]]
  $region46: #{nn_forward_pallas.1} parent=0
    _
  %s11 = ssub.s32 1, %s9
  %s12 = scalar_select 0, %s11, %s9
  $region1: #{nn_forward_pallas.1} parent=0
    #allocation5 [shape = 'u8[102400]{0}', space=vmem, size = 0x19000, scoped, tag = 'input window, operand 5, single buffered']
    #allocation6 [shape = 's32[1]{0}', space=sflag, size = 0x4, scoped, tag = 'scoped memory for nn_forward_pallas.1']
    %13 = vsyncpa [#allocation6], 0
    // Predicated region
    $region2: #{nn_forward_pallas.1} parent=1 // pred_check
      _
    $region3: #{nn_forward_pallas.1} parent=1 // pred_check_branch
      %15 = sbr.rel (0) target = $region5
    $region4: #{nn_forward_pallas.1} parent=1 // pred_region
      _
    $region5: #{nn_forward_pallas.1} parent=1 // pred_fallthru
      _
    // Predicated region
    $region6: #{nn_forward_pallas.1} parent=1 // pred_check
      _
    $region7: #{nn_forward_pallas.1} parent=1 // pred_check_branch
      %17 = sbr.rel (0) target = $region9
    $region8: #{nn_forward_pallas.1} parent=1 // pred_region
      _
    $region9: #{nn_forward_pallas.1} parent=1 // pred_fallthru
      _
    // Predicated region
    $region10: #{nn_forward_pallas.1} parent=1 // pred_check
      _
    $region11: #{nn_forward_pallas.1} parent=1 // pred_check_branch
      %19 = sbr.rel (0) target = $region13
    $region12: #{nn_forward_pallas.1} parent=1 // pred_region
      _
    $region13: #{nn_forward_pallas.1} parent=1 // pred_fallthru
      _
    // Predicated region
    $region14: #{nn_forward_pallas.1} parent=1 // pred_check
      _
    $region15: #{nn_forward_pallas.1} parent=1 // pred_check_branch
      %21 = sbr.rel (0) target = $region17
    $region16: #{nn_forward_pallas.1} parent=1 // pred_region
      _
    $region17: #{nn_forward_pallas.1} parent=1 // pred_fallthru
      _
    // Predicated region
    $region18: #{nn_forward_pallas.1} parent=1 // pred_check
      _
    $region19: #{nn_forward_pallas.1} parent=1 // pred_check_branch
      %23 = sbr.rel (0) target = $region21
    $region20: #{nn_forward_pallas.1} parent=1 // pred_region
      _
    $region21: #{nn_forward_pallas.1} parent=1 // pred_fallthru
      _
    // Predicated region
    $region22: #{nn_forward_pallas.1} parent=1 // pred_check
      _
    $region23: #{nn_forward_pallas.1} parent=1 // pred_check_branch
      %25 = sbr.rel (0) target = $region25
    $region24: #{nn_forward_pallas.1} parent=1 // pred_region
      %27 = vsyncadd [#allocation6], 0
      %s28 = sshll.u32 %s5, 4
      %s29 = int_to_ptr.hbm [resolvable:$true] %s28
      %s30 = sshll.u32 [#allocation5], 4
      %s31 = int_to_ptr.vmem [resolvable:$true] %s30
      %36 = dma.hbm_to_vmem [thread:$0]  %s29, 3200, %s31, [#allocation6], 128, 128, 8
    $region25: #{nn_forward_pallas.1} parent=1 // pred_fallthru
      _
    // Predicated region
    $region26: #{nn_forward_pallas.1} parent=1 // pred_check
      _
    $region27: #{nn_forward_pallas.1} parent=1 // pred_check_branch
      %38 = sbr.rel (0) target = $region29
    $region28: #{nn_forward_pallas.1} parent=1 // pred_region
      _
    $region29: #{nn_forward_pallas.1} parent=1 // pred_fallthru
      _
    // Predicated region
    $region30: #{nn_forward_pallas.1} parent=1 // pred_check
      _
    $region31: #{nn_forward_pallas.1} parent=1 // pred_check_branch
      %40 = sbr.rel (0) target = $region33
    $region32: #{nn_forward_pallas.1} parent=1 // pred_region
      _
    $region33: #{nn_forward_pallas.1} parent=1 // pred_fallthru
      _
    // Predicated region
    $region34: #{nn_forward_pallas.1} parent=1 // pred_check
      _
    $region35: #{nn_forward_pallas.1} parent=1 // pred_check_branch
      %42 = sbr.rel (0) target = $region37
    $region36: #{nn_forward_pallas.1} parent=1 // pred_region
      %44 = dma.done [#allocation6], 3200
    $region37: #{nn_forward_pallas.1} parent=1 // pred_fallthru
      _
    %v45 = vld [vmem:[%s1] sm:$0xf]
    %v46 = vld [vmem:[%s2] sm:$0xff]
    %v47 = vld [vmem:[%s2 + $0x8] sm:$0xff]
    %v48 = vld [vmem:[%s2 + $0x10] sm:$0xff]
    %v49 = vld [vmem:[%s2 + $0x18] sm:$0xff]
    %v50 = vld [vmem:[%s2 + $0x20] sm:$0xff]
    %v51 = vld [vmem:[%s2 + $0x28] sm:$0xff]
    %v52 = vld [vmem:[%s2 + $0x30] sm:$0xff]
    %v53 = vld [vmem:[%s2 + $0x38] sm:$0xff]
    %v54 = vld [vmem:[%s6] sm:$0xff]
    %v55 = vld [vmem:[%s6 + $0x8] sm:$0xff]
    %v56 = vld [vmem:[%s6 + $0x10] sm:$0xff]
    %v57 = vld [vmem:[%s6 + $0x18] sm:$0xff]
    %v58 = vld [vmem:[%s6 + $0x20] sm:$0xff]
    %v59 = vld [vmem:[%s6 + $0x28] sm:$0xff]
    %v60 = vld [vmem:[%s6 + $0x30] sm:$0xff]
    %v61 = vld [vmem:[%s6 + $0x38] sm:$0xff]
    %v62 = vld [vmem:[%s0] sm:$0xff]
    %v63 = vld [vmem:[%s0 + $0x8] sm:$0xff]
    %v64 = vld [vmem:[%s0 + $0x10] sm:$0xff]
    %v65 = vld [vmem:[%s0 + $0x18] sm:$0xff]
    %v66 = vld [vmem:[%s0 + $0x20] sm:$0xff]
    %v67 = vld [vmem:[%s0 + $0x28] sm:$0xff]
    %v68 = vld [vmem:[%s0 + $0x30] sm:$0xff]
    %v69 = vld [vmem:[%s0 + $0x38] sm:$0xff]
    %v70 = vld [vmem:[%s3] sm:$0xff]
    %v71 = vld [vmem:[%s3 + $0x8] sm:$0xff]
    %v72 = vld [vmem:[%s3 + $0x10] sm:$0xff]
    %v73 = vld [vmem:[%s3 + $0x18] sm:$0xff]
    %v74 = vld [vmem:[%s3 + $0x20] sm:$0xff]
    %v75 = vld [vmem:[%s3 + $0x28] sm:$0xff]
    %v76 = vld [vmem:[%s3 + $0x30] sm:$0xff]
    %v77 = vld [vmem:[%s3 + $0x38] sm:$0xff]
    %v78 = vld [vmem:[%s3 + $0x40] sm:$0x1]
    %s79 = scalar_lea.vmem %s3, 72
    %v80 = vld [vmem:[%s79] sm:$0xff]
    %v81 = vld [vmem:[%s79 + $0x8] sm:$0xff]
    %v82 = vld [vmem:[%s79 + $0x10] sm:$0xff]
    %v83 = vld [vmem:[%s79 + $0x18] sm:$0xff]
    %v84 = vld [vmem:[%s79 + $0x20] sm:$0xff]
    %v85 = vld [vmem:[%s79 + $0x28] sm:$0xff]
    %v86 = vld [vmem:[%s79 + $0x30] sm:$0xff]
    %v87 = vld [vmem:[%s79 + $0x38] sm:$0xff]
    %v88 = vld [vmem:[%s79 + $0x40] sm:$0x1]
    %vm97 = vcmask 1046528
    %v98 = vrot.slane %v62, 1
    %v99 = vrot.slane %v63, 1
    %v100 = vsel %vm97, %v98, %v99
    %v101 = vrot.slane %v64, 1
    %v102 = vsel %vm97, %v99, %v101
    %v103 = vrot.slane %v65, 1
    %v104 = vsel %vm97, %v101, %v103
    %v105 = vrot.slane %v66, 1
    %v106 = vsel %vm97, %v103, %v105
    %v107 = vrot.slane %v67, 1
    %v108 = vsel %vm97, %v105, %v107
    %v109 = vrot.slane %v68, 1
    %v110 = vsel %vm97, %v107, %v109
    %v111 = vrot.slane %v69, 1
    %v112 = vsel %vm97, %v109, %v111
    %vm113 = vcmask 531456
    %v114 = vsel %vm113, %v100, 0
    %v116 = vsel %vm113, %v102, 0
    %v118 = vsel %vm113, %v104, 0
    %v120 = vsel %vm113, %v106, 0
    %v122 = vsel %vm113, %v108, 0
    %v124 = vsel %vm113, %v110, 0
    %v126 = vsel %vm113, %v112, 0
    %v128 = vsel %vm113, %v111, 0
    %vm130 = vcmask 1040384
    %v132 = vsel %vm130, %v88, 0
    %134 = vmatpush.msra.mxu0 0.0
    %135 = vmatpush.msra.mxu0 0.0
    %136 = vmatpush.msra.mxu0 0.0
    %137 = vmatpush.msra.mxu0 0.0
    %138 = vmatpush.msra.mxu0 0.0
    %139 = vmatpush.msra.mxu0 0.0
    %140 = vmatpush.msra.mxu0 0.0
    %141 = vmatpush.msra.mxu0 %v132
    %142 = vmatpush.msra.mxu0 %v87
    %143 = vmatpush.msra.mxu0 %v86
    %144 = vmatpush.msra.mxu0 %v85
    %145 = vmatpush.msra.mxu0 %v84
    %146 = vmatpush.msra.mxu0 %v83
    %147 = vmatpush.msra.mxu0 %v82
    %148 = vmatpush.msra.mxu0 %v81
    %149 = vmatpush.msra.mxu0 %v80
    %150 = vmatmul.f32.gmra.mxu0 %v114
    %v151 = vpop.f32.mrf.mxu0
    %v152 = vadd.f32 0.0, %v151
    %153 = vmatmul.f32.gmra.mxu0 %v116
    %v154 = vpop.f32.mrf.mxu0
    %v155 = vadd.f32 0.0, %v154
    %156 = vmatmul.f32.gmra.mxu0 %v118
    %v157 = vpop.f32.mrf.mxu0
    %v158 = vadd.f32 0.0, %v157
    %159 = vmatmul.f32.gmra.mxu0 %v120
    %v160 = vpop.f32.mrf.mxu0
    %v161 = vadd.f32 0.0, %v160
    %162 = vmatmul.f32.gmra.mxu0 %v122
    %v163 = vpop.f32.mrf.mxu0
    %v164 = vadd.f32 0.0, %v163
    %165 = vmatmul.f32.gmra.mxu0 %v124
    %v166 = vpop.f32.mrf.mxu0
    %v167 = vadd.f32 0.0, %v166
    %168 = vmatmul.f32.gmra.mxu0 %v126
    %v169 = vpop.f32.mrf.mxu0
    %v170 = vadd.f32 0.0, %v169
    %171 = vmatmul.f32.gmra.mxu0 %v128
    %v172 = vpop.f32.mrf.mxu0
    %v173 = vadd.f32 0.0, %v172
    %174 = vdwg.mxu0
    %v175 = vsel %vm113, %v62, 0
    %v177 = vsel %vm113, %v63, 0
    %v179 = vsel %vm113, %v64, 0
    %v181 = vsel %vm113, %v65, 0
    %v183 = vsel %vm113, %v66, 0
    %v185 = vsel %vm113, %v67, 0
    %v187 = vsel %vm113, %v68, 0
    %v189 = vsel %vm113, %v69, 0
    %v192 = vsel %vm130, %v78, 0
    %194 = vmatpush.msra.mxu0 0.0
    %195 = vmatpush.msra.mxu0 0.0
    %196 = vmatpush.msra.mxu0 0.0
    %197 = vmatpush.msra.mxu0 0.0
    %198 = vmatpush.msra.mxu0 0.0
    %199 = vmatpush.msra.mxu0 0.0
    %200 = vmatpush.msra.mxu0 0.0
    %201 = vmatpush.msra.mxu0 %v192
    %202 = vmatpush.msra.mxu0 %v77
    %203 = vmatpush.msra.mxu0 %v76
    %204 = vmatpush.msra.mxu0 %v75
    %205 = vmatpush.msra.mxu0 %v74
    %206 = vmatpush.msra.mxu0 %v73
    %207 = vmatpush.msra.mxu0 %v72
    %208 = vmatpush.msra.mxu0 %v71
    %209 = vmatpush.msra.mxu0 %v70
    %210 = vmatmul.f32.gmra.mxu0 %v175
    %v211 = vpop.f32.mrf.mxu0
    %v212 = vadd.f32 %v152, %v211
    %213 = vmatmul.f32.gmra.mxu0 %v177
    %v214 = vpop.f32.mrf.mxu0
    %v215 = vadd.f32 %v155, %v214
    %216 = vmatmul.f32.gmra.mxu0 %v179
    %v217 = vpop.f32.mrf.mxu0
    %v218 = vadd.f32 %v158, %v217
    %219 = vmatmul.f32.gmra.mxu0 %v181
    %v220 = vpop.f32.mrf.mxu0
    %v221 = vadd.f32 %v161, %v220
    %222 = vmatmul.f32.gmra.mxu0 %v183
    %v223 = vpop.f32.mrf.mxu0
    %v224 = vadd.f32 %v164, %v223
    %225 = vmatmul.f32.gmra.mxu0 %v185
    %v226 = vpop.f32.mrf.mxu0
    %v227 = vadd.f32 %v167, %v226
    %228 = vmatmul.f32.gmra.mxu0 %v187
    %v229 = vpop.f32.mrf.mxu0
    %v230 = vadd.f32 %v170, %v229
    %231 = vmatmul.f32.gmra.mxu0 %v189
    %v232 = vpop.f32.mrf.mxu0
    %v233 = vadd.f32 %v173, %v232
    %234 = vdwg.mxu0
    %s235 = scalar_lea.vmem %s3, 144
    %v236 = vld [vmem:[%s235] sm:$0xff]
    %v237 = vld [vmem:[%s235 + $0x8] sm:$0xff]
    %v238 = vld [vmem:[%s235 + $0x10] sm:$0xff]
    %v239 = vld [vmem:[%s235 + $0x18] sm:$0xff]
    %v240 = vld [vmem:[%s235 + $0x20] sm:$0xff]
    %v241 = vld [vmem:[%s235 + $0x28] sm:$0xff]
    %v242 = vld [vmem:[%s235 + $0x30] sm:$0xff]
    %v243 = vld [vmem:[%s235 + $0x38] sm:$0xff]
    %v244 = vld [vmem:[%s235 + $0x40] sm:$0x1]
    %vm245 = vcmask 1045504
    %v246 = vrot.slane %v62, 2
    %v247 = vrot.slane %v63, 2
    %v248 = vsel %vm245, %v246, %v247
    %v249 = vrot.slane %v64, 2
    %v250 = vsel %vm245, %v247, %v249
    %v251 = vrot.slane %v65, 2
    %v252 = vsel %vm245, %v249, %v251
    %v253 = vrot.slane %v66, 2
    %v254 = vsel %vm245, %v251, %v253
    %v255 = vrot.slane %v67, 2
    %v256 = vsel %vm245, %v253, %v255
    %v257 = vrot.slane %v68, 2
    %v258 = vsel %vm245, %v255, %v257
    %v259 = vrot.slane %v69, 2
    %v260 = vsel %vm245, %v257, %v259
    %v261 = vsel %vm113, %v248, 0
    %v263 = vsel %vm113, %v250, 0
    %v265 = vsel %vm113, %v252, 0
    %v267 = vsel %vm113, %v254, 0
    %v269 = vsel %vm113, %v256, 0
    %v271 = vsel %vm113, %v258, 0
    %v273 = vsel %vm113, %v260, 0
    %v275 = vsel %vm113, %v259, 0
    %v278 = vsel %vm130, %v244, 0
    %280 = vmatpush.msra.mxu0 0.0
    %281 = vmatpush.msra.mxu0 0.0
    %282 = vmatpush.msra.mxu0 0.0
    %283 = vmatpush.msra.mxu0 0.0
    %284 = vmatpush.msra.mxu0 0.0
    %285 = vmatpush.msra.mxu0 0.0
    %286 = vmatpush.msra.mxu0 0.0
    %287 = vmatpush.msra.mxu0 %v278
    %288 = vmatpush.msra.mxu0 %v243
    %289 = vmatpush.msra.mxu0 %v242
    %290 = vmatpush.msra.mxu0 %v241
    %291 = vmatpush.msra.mxu0 %v240
    %292 = vmatpush.msra.mxu0 %v239
    %293 = vmatpush.msra.mxu0 %v238
    %294 = vmatpush.msra.mxu0 %v237
    %295 = vmatpush.msra.mxu0 %v236
    %296 = vmatmul.f32.gmra.mxu0 %v261
    %v297 = vpop.f32.mrf.mxu0
    %v298 = vadd.f32 0.0, %v297
    %299 = vmatmul.f32.gmra.mxu0 %v263
    %v300 = vpop.f32.mrf.mxu0
    %v301 = vadd.f32 0.0, %v300
    %302 = vmatmul.f32.gmra.mxu0 %v265
    %v303 = vpop.f32.mrf.mxu0
    %v304 = vadd.f32 0.0, %v303
    %305 = vmatmul.f32.gmra.mxu0 %v267
    %v306 = vpop.f32.mrf.mxu0
    %v307 = vadd.f32 0.0, %v306
    %308 = vmatmul.f32.gmra.mxu0 %v269
    %v309 = vpop.f32.mrf.mxu0
    %v310 = vadd.f32 0.0, %v309
    %311 = vmatmul.f32.gmra.mxu0 %v271
    %v312 = vpop.f32.mrf.mxu0
    %v313 = vadd.f32 0.0, %v312
    %314 = vmatmul.f32.gmra.mxu0 %v273
    %v315 = vpop.f32.mrf.mxu0
    %v316 = vadd.f32 0.0, %v315
    %317 = vmatmul.f32.gmra.mxu0 %v275
    %v318 = vpop.f32.mrf.mxu0
    %v319 = vadd.f32 0.0, %v318
    %320 = vdwg.mxu0
    %v321 = vadd.f32 %v212, %v298
    %v322 = vadd.f32 %v215, %v301
    %v323 = vadd.f32 %v218, %v304
    %v324 = vadd.f32 %v221, %v307
    %v325 = vadd.f32 %v224, %v310
    %v326 = vadd.f32 %v227, %v313
    %v327 = vadd.f32 %v230, %v316
    %v328 = vadd.f32 %v233, %v319
    %s329 = scalar_lea.vmem %s3, 216
    %v330 = vld [vmem:[%s329] sm:$0xff]
    %v331 = vld [vmem:[%s329 + $0x8] sm:$0xff]
    %v332 = vld [vmem:[%s329 + $0x10] sm:$0xff]
    %v333 = vld [vmem:[%s329 + $0x18] sm:$0xff]
    %v334 = vld [vmem:[%s329 + $0x20] sm:$0xff]
    %v335 = vld [vmem:[%s329 + $0x28] sm:$0xff]
    %v336 = vld [vmem:[%s329 + $0x30] sm:$0xff]
    %v337 = vld [vmem:[%s329 + $0x38] sm:$0xff]
    %v338 = vld [vmem:[%s329 + $0x40] sm:$0x1]
    %vm339 = vcmask 1044480
    %v340 = vrot.slane %v62, 3
    %v341 = vrot.slane %v63, 3
    %v342 = vsel %vm339, %v340, %v341
    %v343 = vrot.slane %v64, 3
    %v344 = vsel %vm339, %v341, %v343
    %v345 = vrot.slane %v65, 3
    %v346 = vsel %vm339, %v343, %v345
    %v347 = vrot.slane %v66, 3
    %v348 = vsel %vm339, %v345, %v347
    %v349 = vrot.slane %v67, 3
    %v350 = vsel %vm339, %v347, %v349
    %v351 = vrot.slane %v68, 3
    %v352 = vsel %vm339, %v349, %v351
    %v353 = vrot.slane %v69, 3
    %v354 = vsel %vm339, %v351, %v353
    %v355 = vsel %vm113, %v342, 0
    %v357 = vsel %vm113, %v344, 0
    %v359 = vsel %vm113, %v346, 0
    %v361 = vsel %vm113, %v348, 0
    %v363 = vsel %vm113, %v350, 0
    %v365 = vsel %vm113, %v352, 0
    %v367 = vsel %vm113, %v354, 0
    %v369 = vsel %vm113, %v353, 0
    %v372 = vsel %vm130, %v338, 0
    %374 = vmatpush.msra.mxu0 0.0
    %375 = vmatpush.msra.mxu0 0.0
    %376 = vmatpush.msra.mxu0 0.0
    %377 = vmatpush.msra.mxu0 0.0
    %378 = vmatpush.msra.mxu0 0.0
    %379 = vmatpush.msra.mxu0 0.0
    %380 = vmatpush.msra.mxu0 0.0
    %381 = vmatpush.msra.mxu0 %v372
    %382 = vmatpush.msra.mxu0 %v337
    %383 = vmatpush.msra.mxu0 %v336
    %384 = vmatpush.msra.mxu0 %v335
    %385 = vmatpush.msra.mxu0 %v334
    %386 = vmatpush.msra.mxu0 %v333
    %387 = vmatpush.msra.mxu0 %v332
    %388 = vmatpush.msra.mxu0 %v331
    %389 = vmatpush.msra.mxu0 %v330
    %390 = vmatmul.f32.gmra.mxu0 %v355
    %v391 = vpop.f32.mrf.mxu0
    %v392 = vadd.f32 0.0, %v391
    %393 = vmatmul.f32.gmra.mxu0 %v357
    %v394 = vpop.f32.mrf.mxu0
    %v395 = vadd.f32 0.0, %v394
    %396 = vmatmul.f32.gmra.mxu0 %v359
    %v397 = vpop.f32.mrf.mxu0
    %v398 = vadd.f32 0.0, %v397
    %399 = vmatmul.f32.gmra.mxu0 %v361
    %v400 = vpop.f32.mrf.mxu0
    %v401 = vadd.f32 0.0, %v400
    %402 = vmatmul.f32.gmra.mxu0 %v363
    %v403 = vpop.f32.mrf.mxu0
    %v404 = vadd.f32 0.0, %v403
    %405 = vmatmul.f32.gmra.mxu0 %v365
    %v406 = vpop.f32.mrf.mxu0
    %v407 = vadd.f32 0.0, %v406
    %408 = vmatmul.f32.gmra.mxu0 %v367
    %v409 = vpop.f32.mrf.mxu0
    %v410 = vadd.f32 0.0, %v409
    %411 = vmatmul.f32.gmra.mxu0 %v369
    %v412 = vpop.f32.mrf.mxu0
    %v413 = vadd.f32 0.0, %v412
    %414 = vdwg.mxu0
    %v415 = vadd.f32 %v321, %v392
    %v416 = vadd.f32 %v322, %v395
    %v417 = vadd.f32 %v323, %v398
    %v418 = vadd.f32 %v324, %v401
    %v419 = vadd.f32 %v325, %v404
    %v420 = vadd.f32 %v326, %v407
    %v421 = vadd.f32 %v327, %v410
    %v422 = vadd.f32 %v328, %v413
    %s423 = scalar_lea.vmem %s3, 288
    %v424 = vld [vmem:[%s423] sm:$0xff]
    %v425 = vld [vmem:[%s423 + $0x8] sm:$0xff]
    %v426 = vld [vmem:[%s423 + $0x10] sm:$0xff]
    %v427 = vld [vmem:[%s423 + $0x18] sm:$0xff]
    %v428 = vld [vmem:[%s423 + $0x20] sm:$0xff]
    %v429 = vld [vmem:[%s423 + $0x28] sm:$0xff]
    %v430 = vld [vmem:[%s423 + $0x30] sm:$0xff]
    %v431 = vld [vmem:[%s423 + $0x38] sm:$0xff]
    %v432 = vld [vmem:[%s423 + $0x40] sm:$0x1]
    %vm433 = vcmask 1043456
    %v434 = vrot.slane %v62, 4
    %v435 = vrot.slane %v63, 4
    %v436 = vsel %vm433, %v434, %v435
    %v437 = vrot.slane %v64, 4
    %v438 = vsel %vm433, %v435, %v437
    %v439 = vrot.slane %v65, 4
    %v440 = vsel %vm433, %v437, %v439
    %v441 = vrot.slane %v66, 4
    %v442 = vsel %vm433, %v439, %v441
    %v443 = vrot.slane %v67, 4
    %v444 = vsel %vm433, %v441, %v443
    %v445 = vrot.slane %v68, 4
    %v446 = vsel %vm433, %v443, %v445
    %v447 = vrot.slane %v69, 4
    %v448 = vsel %vm433, %v445, %v447
    %v449 = vsel %vm113, %v436, 0
    %v451 = vsel %vm113, %v438, 0
    %v453 = vsel %vm113, %v440, 0
    %v455 = vsel %vm113, %v442, 0
    %v457 = vsel %vm113, %v444, 0
    %v459 = vsel %vm113, %v446, 0
    %v461 = vsel %vm113, %v448, 0
    %v463 = vsel %vm113, %v447, 0
    %v466 = vsel %vm130, %v432, 0
    %468 = vmatpush.msra.mxu0 0.0
    %469 = vmatpush.msra.mxu0 0.0
    %470 = vmatpush.msra.mxu0 0.0
    %471 = vmatpush.msra.mxu0 0.0
    %472 = vmatpush.msra.mxu0 0.0
    %473 = vmatpush.msra.mxu0 0.0
    %474 = vmatpush.msra.mxu0 0.0
    %475 = vmatpush.msra.mxu0 %v466
    %476 = vmatpush.msra.mxu0 %v431
    %477 = vmatpush.msra.mxu0 %v430
    %478 = vmatpush.msra.mxu0 %v429
    %479 = vmatpush.msra.mxu0 %v428
    %480 = vmatpush.msra.mxu0 %v427
    %481 = vmatpush.msra.mxu0 %v426
    %482 = vmatpush.msra.mxu0 %v425
    %483 = vmatpush.msra.mxu0 %v424
    %484 = vmatmul.f32.gmra.mxu0 %v449
    %v485 = vpop.f32.mrf.mxu0
    %v486 = vadd.f32 0.0, %v485
    %487 = vmatmul.f32.gmra.mxu0 %v451
    %v488 = vpop.f32.mrf.mxu0
    %v489 = vadd.f32 0.0, %v488
    %490 = vmatmul.f32.gmra.mxu0 %v453
    %v491 = vpop.f32.mrf.mxu0
    %v492 = vadd.f32 0.0, %v491
    %493 = vmatmul.f32.gmra.mxu0 %v455
    %v494 = vpop.f32.mrf.mxu0
    %v495 = vadd.f32 0.0, %v494
    %496 = vmatmul.f32.gmra.mxu0 %v457
    %v497 = vpop.f32.mrf.mxu0
    %v498 = vadd.f32 0.0, %v497
    %499 = vmatmul.f32.gmra.mxu0 %v459
    %v500 = vpop.f32.mrf.mxu0
    %v501 = vadd.f32 0.0, %v500
    %502 = vmatmul.f32.gmra.mxu0 %v461
    %v503 = vpop.f32.mrf.mxu0
    %v504 = vadd.f32 0.0, %v503
    %505 = vmatmul.f32.gmra.mxu0 %v463
    %v506 = vpop.f32.mrf.mxu0
    %v507 = vadd.f32 0.0, %v506
    %508 = vdwg.mxu0
    %v509 = vadd.f32 %v415, %v486
    %v510 = vadd.f32 %v416, %v489
    %v511 = vadd.f32 %v417, %v492
    %v512 = vadd.f32 %v418, %v495
    %v513 = vadd.f32 %v419, %v498
    %v514 = vadd.f32 %v420, %v501
    %v515 = vadd.f32 %v421, %v504
    %v516 = vadd.f32 %v422, %v507
    %v517 = vperm.slane %v45, 0
    %v518 = vadd.f32 %v509, %v517
    %v519 = vadd.f32 %v510, %v517
    %v520 = vadd.f32 %v511, %v517
    %v521 = vadd.f32 %v512, %v517
    %v522 = vadd.f32 %v513, %v517
    %v523 = vadd.f32 %v514, %v517
    %v524 = vadd.f32 %v515, %v517
    %v525 = vadd.f32 %v516, %v517
    %vm526 = vcmp.gt.f32.partialorder %v518, 0.0
    %vm527 = vcmp.gt.f32.partialorder %v519, 0.0
    %vm528 = vcmp.gt.f32.partialorder %v520, 0.0
    %vm529 = vcmp.gt.f32.partialorder %v521, 0.0
    %vm530 = vcmp.gt.f32.partialorder %v522, 0.0
    %vm531 = vcmp.gt.f32.partialorder %v523, 0.0
    %vm532 = vcmp.gt.f32.partialorder %v524, 0.0
    %vm533 = vcmp.gt.f32.partialorder %v525, 0.0
    %v534 = vmin.f32 %v518, 0.0
    %v535 = vmin.f32 %v519, 0.0
    %v536 = vmin.f32 %v520, 0.0
    %v537 = vmin.f32 %v521, 0.0
    %v538 = vmin.f32 %v522, 0.0
    %v539 = vmin.f32 %v523, 0.0
    %v540 = vmin.f32 %v524, 0.0
    %v541 = vmin.f32 %v525, 0.0
    %v542 = vmul.f32 %v534, 1.442695
    %v543 = vpow.pop %v542
    %v544 = vmul.f32 %v535, 1.442695
    %v545 = vpow.pop %v544
    %v546 = vmul.f32 %v536, 1.442695
    %v547 = vpow.pop %v546
    %v548 = vmul.f32 %v537, 1.442695
    %v549 = vpow.pop %v548
    %v550 = vmul.f32 %v538, 1.442695
    %v551 = vpow.pop %v550
    %v552 = vmul.f32 %v539, 1.442695
    %v553 = vpow.pop %v552
    %v554 = vmul.f32 %v540, 1.442695
    %v555 = vpow.pop %v554
    %v556 = vmul.f32 %v541, 1.442695
    %v557 = vpow.pop %v556
    %v558 = vsub.f32 %v543, 1.0
    %v559 = vsub.f32 %v545, 1.0
    %v560 = vsub.f32 %v547, 1.0
    %v561 = vsub.f32 %v549, 1.0
    %v562 = vsub.f32 %v551, 1.0
    %v563 = vsub.f32 %v553, 1.0
    %v564 = vsub.f32 %v555, 1.0
    %v565 = vsub.f32 %v557, 1.0
    %v566 = vsel %vm526, %v518, %v558
    %v567 = vsel %vm527, %v519, %v559
    %v568 = vsel %vm528, %v520, %v560
    %v569 = vsel %vm529, %v521, %v561
    %v570 = vsel %vm530, %v522, %v562
    %v571 = vsel %vm531, %v523, %v563
    %v572 = vsel %vm532, %v524, %v564
    %v573 = vsel %vm533, %v525, %v565
    %v574 = vld [vmem:[%s4] sm:$0xff]
    %v575 = vld [vmem:[%s4 + $0x8] sm:$0xff]
    %v576 = vld [vmem:[%s4 + $0x10] sm:$0xff]
    %v577 = vld [vmem:[%s4 + $0x18] sm:$0xff]
    %v578 = vld [vmem:[%s4 + $0x20] sm:$0xff]
    %v579 = vld [vmem:[%s4 + $0x28] sm:$0xff]
    %v580 = vld [vmem:[%s4 + $0x30] sm:$0xff]
    %v581 = vld [vmem:[%s4 + $0x38] sm:$0xff]
    %v582 = vld [vmem:[%s4 + $0x40] sm:$0xff]
    %v583 = vld [vmem:[%s4 + $0x48] sm:$0xff]
    %v584 = vld [vmem:[%s4 + $0x50] sm:$0xff]
    %v585 = vld [vmem:[%s4 + $0x58] sm:$0xff]
    %v586 = vld [vmem:[%s4 + $0x60] sm:$0x1]
    %s587 = scalar_lea.vmem %s4, 104
    %v588 = vld [vmem:[%s587] sm:$0xff]
    %v589 = vld [vmem:[%s587 + $0x8] sm:$0xff]
    %v590 = vld [vmem:[%s587 + $0x10] sm:$0xff]
    %v591 = vld [vmem:[%s587 + $0x18] sm:$0xff]
    %v592 = vld [vmem:[%s587 + $0x20] sm:$0xff]
    %v593 = vld [vmem:[%s587 + $0x28] sm:$0xff]
    %v594 = vld [vmem:[%s587 + $0x30] sm:$0xff]
    %v595 = vld [vmem:[%s587 + $0x38] sm:$0xff]
    %v596 = vld [vmem:[%s587 + $0x40] sm:$0xff]
    %v597 = vld [vmem:[%s587 + $0x48] sm:$0xff]
    %v598 = vld [vmem:[%s587 + $0x50] sm:$0xff]
    %v599 = vld [vmem:[%s587 + $0x58] sm:$0xff]
    %v600 = vld [vmem:[%s587 + $0x60] sm:$0x1]
    %v609 = vrot.slane %v566, 1
    %v610 = vrot.slane %v567, 1
    %v611 = vsel %vm97, %v609, %v610
    %v612 = vrot.slane %v568, 1
    %v613 = vsel %vm97, %v610, %v612
    %v614 = vrot.slane %v569, 1
    %v615 = vsel %vm97, %v612, %v614
    %v616 = vrot.slane %v570, 1
    %v617 = vsel %vm97, %v614, %v616
    %v618 = vrot.slane %v571, 1
    %v619 = vsel %vm97, %v616, %v618
    %v620 = vrot.slane %v572, 1
    %v621 = vsel %vm97, %v618, %v620
    %v622 = vrot.slane %v573, 1
    %v623 = vsel %vm97, %v620, %v622
    %vm624 = vcmask 793600
    %v625 = vsel %vm624, %v611, 0
    %v627 = vsel %vm624, %v613, 0
    %v629 = vsel %vm624, %v615, 0
    %v631 = vsel %vm624, %v617, 0
    %v633 = vsel %vm624, %v619, 0
    %v635 = vsel %vm624, %v621, 0
    %v637 = vsel %vm624, %v623, 0
    %v640 = vsel %vm130, %v600, 0
    %642 = vmatpush.msra.mxu0 0.0
    %643 = vmatpush.msra.mxu0 0.0
    %644 = vmatpush.msra.mxu0 0.0
    %645 = vmatpush.msra.mxu0 %v640
    %646 = vmatpush.msra.mxu0 %v599
    %647 = vmatpush.msra.mxu0 %v598
    %648 = vmatpush.msra.mxu0 %v597
    %649 = vmatpush.msra.mxu0 %v596
    %650 = vmatpush.msra.mxu0 %v595
    %651 = vmatpush.msra.mxu0 %v594
    %652 = vmatpush.msra.mxu0 %v593
    %653 = vmatpush.msra.mxu0 %v592
    %654 = vmatpush.msra.mxu0 %v591
    %655 = vmatpush.msra.mxu0 %v590
    %656 = vmatpush.msra.mxu0 %v589
    %657 = vmatpush.msra.mxu0 %v588
    %658 = vmatmul.f32.gmra.mxu0 %v625
    %v659 = vpop.f32.mrf.mxu0
    %v660 = vadd.f32 0.0, %v659
    %661 = vmatmul.f32.gmra.mxu0 %v627
    %v662 = vpop.f32.mrf.mxu0
    %v663 = vadd.f32 0.0, %v662
    %664 = vmatmul.f32.gmra.mxu0 %v629
    %v665 = vpop.f32.mrf.mxu0
    %v666 = vadd.f32 0.0, %v665
    %667 = vmatmul.f32.gmra.mxu0 %v631
    %v668 = vpop.f32.mrf.mxu0
    %v669 = vadd.f32 0.0, %v668
    %670 = vmatmul.f32.gmra.mxu0 %v633
    %v671 = vpop.f32.mrf.mxu0
    %v672 = vadd.f32 0.0, %v671
    %673 = vmatmul.f32.gmra.mxu0 %v635
    %v674 = vpop.f32.mrf.mxu0
    %v675 = vadd.f32 0.0, %v674
    %676 = vmatmul.f32.gmra.mxu0 %v637
    %v677 = vpop.f32.mrf.mxu0
    %v678 = vadd.f32 0.0, %v677
    %679 = vdwg.mxu0
    %v680 = vsel %vm624, %v566, 0
    %v682 = vsel %vm624, %v567, 0
    %v684 = vsel %vm624, %v568, 0
    %v686 = vsel %vm624, %v569, 0
    %v688 = vsel %vm624, %v570, 0
    %v690 = vsel %vm624, %v571, 0
    %v692 = vsel %vm624, %v572, 0
    %v695 = vsel %vm130, %v586, 0
    %697 = vmatpush.msra.mxu0 0.0
    %698 = vmatpush.msra.mxu0 0.0
    %699 = vmatpush.msra.mxu0 0.0
    %700 = vmatpush.msra.mxu0 %v695
    %701 = vmatpush.msra.mxu0 %v585
    %702 = vmatpush.msra.mxu0 %v584
    %703 = vmatpush.msra.mxu0 %v583
    %704 = vmatpush.msra.mxu0 %v582
    %705 = vmatpush.msra.mxu0 %v581
    %706 = vmatpush.msra.mxu0 %v580
    %707 = vmatpush.msra.mxu0 %v579
    %708 = vmatpush.msra.mxu0 %v578
    %709 = vmatpush.msra.mxu0 %v577
    %710 = vmatpush.msra.mxu0 %v576
    %711 = vmatpush.msra.mxu0 %v575
    %712 = vmatpush.msra.mxu0 %v574
    %713 = vmatmul.f32.gmra.mxu0 %v680
    %v714 = vpop.f32.mrf.mxu0
    %v715 = vadd.f32 %v660, %v714
    %716 = vmatmul.f32.gmra.mxu0 %v682
    %v717 = vpop.f32.mrf.mxu0
    %v718 = vadd.f32 %v663, %v717
    %719 = vmatmul.f32.gmra.mxu0 %v684
    %v720 = vpop.f32.mrf.mxu0
    %v721 = vadd.f32 %v666, %v720
    %722 = vmatmul.f32.gmra.mxu0 %v686
    %v723 = vpop.f32.mrf.mxu0
    %v724 = vadd.f32 %v669, %v723
    %725 = vmatmul.f32.gmra.mxu0 %v688
    %v726 = vpop.f32.mrf.mxu0
    %v727 = vadd.f32 %v672, %v726
    %728 = vmatmul.f32.gmra.mxu0 %v690
    %v729 = vpop.f32.mrf.mxu0
    %v730 = vadd.f32 %v675, %v729
    %731 = vmatmul.f32.gmra.mxu0 %v692
    %v732 = vpop.f32.mrf.mxu0
    %v733 = vadd.f32 %v678, %v732
    %734 = vdwg.mxu0
    %s735 = scalar_lea.vmem %s4, 208
    %v736 = vld [vmem:[%s735] sm:$0xff]
    %v737 = vld [vmem:[%s735 + $0x8] sm:$0xff]
    %v738 = vld [vmem:[%s735 + $0x10] sm:$0xff]
    %v739 = vld [vmem:[%s735 + $0x18] sm:$0xff]
    %v740 = vld [vmem:[%s735 + $0x20] sm:$0xff]
    %v741 = vld [vmem:[%s735 + $0x28] sm:$0xff]
    %v742 = vld [vmem:[%s735 + $0x30] sm:$0xff]
    %v743 = vld [vmem:[%s735 + $0x38] sm:$0xff]
    %v744 = vld [vmem:[%s735 + $0x40] sm:$0xff]
    %v745 = vld [vmem:[%s735 + $0x48] sm:$0xff]
    %v746 = vld [vmem:[%s735 + $0x50] sm:$0xff]
    %v747 = vld [vmem:[%s735 + $0x58] sm:$0xff]
    %v748 = vld [vmem:[%s735 + $0x60] sm:$0x1]
    %v749 = vrot.slane %v566, 2
    %v750 = vrot.slane %v567, 2
    %v751 = vsel %vm245, %v749, %v750
    %v752 = vrot.slane %v568, 2
    %v753 = vsel %vm245, %v750, %v752
    %v754 = vrot.slane %v569, 2
    %v755 = vsel %vm245, %v752, %v754
    %v756 = vrot.slane %v570, 2
    %v757 = vsel %vm245, %v754, %v756
    %v758 = vrot.slane %v571, 2
    %v759 = vsel %vm245, %v756, %v758
    %v760 = vrot.slane %v572, 2
    %v761 = vsel %vm245, %v758, %v760
    %v762 = vrot.slane %v573, 2
    %v763 = vsel %vm245, %v760, %v762
    %v764 = vsel %vm624, %v751, 0
    %v766 = vsel %vm624, %v753, 0
    %v768 = vsel %vm624, %v755, 0
    %v770 = vsel %vm624, %v757, 0
    %v772 = vsel %vm624, %v759, 0
    %v774 = vsel %vm624, %v761, 0
    %v776 = vsel %vm624, %v763, 0
    %v779 = vsel %vm130, %v748, 0
    %781 = vmatpush.msra.mxu0 0.0
    %782 = vmatpush.msra.mxu0 0.0
    %783 = vmatpush.msra.mxu0 0.0
    %784 = vmatpush.msra.mxu0 %v779
    %785 = vmatpush.msra.mxu0 %v747
    %786 = vmatpush.msra.mxu0 %v746
    %787 = vmatpush.msra.mxu0 %v745
    %788 = vmatpush.msra.mxu0 %v744
    %789 = vmatpush.msra.mxu0 %v743
    %790 = vmatpush.msra.mxu0 %v742
    %791 = vmatpush.msra.mxu0 %v741
    %792 = vmatpush.msra.mxu0 %v740
    %793 = vmatpush.msra.mxu0 %v739
    %794 = vmatpush.msra.mxu0 %v738
    %795 = vmatpush.msra.mxu0 %v737
    %796 = vmatpush.msra.mxu0 %v736
    %797 = vmatmul.f32.gmra.mxu0 %v764
    %v798 = vpop.f32.mrf.mxu0
    %v799 = vadd.f32 0.0, %v798
    %800 = vmatmul.f32.gmra.mxu0 %v766
    %v801 = vpop.f32.mrf.mxu0
    %v802 = vadd.f32 0.0, %v801
    %803 = vmatmul.f32.gmra.mxu0 %v768
    %v804 = vpop.f32.mrf.mxu0
    %v805 = vadd.f32 0.0, %v804
    %806 = vmatmul.f32.gmra.mxu0 %v770
    %v807 = vpop.f32.mrf.mxu0
    %v808 = vadd.f32 0.0, %v807
    %809 = vmatmul.f32.gmra.mxu0 %v772
    %v810 = vpop.f32.mrf.mxu0
    %v811 = vadd.f32 0.0, %v810
    %812 = vmatmul.f32.gmra.mxu0 %v774
    %v813 = vpop.f32.mrf.mxu0
    %v814 = vadd.f32 0.0, %v813
    %815 = vmatmul.f32.gmra.mxu0 %v776
    %v816 = vpop.f32.mrf.mxu0
    %v817 = vadd.f32 0.0, %v816
    %818 = vdwg.mxu0
    %v819 = vadd.f32 %v715, %v799
    %v820 = vadd.f32 %v718, %v802
    %v821 = vadd.f32 %v721, %v805
    %v822 = vadd.f32 %v724, %v808
    %v823 = vadd.f32 %v727, %v811
    %v824 = vadd.f32 %v730, %v814
    %v825 = vadd.f32 %v733, %v817
    %s826 = scalar_lea.vmem %s4, 312
    %v827 = vld [vmem:[%s826] sm:$0xff]
    %v828 = vld [vmem:[%s826 + $0x8] sm:$0xff]
    %v829 = vld [vmem:[%s826 + $0x10] sm:$0xff]
    %v830 = vld [vmem:[%s826 + $0x18] sm:$0xff]
    %v831 = vld [vmem:[%s826 + $0x20] sm:$0xff]
    %v832 = vld [vmem:[%s826 + $0x28] sm:$0xff]
    %v833 = vld [vmem:[%s826 + $0x30] sm:$0xff]
    %v834 = vld [vmem:[%s826 + $0x38] sm:$0xff]
    %v835 = vld [vmem:[%s826 + $0x40] sm:$0xff]
    %v836 = vld [vmem:[%s826 + $0x48] sm:$0xff]
    %v837 = vld [vmem:[%s826 + $0x50] sm:$0xff]
    %v838 = vld [vmem:[%s826 + $0x58] sm:$0xff]
    %v839 = vld [vmem:[%s826 + $0x60] sm:$0x1]
    %v840 = vrot.slane %v566, 3
    %v841 = vrot.slane %v567, 3
    %v842 = vsel %vm339, %v840, %v841
    %v843 = vrot.slane %v568, 3
    %v844 = vsel %vm339, %v841, %v843
    %v845 = vrot.slane %v569, 3
    %v846 = vsel %vm339, %v843, %v845
    %v847 = vrot.slane %v570, 3
    %v848 = vsel %vm339, %v845, %v847
    %v849 = vrot.slane %v571, 3
    %v850 = vsel %vm339, %v847, %v849
    %v851 = vrot.slane %v572, 3
    %v852 = vsel %vm339, %v849, %v851
    %v853 = vrot.slane %v573, 3
    %v854 = vsel %vm339, %v851, %v853
    %v855 = vsel %vm624, %v842, 0
    %v857 = vsel %vm624, %v844, 0
    %v859 = vsel %vm624, %v846, 0
    %v861 = vsel %vm624, %v848, 0
    %v863 = vsel %vm624, %v850, 0
    %v865 = vsel %vm624, %v852, 0
    %v867 = vsel %vm624, %v854, 0
    %v870 = vsel %vm130, %v839, 0
    %872 = vmatpush.msra.mxu0 0.0
    %873 = vmatpush.msra.mxu0 0.0
    %874 = vmatpush.msra.mxu0 0.0
    %875 = vmatpush.msra.mxu0 %v870
    %876 = vmatpush.msra.mxu0 %v838
    %877 = vmatpush.msra.mxu0 %v837
    %878 = vmatpush.msra.mxu0 %v836
    %879 = vmatpush.msra.mxu0 %v835
    %880 = vmatpush.msra.mxu0 %v834
    %881 = vmatpush.msra.mxu0 %v833
    %882 = vmatpush.msra.mxu0 %v832
    %883 = vmatpush.msra.mxu0 %v831
    %884 = vmatpush.msra.mxu0 %v830
    %885 = vmatpush.msra.mxu0 %v829
    %886 = vmatpush.msra.mxu0 %v828
    %887 = vmatpush.msra.mxu0 %v827
    %888 = vmatmul.f32.gmra.mxu0 %v855
    %v889 = vpop.f32.mrf.mxu0
    %v890 = vadd.f32 0.0, %v889
    %891 = vmatmul.f32.gmra.mxu0 %v857
    %v892 = vpop.f32.mrf.mxu0
    %v893 = vadd.f32 0.0, %v892
    %894 = vmatmul.f32.gmra.mxu0 %v859
    %v895 = vpop.f32.mrf.mxu0
    %v896 = vadd.f32 0.0, %v895
    %897 = vmatmul.f32.gmra.mxu0 %v861
    %v898 = vpop.f32.mrf.mxu0
    %v899 = vadd.f32 0.0, %v898
    %900 = vmatmul.f32.gmra.mxu0 %v863
    %v901 = vpop.f32.mrf.mxu0
    %v902 = vadd.f32 0.0, %v901
    %903 = vmatmul.f32.gmra.mxu0 %v865
    %v904 = vpop.f32.mrf.mxu0
    %v905 = vadd.f32 0.0, %v904
    %906 = vmatmul.f32.gmra.mxu0 %v867
    %v907 = vpop.f32.mrf.mxu0
    %v908 = vadd.f32 0.0, %v907
    %909 = vdwg.mxu0
    %v910 = vadd.f32 %v819, %v890
    %v911 = vadd.f32 %v820, %v893
    %v912 = vadd.f32 %v821, %v896
    %v913 = vadd.f32 %v822, %v899
    %v914 = vadd.f32 %v823, %v902
    %v915 = vadd.f32 %v824, %v905
    %v916 = vadd.f32 %v825, %v908
    %s917 = scalar_lea.vmem %s4, 416
    %v918 = vld [vmem:[%s917] sm:$0xff]
    %v919 = vld [vmem:[%s917 + $0x8] sm:$0xff]
    %v920 = vld [vmem:[%s917 + $0x10] sm:$0xff]
    %v921 = vld [vmem:[%s917 + $0x18] sm:$0xff]
    %v922 = vld [vmem:[%s917 + $0x20] sm:$0xff]
    %v923 = vld [vmem:[%s917 + $0x28] sm:$0xff]
    %v924 = vld [vmem:[%s917 + $0x30] sm:$0xff]
    %v925 = vld [vmem:[%s917 + $0x38] sm:$0xff]
    %v926 = vld [vmem:[%s917 + $0x40] sm:$0xff]
    %v927 = vld [vmem:[%s917 + $0x48] sm:$0xff]
    %v928 = vld [vmem:[%s917 + $0x50] sm:$0xff]
    %v929 = vld [vmem:[%s917 + $0x58] sm:$0xff]
    %v930 = vld [vmem:[%s917 + $0x60] sm:$0x1]
    %v931 = vrot.slane %v566, 4
    %v932 = vrot.slane %v567, 4
    %v933 = vsel %vm433, %v931, %v932
    %v934 = vrot.slane %v568, 4
    %v935 = vsel %vm433, %v932, %v934
    %v936 = vrot.slane %v569, 4
    %v937 = vsel %vm433, %v934, %v936
    %v938 = vrot.slane %v570, 4
    %v939 = vsel %vm433, %v936, %v938
    %v940 = vrot.slane %v571, 4
    %v941 = vsel %vm433, %v938, %v940
    %v942 = vrot.slane %v572, 4
    %v943 = vsel %vm433, %v940, %v942
    %v944 = vrot.slane %v573, 4
    %v945 = vsel %vm433, %v942, %v944
    %v946 = vsel %vm624, %v933, 0
    %v948 = vsel %vm624, %v935, 0
    %v950 = vsel %vm624, %v937, 0
    %v952 = vsel %vm624, %v939, 0
    %v954 = vsel %vm624, %v941, 0
    %v956 = vsel %vm624, %v943, 0
    %v958 = vsel %vm624, %v945, 0
    %v961 = vsel %vm130, %v930, 0
    %963 = vmatpush.msra.mxu0 0.0
    %964 = vmatpush.msra.mxu0 0.0
    %965 = vmatpush.msra.mxu0 0.0
    %966 = vmatpush.msra.mxu0 %v961
    %967 = vmatpush.msra.mxu0 %v929
    %968 = vmatpush.msra.mxu0 %v928
    %969 = vmatpush.msra.mxu0 %v927
    %970 = vmatpush.msra.mxu0 %v926
    %971 = vmatpush.msra.mxu0 %v925
    %972 = vmatpush.msra.mxu0 %v924
    %973 = vmatpush.msra.mxu0 %v923
    %974 = vmatpush.msra.mxu0 %v922
    %975 = vmatpush.msra.mxu0 %v921
    %976 = vmatpush.msra.mxu0 %v920
    %977 = vmatpush.msra.mxu0 %v919
    %978 = vmatpush.msra.mxu0 %v918
    %979 = vmatmul.f32.gmra.mxu0 %v946
    %v980 = vpop.f32.mrf.mxu0
    %v981 = vadd.f32 0.0, %v980
    %982 = vmatmul.f32.gmra.mxu0 %v948
    %v983 = vpop.f32.mrf.mxu0
    %v984 = vadd.f32 0.0, %v983
    %985 = vmatmul.f32.gmra.mxu0 %v950
    %v986 = vpop.f32.mrf.mxu0
    %v987 = vadd.f32 0.0, %v986
    %988 = vmatmul.f32.gmra.mxu0 %v952
    %v989 = vpop.f32.mrf.mxu0
    %v990 = vadd.f32 0.0, %v989
    %991 = vmatmul.f32.gmra.mxu0 %v954
    %v992 = vpop.f32.mrf.mxu0
    %v993 = vadd.f32 0.0, %v992
    %994 = vmatmul.f32.gmra.mxu0 %v956
    %v995 = vpop.f32.mrf.mxu0
    %v996 = vadd.f32 0.0, %v995
    %997 = vmatmul.f32.gmra.mxu0 %v958
    %v998 = vpop.f32.mrf.mxu0
    %v999 = vadd.f32 0.0, %v998
    %1000 = vdwg.mxu0
    %v1001 = vadd.f32 %v910, %v981
    %v1002 = vadd.f32 %v911, %v984
    %v1003 = vadd.f32 %v912, %v987
    %v1004 = vadd.f32 %v913, %v990
    %v1005 = vadd.f32 %v914, %v993
    %v1006 = vadd.f32 %v915, %v996
    %v1007 = vadd.f32 %v916, %v999
    %v1008 = vperm.slane %v45, 1
    %v1009 = vadd.f32 %v1001, %v1008
    %v1010 = vadd.f32 %v1002, %v1008
    %v1011 = vadd.f32 %v1003, %v1008
    %v1012 = vadd.f32 %v1004, %v1008
    %v1013 = vadd.f32 %v1005, %v1008
    %v1014 = vadd.f32 %v1006, %v1008
    %v1015 = vadd.f32 %v1007, %v1008
    %vm1016 = vcmp.gt.f32.partialorder %v1009, 0.0
    %vm1017 = vcmp.gt.f32.partialorder %v1010, 0.0
    %vm1018 = vcmp.gt.f32.partialorder %v1011, 0.0
    %vm1019 = vcmp.gt.f32.partialorder %v1012, 0.0
    %vm1020 = vcmp.gt.f32.partialorder %v1013, 0.0
    %vm1021 = vcmp.gt.f32.partialorder %v1014, 0.0
    %vm1022 = vcmp.gt.f32.partialorder %v1015, 0.0
    %v1023 = vmin.f32 %v1009, 0.0
    %v1024 = vmin.f32 %v1010, 0.0
    %v1025 = vmin.f32 %v1011, 0.0
    %v1026 = vmin.f32 %v1012, 0.0
    %v1027 = vmin.f32 %v1013, 0.0
    %v1028 = vmin.f32 %v1014, 0.0
    %v1029 = vmin.f32 %v1015, 0.0
    %v1030 = vmul.f32 %v1023, 1.442695
    %v1031 = vpow.pop %v1030
    %v1032 = vmul.f32 %v1024, 1.442695
    %v1033 = vpow.pop %v1032
    %v1034 = vmul.f32 %v1025, 1.442695
    %v1035 = vpow.pop %v1034
    %v1036 = vmul.f32 %v1026, 1.442695
    %v1037 = vpow.pop %v1036
    %v1038 = vmul.f32 %v1027, 1.442695
    %v1039 = vpow.pop %v1038
    %v1040 = vmul.f32 %v1028, 1.442695
    %v1041 = vpow.pop %v1040
    %v1042 = vmul.f32 %v1029, 1.442695
    %v1043 = vpow.pop %v1042
    %v1044 = vsub.f32 %v1031, 1.0
    %v1045 = vsub.f32 %v1033, 1.0
    %v1046 = vsub.f32 %v1035, 1.0
    %v1047 = vsub.f32 %v1037, 1.0
    %v1048 = vsub.f32 %v1039, 1.0
    %v1049 = vsub.f32 %v1041, 1.0
    %v1050 = vsub.f32 %v1043, 1.0
    %v1051 = vsel %vm1016, %v1009, %v1044
    %v1052 = vsel %vm1017, %v1010, %v1045
    %v1053 = vsel %vm1018, %v1011, %v1046
    %v1054 = vsel %vm1019, %v1012, %v1047
    %v1055 = vsel %vm1020, %v1013, %v1048
    %v1056 = vsel %vm1021, %v1014, %v1049
    %v1057 = vsel %vm1022, %v1015, %v1050
    %1058 = vrot.lane.b32.xlu0 %v62, 95
    %v1059 = vpop.permute.xlu0 %1058
    %1060 = vrot.lane.b32.xlu0 %v63, 95
    %v1061 = vpop.permute.xlu0 %1060
    %1062 = vrot.lane.b32.xlu0 %v64, 95
    %v1063 = vpop.permute.xlu0 %1062
    %1064 = vrot.lane.b32.xlu0 %v65, 95
    %v1065 = vpop.permute.xlu0 %1064
    %1066 = vrot.lane.b32.xlu0 %v66, 95
    %v1067 = vpop.permute.xlu0 %1066
    %1068 = vrot.lane.b32.xlu0 %v67, 95
    %v1069 = vpop.permute.xlu0 %1068
    %1070 = vrot.lane.b32.xlu0 %v68, 95
    %v1071 = vpop.permute.xlu0 %1070
    %vm1079 = vcmask 261120
    %v1080 = vsel %vm1079, %v1051, %v1059
    %v1081 = vsel %vm1079, %v1052, %v1061
    %v1082 = vsel %vm1079, %v1053, %v1063
    %v1083 = vsel %vm1079, %v1054, %v1065
    %v1084 = vsel %vm1079, %v1055, %v1067
    %v1085 = vsel %vm1079, %v1056, %v1069
    %v1086 = vsel %vm1079, %v1057, %v1071
    %v1087 = vld [vmem:[#allocation5] sm:$0xff]
    %v1088 = vld [vmem:[#allocation5 + $0x8] sm:$0xff]
    %v1089 = vld [vmem:[#allocation5 + $0x10] sm:$0xff]
    %v1090 = vld [vmem:[#allocation5 + $0x18] sm:$0xff]
    %v1091 = vld [vmem:[#allocation5 + $0x20] sm:$0x1]
    %s1092 = scalar_lea.vmem [#allocation5], 40
    %v1093 = vld [vmem:[%s1092] sm:$0xff]
    %v1094 = vld [vmem:[%s1092 + $0x8] sm:$0xff]
    %v1095 = vld [vmem:[%s1092 + $0x10] sm:$0xff]
    %v1096 = vld [vmem:[%s1092 + $0x18] sm:$0xff]
    %v1097 = vld [vmem:[%s1092 + $0x20] sm:$0x1]
    %v1105 = vrot.slane %v1080, 1
    %v1106 = vrot.slane %v1081, 1
    %v1107 = vsel %vm97, %v1105, %v1106
    %v1108 = vrot.slane %v1082, 1
    %v1109 = vsel %vm97, %v1106, %v1108
    %v1110 = vrot.slane %v1083, 1
    %v1111 = vsel %vm97, %v1108, %v1110
    %v1112 = vrot.slane %v1084, 1
    %v1113 = vsel %vm97, %v1110, %v1112
    %v1114 = vrot.slane %v1085, 1
    %v1115 = vsel %vm97, %v1112, %v1114
    %v1116 = vrot.slane %v1086, 1
    %v1117 = vsel %vm97, %v1114, %v1116
    %vm1118 = vcmask 269312
    %v1119 = vsel %vm1118, %v1107, 0
    %v1121 = vsel %vm1118, %v1109, 0
    %v1123 = vsel %vm1118, %v1111, 0
    %v1125 = vsel %vm1118, %v1113, 0
    %v1127 = vsel %vm1118, %v1115, 0
    %v1129 = vsel %vm1118, %v1117, 0
    %v1131 = vsel %vm1118, %v1116, 0
    %v1134 = vsel %vm130, %v1097, 0
    %1136 = vmatpush.msra.mxu0 0.0
    %1137 = vmatpush.msra.mxu0 0.0
    %1138 = vmatpush.msra.mxu0 0.0
    %1139 = vmatpush.msra.mxu0 0.0
    %1140 = vmatpush.msra.mxu0 0.0
    %1141 = vmatpush.msra.mxu0 0.0
    %1142 = vmatpush.msra.mxu0 0.0
    %1143 = vmatpush.msra.mxu0 0.0
    %1144 = vmatpush.msra.mxu0 0.0
    %1145 = vmatpush.msra.mxu0 0.0
    %1146 = vmatpush.msra.mxu0 0.0
    %1147 = vmatpush.msra.mxu0 %v1134
    %1148 = vmatpush.msra.mxu0 %v1096
    %1149 = vmatpush.msra.mxu0 %v1095
    %1150 = vmatpush.msra.mxu0 %v1094
    %1151 = vmatpush.msra.mxu0 %v1093
    %1152 = vmatmul.f32.gmra.mxu0 %v1119
    %v1153 = vpop.f32.mrf.mxu0
    %v1154 = vadd.f32 0.0, %v1153
    %1155 = vmatmul.f32.gmra.mxu0 %v1121
    %v1156 = vpop.f32.mrf.mxu0
    %v1157 = vadd.f32 0.0, %v1156
    %1158 = vmatmul.f32.gmra.mxu0 %v1123
    %v1159 = vpop.f32.mrf.mxu0
    %v1160 = vadd.f32 0.0, %v1159
    %1161 = vmatmul.f32.gmra.mxu0 %v1125
    %v1162 = vpop.f32.mrf.mxu0
    %v1163 = vadd.f32 0.0, %v1162
    %1164 = vmatmul.f32.gmra.mxu0 %v1127
    %v1165 = vpop.f32.mrf.mxu0
    %v1166 = vadd.f32 0.0, %v1165
    %1167 = vmatmul.f32.gmra.mxu0 %v1129
    %v1168 = vpop.f32.mrf.mxu0
    %v1169 = vadd.f32 0.0, %v1168
    %1170 = vmatmul.f32.gmra.mxu0 %v1131
    %v1171 = vpop.f32.mrf.mxu0
    %v1172 = vadd.f32 0.0, %v1171
    %1173 = vdwg.mxu0
    %v1174 = vsel %vm1118, %v1080, 0
    %v1176 = vsel %vm1118, %v1081, 0
    %v1178 = vsel %vm1118, %v1082, 0
    %v1180 = vsel %vm1118, %v1083, 0
    %v1182 = vsel %vm1118, %v1084, 0
    %v1184 = vsel %vm1118, %v1085, 0
    %v1186 = vsel %vm1118, %v1086, 0
    %v1189 = vsel %vm130, %v1091, 0
    %1191 = vmatpush.msra.mxu0 0.0
    %1192 = vmatpush.msra.mxu0 0.0
    %1193 = vmatpush.msra.mxu0 0.0
    %1194 = vmatpush.msra.mxu0 0.0
    %1195 = vmatpush.msra.mxu0 0.0
    %1196 = vmatpush.msra.mxu0 0.0
    %1197 = vmatpush.msra.mxu0 0.0
    %1198 = vmatpush.msra.mxu0 0.0
    %1199 = vmatpush.msra.mxu0 0.0
    %1200 = vmatpush.msra.mxu0 0.0
    %1201 = vmatpush.msra.mxu0 0.0
    %1202 = vmatpush.msra.mxu0 %v1189
    %1203 = vmatpush.msra.mxu0 %v1090
    %1204 = vmatpush.msra.mxu0 %v1089
    %1205 = vmatpush.msra.mxu0 %v1088
    %1206 = vmatpush.msra.mxu0 %v1087
    %1207 = vmatmul.f32.gmra.mxu0 %v1174
    %v1208 = vpop.f32.mrf.mxu0
    %v1209 = vadd.f32 %v1154, %v1208
    %1210 = vmatmul.f32.gmra.mxu0 %v1176
    %v1211 = vpop.f32.mrf.mxu0
    %v1212 = vadd.f32 %v1157, %v1211
    %1213 = vmatmul.f32.gmra.mxu0 %v1178
    %v1214 = vpop.f32.mrf.mxu0
    %v1215 = vadd.f32 %v1160, %v1214
    %1216 = vmatmul.f32.gmra.mxu0 %v1180
    %v1217 = vpop.f32.mrf.mxu0
    %v1218 = vadd.f32 %v1163, %v1217
    %1219 = vmatmul.f32.gmra.mxu0 %v1182
    %v1220 = vpop.f32.mrf.mxu0
    %v1221 = vadd.f32 %v1166, %v1220
    %1222 = vmatmul.f32.gmra.mxu0 %v1184
    %v1223 = vpop.f32.mrf.mxu0
    %v1224 = vadd.f32 %v1169, %v1223
    %1225 = vmatmul.f32.gmra.mxu0 %v1186
    %v1226 = vpop.f32.mrf.mxu0
    %v1227 = vadd.f32 %v1172, %v1226
    %1228 = vdwg.mxu0
    %s1229 = scalar_lea.vmem [#allocation5], 80
    %v1230 = vld [vmem:[%s1229] sm:$0xff]
    %v1231 = vld [vmem:[%s1229 + $0x8] sm:$0xff]
    %v1232 = vld [vmem:[%s1229 + $0x10] sm:$0xff]
    %v1233 = vld [vmem:[%s1229 + $0x18] sm:$0xff]
    %v1234 = vld [vmem:[%s1229 + $0x20] sm:$0x1]
    %v1235 = vrot.slane %v1080, 2
    %v1236 = vrot.slane %v1081, 2
    %v1237 = vsel %vm245, %v1235, %v1236
    %v1238 = vrot.slane %v1082, 2
    %v1239 = vsel %vm245, %v1236, %v1238
    %v1240 = vrot.slane %v1083, 2
    %v1241 = vsel %vm245, %v1238, %v1240
    %v1242 = vrot.slane %v1084, 2
    %v1243 = vsel %vm245, %v1240, %v1242
    %v1244 = vrot.slane %v1085, 2
    %v1245 = vsel %vm245, %v1242, %v1244
    %v1246 = vrot.slane %v1086, 2
    %v1247 = vsel %vm245, %v1244, %v1246
    %v1248 = vsel %vm1118, %v1237, 0
    %v1250 = vsel %vm1118, %v1239, 0
    %v1252 = vsel %vm1118, %v1241, 0
    %v1254 = vsel %vm1118, %v1243, 0
    %v1256 = vsel %vm1118, %v1245, 0
    %v1258 = vsel %vm1118, %v1247, 0
    %v1260 = vsel %vm1118, %v1246, 0
    %v1263 = vsel %vm130, %v1234, 0
    %1265 = vmatpush.msra.mxu0 0.0
    %1266 = vmatpush.msra.mxu0 0.0
    %1267 = vmatpush.msra.mxu0 0.0
    %1268 = vmatpush.msra.mxu0 0.0
    %1269 = vmatpush.msra.mxu0 0.0
    %1270 = vmatpush.msra.mxu0 0.0
    %1271 = vmatpush.msra.mxu0 0.0
    %1272 = vmatpush.msra.mxu0 0.0
    %1273 = vmatpush.msra.mxu0 0.0
    %1274 = vmatpush.msra.mxu0 0.0
    %1275 = vmatpush.msra.mxu0 0.0
    %1276 = vmatpush.msra.mxu0 %v1263
    %1277 = vmatpush.msra.mxu0 %v1233
    %1278 = vmatpush.msra.mxu0 %v1232
    %1279 = vmatpush.msra.mxu0 %v1231
    %1280 = vmatpush.msra.mxu0 %v1230
    %1281 = vmatmul.f32.gmra.mxu0 %v1248
    %v1282 = vpop.f32.mrf.mxu0
    %v1283 = vadd.f32 0.0, %v1282
    %1284 = vmatmul.f32.gmra.mxu0 %v1250
    %v1285 = vpop.f32.mrf.mxu0
    %v1286 = vadd.f32 0.0, %v1285
    %1287 = vmatmul.f32.gmra.mxu0 %v1252
    %v1288 = vpop.f32.mrf.mxu0
    %v1289 = vadd.f32 0.0, %v1288
    %1290 = vmatmul.f32.gmra.mxu0 %v1254
    %v1291 = vpop.f32.mrf.mxu0
    %v1292 = vadd.f32 0.0, %v1291
    %1293 = vmatmul.f32.gmra.mxu0 %v1256
    %v1294 = vpop.f32.mrf.mxu0
    %v1295 = vadd.f32 0.0, %v1294
    %1296 = vmatmul.f32.gmra.mxu0 %v1258
    %v1297 = vpop.f32.mrf.mxu0
    %v1298 = vadd.f32 0.0, %v1297
    %1299 = vmatmul.f32.gmra.mxu0 %v1260
    %v1300 = vpop.f32.mrf.mxu0
    %v1301 = vadd.f32 0.0, %v1300
    %1302 = vdwg.mxu0
    %v1303 = vadd.f32 %v1209, %v1283
    %v1304 = vadd.f32 %v1212, %v1286
    %v1305 = vadd.f32 %v1215, %v1289
    %v1306 = vadd.f32 %v1218, %v1292
    %v1307 = vadd.f32 %v1221, %v1295
    %v1308 = vadd.f32 %v1224, %v1298
    %v1309 = vadd.f32 %v1227, %v1301
    %s1310 = scalar_lea.vmem [#allocation5], 120
    %v1311 = vld [vmem:[%s1310] sm:$0xff]
    %v1312 = vld [vmem:[%s1310 + $0x8] sm:$0xff]
    %v1313 = vld [vmem:[%s1310 + $0x10] sm:$0xff]
    %v1314 = vld [vmem:[%s1310 + $0x18] sm:$0xff]
    %v1315 = vld [vmem:[%s1310 + $0x20] sm:$0x1]
    %v1316 = vrot.slane %v1080, 3
    %v1317 = vrot.slane %v1081, 3
    %v1318 = vsel %vm339, %v1316, %v1317
    %v1319 = vrot.slane %v1082, 3
    %v1320 = vsel %vm339, %v1317, %v1319
    %v1321 = vrot.slane %v1083, 3
    %v1322 = vsel %vm339, %v1319, %v1321
    %v1323 = vrot.slane %v1084, 3
    %v1324 = vsel %vm339, %v1321, %v1323
    %v1325 = vrot.slane %v1085, 3
    %v1326 = vsel %vm339, %v1323, %v1325
    %v1327 = vrot.slane %v1086, 3
    %v1328 = vsel %vm339, %v1325, %v1327
    %v1329 = vsel %vm1118, %v1318, 0
    %v1331 = vsel %vm1118, %v1320, 0
    %v1333 = vsel %vm1118, %v1322, 0
    %v1335 = vsel %vm1118, %v1324, 0
    %v1337 = vsel %vm1118, %v1326, 0
    %v1339 = vsel %vm1118, %v1328, 0
    %v1341 = vsel %vm1118, %v1327, 0
    %v1344 = vsel %vm130, %v1315, 0
    %1346 = vmatpush.msra.mxu0 0.0
    %1347 = vmatpush.msra.mxu0 0.0
    %1348 = vmatpush.msra.mxu0 0.0
    %1349 = vmatpush.msra.mxu0 0.0
    %1350 = vmatpush.msra.mxu0 0.0
    %1351 = vmatpush.msra.mxu0 0.0
    %1352 = vmatpush.msra.mxu0 0.0
    %1353 = vmatpush.msra.mxu0 0.0
    %1354 = vmatpush.msra.mxu0 0.0
    %1355 = vmatpush.msra.mxu0 0.0
    %1356 = vmatpush.msra.mxu0 0.0
    %1357 = vmatpush.msra.mxu0 %v1344
    %1358 = vmatpush.msra.mxu0 %v1314
    %1359 = vmatpush.msra.mxu0 %v1313
    %1360 = vmatpush.msra.mxu0 %v1312
    %1361 = vmatpush.msra.mxu0 %v1311
    %1362 = vmatmul.f32.gmra.mxu0 %v1329
    %v1363 = vpop.f32.mrf.mxu0
    %v1364 = vadd.f32 0.0, %v1363
    %1365 = vmatmul.f32.gmra.mxu0 %v1331
    %v1366 = vpop.f32.mrf.mxu0
    %v1367 = vadd.f32 0.0, %v1366
    %1368 = vmatmul.f32.gmra.mxu0 %v1333
    %v1369 = vpop.f32.mrf.mxu0
    %v1370 = vadd.f32 0.0, %v1369
    %1371 = vmatmul.f32.gmra.mxu0 %v1335
    %v1372 = vpop.f32.mrf.mxu0
    %v1373 = vadd.f32 0.0, %v1372
    %1374 = vmatmul.f32.gmra.mxu0 %v1337
    %v1375 = vpop.f32.mrf.mxu0
    %v1376 = vadd.f32 0.0, %v1375
    %1377 = vmatmul.f32.gmra.mxu0 %v1339
    %v1378 = vpop.f32.mrf.mxu0
    %v1379 = vadd.f32 0.0, %v1378
    %1380 = vmatmul.f32.gmra.mxu0 %v1341
    %v1381 = vpop.f32.mrf.mxu0
    %v1382 = vadd.f32 0.0, %v1381
    %1383 = vdwg.mxu0
    %v1384 = vadd.f32 %v1303, %v1364
    %v1385 = vadd.f32 %v1304, %v1367
    %v1386 = vadd.f32 %v1305, %v1370
    %v1387 = vadd.f32 %v1306, %v1373
    %v1388 = vadd.f32 %v1307, %v1376
    %v1389 = vadd.f32 %v1308, %v1379
    %v1390 = vadd.f32 %v1309, %v1382
    %s1391 = scalar_lea.vmem [#allocation5], 160
    %v1392 = vld [vmem:[%s1391] sm:$0xff]
    %v1393 = vld [vmem:[%s1391 + $0x8] sm:$0xff]
    %v1394 = vld [vmem:[%s1391 + $0x10] sm:$0xff]
    %v1395 = vld [vmem:[%s1391 + $0x18] sm:$0xff]
    %v1396 = vld [vmem:[%s1391 + $0x20] sm:$0x1]
    %v1397 = vrot.slane %v1080, 4
    %v1398 = vrot.slane %v1081, 4
    %v1399 = vsel %vm433, %v1397, %v1398
    %v1400 = vrot.slane %v1082, 4
    %v1401 = vsel %vm433, %v1398, %v1400
    %v1402 = vrot.slane %v1083, 4
    %v1403 = vsel %vm433, %v1400, %v1402
    %v1404 = vrot.slane %v1084, 4
    %v1405 = vsel %vm433, %v1402, %v1404
    %v1406 = vrot.slane %v1085, 4
    %v1407 = vsel %vm433, %v1404, %v1406
    %v1408 = vrot.slane %v1086, 4
    %v1409 = vsel %vm433, %v1406, %v1408
    %v1410 = vsel %vm1118, %v1399, 0
    %v1412 = vsel %vm1118, %v1401, 0
    %v1414 = vsel %vm1118, %v1403, 0
    %v1416 = vsel %vm1118, %v1405, 0
    %v1418 = vsel %vm1118, %v1407, 0
    %v1420 = vsel %vm1118, %v1409, 0
    %v1422 = vsel %vm1118, %v1408, 0
    %v1425 = vsel %vm130, %v1396, 0
    %1427 = vmatpush.msra.mxu0 0.0
    %1428 = vmatpush.msra.mxu0 0.0
    %1429 = vmatpush.msra.mxu0 0.0
    %1430 = vmatpush.msra.mxu0 0.0
    %1431 = vmatpush.msra.mxu0 0.0
    %1432 = vmatpush.msra.mxu0 0.0
    %1433 = vmatpush.msra.mxu0 0.0
    %1434 = vmatpush.msra.mxu0 0.0
    %1435 = vmatpush.msra.mxu0 0.0
    %1436 = vmatpush.msra.mxu0 0.0
    %1437 = vmatpush.msra.mxu0 0.0
    %1438 = vmatpush.msra.mxu0 %v1425
    %1439 = vmatpush.msra.mxu0 %v1395
    %1440 = vmatpush.msra.mxu0 %v1394
    %1441 = vmatpush.msra.mxu0 %v1393
    %1442 = vmatpush.msra.mxu0 %v1392
    %1443 = vmatmul.f32.gmra.mxu0 %v1410
    %v1444 = vpop.f32.mrf.mxu0
    %v1445 = vadd.f32 0.0, %v1444
    %1446 = vmatmul.f32.gmra.mxu0 %v1412
    %v1447 = vpop.f32.mrf.mxu0
    %v1448 = vadd.f32 0.0, %v1447
    %1449 = vmatmul.f32.gmra.mxu0 %v1414
    %v1450 = vpop.f32.mrf.mxu0
    %v1451 = vadd.f32 0.0, %v1450
    %1452 = vmatmul.f32.gmra.mxu0 %v1416
    %v1453 = vpop.f32.mrf.mxu0
    %v1454 = vadd.f32 0.0, %v1453
    %1455 = vmatmul.f32.gmra.mxu0 %v1418
    %v1456 = vpop.f32.mrf.mxu0
    %v1457 = vadd.f32 0.0, %v1456
    %1458 = vmatmul.f32.gmra.mxu0 %v1420
    %v1459 = vpop.f32.mrf.mxu0
    %v1460 = vadd.f32 0.0, %v1459
    %1461 = vmatmul.f32.gmra.mxu0 %v1422
    %v1462 = vpop.f32.mrf.mxu0
    %v1463 = vadd.f32 0.0, %v1462
    %1464 = vdwg.mxu0
    %v1465 = vadd.f32 %v1384, %v1445
    %v1466 = vadd.f32 %v1385, %v1448
    %v1467 = vadd.f32 %v1386, %v1451
    %v1468 = vadd.f32 %v1387, %v1454
    %v1469 = vadd.f32 %v1388, %v1457
    %v1470 = vadd.f32 %v1389, %v1460
    %v1471 = vadd.f32 %v1390, %v1463
    %v1472 = vperm.slane %v45, 2
    %v1473 = vadd.f32 %v1465, %v1472
    %v1474 = vadd.f32 %v1466, %v1472
    %v1475 = vadd.f32 %v1467, %v1472
    %v1476 = vadd.f32 %v1468, %v1472
    %v1477 = vadd.f32 %v1469, %v1472
    %v1478 = vadd.f32 %v1470, %v1472
    %v1479 = vadd.f32 %v1471, %v1472
    %vm1480 = vcmp.gt.f32.partialorder %v1473, 0.0
    %vm1481 = vcmp.gt.f32.partialorder %v1474, 0.0
    %vm1482 = vcmp.gt.f32.partialorder %v1475, 0.0
    %vm1483 = vcmp.gt.f32.partialorder %v1476, 0.0
    %vm1484 = vcmp.gt.f32.partialorder %v1477, 0.0
    %vm1485 = vcmp.gt.f32.partialorder %v1478, 0.0
    %vm1486 = vcmp.gt.f32.partialorder %v1479, 0.0
    %v1487 = vmin.f32 %v1473, 0.0
    %v1488 = vmin.f32 %v1474, 0.0
    %v1489 = vmin.f32 %v1475, 0.0
    %v1490 = vmin.f32 %v1476, 0.0
    %v1491 = vmin.f32 %v1477, 0.0
    %v1492 = vmin.f32 %v1478, 0.0
    %v1493 = vmin.f32 %v1479, 0.0
    %v1494 = vmul.f32 %v1487, 1.442695
    %v1495 = vpow.pop %v1494
    %v1496 = vmul.f32 %v1488, 1.442695
    %v1497 = vpow.pop %v1496
    %v1498 = vmul.f32 %v1489, 1.442695
    %v1499 = vpow.pop %v1498
    %v1500 = vmul.f32 %v1490, 1.442695
    %v1501 = vpow.pop %v1500
    %v1502 = vmul.f32 %v1491, 1.442695
    %v1503 = vpow.pop %v1502
    %v1504 = vmul.f32 %v1492, 1.442695
    %v1505 = vpow.pop %v1504
    %v1506 = vmul.f32 %v1493, 1.442695
    %v1507 = vpow.pop %v1506
    %v1508 = vsub.f32 %v1495, 1.0
    %v1509 = vsub.f32 %v1497, 1.0
    %v1510 = vsub.f32 %v1499, 1.0
    %v1511 = vsub.f32 %v1501, 1.0
    %v1512 = vsub.f32 %v1503, 1.0
    %v1513 = vsub.f32 %v1505, 1.0
    %v1514 = vsub.f32 %v1507, 1.0
    %v1515 = vsel %vm1480, %v1473, %v1508
    %v1516 = vsel %vm1481, %v1474, %v1509
    %v1517 = vsel %vm1482, %v1475, %v1510
    %v1518 = vsel %vm1483, %v1476, %v1511
    %v1519 = vsel %vm1484, %v1477, %v1512
    %v1520 = vsel %vm1485, %v1478, %v1513
    %v1521 = vsel %vm1486, %v1479, %v1514
    %vm1522 = vcmask 523264
    %1523 = vst.msk [vmem:[#allocation2] sm:$0xff] %vm1522, %v1515
    %1524 = vst.msk [vmem:[#allocation2 + $0x8] sm:$0xff] %vm1522, %v1516
    %1525 = vst.msk [vmem:[#allocation2 + $0x10] sm:$0xff] %vm1522, %v1517
    %1526 = vst.msk [vmem:[#allocation2 + $0x18] sm:$0xff] %vm1522, %v1518
    %1527 = vst.msk [vmem:[#allocation2 + $0x20] sm:$0xff] %vm1522, %v1519
    %1528 = vst.msk [vmem:[#allocation2 + $0x28] sm:$0xff] %vm1522, %v1520
    %vm1529 = vcmask 519168
    %1530 = vst.msk [vmem:[#allocation2 + $0x30] sm:$0xf] %vm1529, %v1521
    %v1531 = vld [vmem:[#allocation2] ss:$2 sm:$0xff]
    %s1532 = scalar_lea.vmem [#allocation2], 16
    %v1533 = vld [vmem:[%s1532] ss:$2 sm:$0xff]
    %s1534 = scalar_lea.vmem [#allocation2], 32
    %v1535 = vld [vmem:[%s1534] ss:$2 sm:$0xff]
    %s1536 = scalar_lea.vmem [#allocation2], 48
    %v1537 = vld [vmem:[%s1536] ss:$2 sm:$0x3]
    %s1538 = scalar_lea.vmem [#allocation2], 1
    %v1539 = vld [vmem:[%s1538] ss:$2 sm:$0xff]
    %s1540 = scalar_lea.vmem [#allocation2], 17
    %v1541 = vld [vmem:[%s1540] ss:$2 sm:$0xff]
    %s1542 = scalar_lea.vmem [#allocation2], 33
    %v1543 = vld [vmem:[%s1542] ss:$2 sm:$0xff]
    %s1544 = scalar_lea.vmem [#allocation2], 49
    %v1545 = vld [vmem:[%s1544] ss:$2 sm:$0x3]
    %v1546 = vmax.f32 %v1531, %v1539
    %v1547 = vmax.f32 %v1533, %v1541
    %v1548 = vmax.f32 %v1535, %v1543
    %v1549 = vmax.f32 %v1537, %v1545
    %v1550 = vperm.slane %v45, 3
    %v1552 = vsel %vm1522, %v1546, 0
    %v1555 = vsel %vm1522, %v1547, 0
    %v1558 = vsel %vm1522, %v1548, 0
    %v1561 = vsel %vm1522, %v1549, 0
    %1563 = vmatpush.msra.mxu0 0.0
    %1564 = vmatpush.msra.mxu0 0.0
    %1565 = vmatpush.msra.mxu0 0.0
    %1566 = vmatpush.msra.mxu0 0.0
    %1567 = vmatpush.msra.mxu0 0.0
    %1568 = vmatpush.msra.mxu0 0.0
    %1569 = vmatpush.msra.mxu0 0.0
    %1570 = vmatpush.msra.mxu0 0.0
    %1571 = vmatpush.msra.mxu0 %v61
    %1572 = vmatpush.msra.mxu0 %v60
    %1573 = vmatpush.msra.mxu0 %v59
    %1574 = vmatpush.msra.mxu0 %v58
    %1575 = vmatpush.msra.mxu0 %v57
    %1576 = vmatpush.msra.mxu0 %v56
    %1577 = vmatpush.msra.mxu0 %v55
    %1578 = vmatpush.msra.mxu0 %v54
    %1579 = vmatmul.f32.gmra.mxu0 %v1552
    %v1580 = vpop.f32.mrf.mxu0
    %v1581 = vadd.f32 %v1550, %v1580
    %1582 = vmatmul.f32.gmra.mxu0 %v1555
    %v1583 = vpop.f32.mrf.mxu0
    %v1584 = vadd.f32 %v1550, %v1583
    %1585 = vmatmul.f32.gmra.mxu0 %v1558
    %v1586 = vpop.f32.mrf.mxu0
    %v1587 = vadd.f32 %v1550, %v1586
    %1588 = vmatmul.f32.gmra.mxu0 %v1561
    %v1589 = vpop.f32.mrf.mxu0
    %v1590 = vadd.f32 %v1550, %v1589
    %1591 = vdwg.mxu0
    %vm1592 = vcmp.gt.f32.partialorder %v1581, 0.0
    %vm1593 = vcmp.gt.f32.partialorder %v1584, 0.0
    %vm1594 = vcmp.gt.f32.partialorder %v1587, 0.0
    %vm1595 = vcmp.gt.f32.partialorder %v1590, 0.0
    %v1596 = vmin.f32 %v1581, 0.0
    %v1597 = vmin.f32 %v1584, 0.0
    %v1598 = vmin.f32 %v1587, 0.0
    %v1599 = vmin.f32 %v1590, 0.0
    %v1600 = vmul.f32 %v1596, 1.442695
    %v1601 = vpow.pop %v1600
    %v1602 = vmul.f32 %v1597, 1.442695
    %v1603 = vpow.pop %v1602
    %v1604 = vmul.f32 %v1598, 1.442695
    %v1605 = vpow.pop %v1604
    %v1606 = vmul.f32 %v1599, 1.442695
    %v1607 = vpow.pop %v1606
    %v1608 = vsub.f32 %v1601, 1.0
    %v1609 = vsub.f32 %v1603, 1.0
    %v1610 = vsub.f32 %v1605, 1.0
    %v1611 = vsub.f32 %v1607, 1.0
    %v1612 = vsel %vm1592, %v1581, %v1608
    %v1613 = vsel %vm1593, %v1584, %v1609
    %v1614 = vsel %vm1594, %v1587, %v1610
    %v1615 = vsel %vm1595, %v1590, %v1611
    %vm1616 = vcmask 15360
    %1617 = vst.msk [vmem:[#allocation3] sm:$0xff] %vm1616, %v1612
    %1618 = vst.msk [vmem:[#allocation3 + $0x8] sm:$0xff] %vm1616, %v1613
    %1619 = vst.msk [vmem:[#allocation3 + $0x10] sm:$0xff] %vm1616, %v1614
    %vm1620 = vcmask 9216
    %1621 = vst.msk [vmem:[#allocation3 + $0x18] sm:$0x3] %vm1620, %v1615
    %v1622 = vld [vmem:[#allocation3] ss:$2 sm:$0xff]
    %s1623 = scalar_lea.vmem [#allocation3], 16
    %v1624 = vld [vmem:[%s1623] ss:$2 sm:$0x1f]
    %s1625 = scalar_lea.vmem [#allocation3], 1
    %v1626 = vld [vmem:[%s1625] ss:$2 sm:$0xff]
    %s1627 = scalar_lea.vmem [#allocation3], 17
    %v1628 = vld [vmem:[%s1627] ss:$2 sm:$0x1f]
    %v1629 = vmax.f32 %v1622, %v1626
    %v1630 = vmax.f32 %v1624, %v1628
    %vm1631 = vcmask 7168
    %1632 = vst.msk [vmem:[#allocation4] sm:$0xff] %vm1631, %v1629
    %vm1633 = vcmask 4096
    %1634 = vst.msk [vmem:[#allocation4 + $0x8] sm:$0x1f] %vm1633, %v1630
    %1637 = vrot.lane.b32.xlu0 %v1629, 127
    %v1638 = vpop.permute.xlu0 %1637
    %1639 = vrot.lane.b32.xlu0 %v1630, 127
    %v1640 = vpop.permute.xlu0 %1639
    %1643 = vst.msk [vmem:[#allocation4 + $0xd] sm:$0xff] %vm1631, %v1638
    %1644 = vst.msk [vmem:[#allocation4 + $0x15] sm:$0x1f] %vm1633, %v1640
    %s1645 = scalar_lea.vmem %s0, 64
    %v1646 = vld [vmem:[%s1645] sm:$0xff]
    %v1647 = vld [vmem:[%s1645 + $0x8] sm:$0xff]
    %v1648 = vld [vmem:[%s1645 + $0x10] sm:$0xff]
    %v1649 = vld [vmem:[%s1645 + $0x18] sm:$0xff]
    %v1650 = vld [vmem:[%s1645 + $0x20] sm:$0xff]
    %v1651 = vld [vmem:[%s1645 + $0x28] sm:$0xff]
    %v1652 = vld [vmem:[%s1645 + $0x30] sm:$0xff]
    %v1653 = vld [vmem:[%s1645 + $0x38] sm:$0xff]
    %v1654 = vld [vmem:[%s3] sm:$0xff]
    %v1655 = vld [vmem:[%s3 + $0x8] sm:$0xff]
    %v1656 = vld [vmem:[%s3 + $0x10] sm:$0xff]
    %v1657 = vld [vmem:[%s3 + $0x18] sm:$0xff]
    %v1658 = vld [vmem:[%s3 + $0x20] sm:$0xff]
    %v1659 = vld [vmem:[%s3 + $0x28] sm:$0xff]
    %v1660 = vld [vmem:[%s3 + $0x30] sm:$0xff]
    %v1661 = vld [vmem:[%s3 + $0x38] sm:$0xff]
    %v1662 = vld [vmem:[%s3 + $0x40] sm:$0x1]
    %v1663 = vld [vmem:[%s79] sm:$0xff]
    %v1664 = vld [vmem:[%s79 + $0x8] sm:$0xff]
    %v1665 = vld [vmem:[%s79 + $0x10] sm:$0xff]
    %v1666 = vld [vmem:[%s79 + $0x18] sm:$0xff]
    %v1667 = vld [vmem:[%s79 + $0x20] sm:$0xff]
    %v1668 = vld [vmem:[%s79 + $0x28] sm:$0xff]
    %v1669 = vld [vmem:[%s79 + $0x30] sm:$0xff]
    %v1670 = vld [vmem:[%s79 + $0x38] sm:$0xff]
    %v1671 = vld [vmem:[%s79 + $0x40] sm:$0x1]
    %v1680 = vrot.slane %v1646, 1
    %v1681 = vrot.slane %v1647, 1
    %v1682 = vsel %vm97, %v1680, %v1681
    %v1683 = vrot.slane %v1648, 1
    %v1684 = vsel %vm97, %v1681, %v1683
    %v1685 = vrot.slane %v1649, 1
    %v1686 = vsel %vm97, %v1683, %v1685
    %v1687 = vrot.slane %v1650, 1
    %v1688 = vsel %vm97, %v1685, %v1687
    %v1689 = vrot.slane %v1651, 1
    %v1690 = vsel %vm97, %v1687, %v1689
    %v1691 = vrot.slane %v1652, 1
    %v1692 = vsel %vm97, %v1689, %v1691
    %v1693 = vrot.slane %v1653, 1
    %v1694 = vsel %vm97, %v1691, %v1693
    %v1695 = vsel %vm113, %v1682, 0
    %v1697 = vsel %vm113, %v1684, 0
    %v1699 = vsel %vm113, %v1686, 0
    %v1701 = vsel %vm113, %v1688, 0
    %v1703 = vsel %vm113, %v1690, 0
    %v1705 = vsel %vm113, %v1692, 0
    %v1707 = vsel %vm113, %v1694, 0
    %v1709 = vsel %vm113, %v1693, 0
    %v1712 = vsel %vm130, %v1671, 0
    %1714 = vmatpush.msra.mxu0 0.0
    %1715 = vmatpush.msra.mxu0 0.0
    %1716 = vmatpush.msra.mxu0 0.0
    %1717 = vmatpush.msra.mxu0 0.0
    %1718 = vmatpush.msra.mxu0 0.0
    %1719 = vmatpush.msra.mxu0 0.0
    %1720 = vmatpush.msra.mxu0 0.0
    %1721 = vmatpush.msra.mxu0 %v1712
    %1722 = vmatpush.msra.mxu0 %v1670
    %1723 = vmatpush.msra.mxu0 %v1669
    %1724 = vmatpush.msra.mxu0 %v1668
    %1725 = vmatpush.msra.mxu0 %v1667
    %1726 = vmatpush.msra.mxu0 %v1666
    %1727 = vmatpush.msra.mxu0 %v1665
    %1728 = vmatpush.msra.mxu0 %v1664
    %1729 = vmatpush.msra.mxu0 %v1663
    %1730 = vmatmul.f32.gmra.mxu0 %v1695
    %v1731 = vpop.f32.mrf.mxu0
    %v1732 = vadd.f32 0.0, %v1731
    %1733 = vmatmul.f32.gmra.mxu0 %v1697
    %v1734 = vpop.f32.mrf.mxu0
    %v1735 = vadd.f32 0.0, %v1734
    %1736 = vmatmul.f32.gmra.mxu0 %v1699
    %v1737 = vpop.f32.mrf.mxu0
    %v1738 = vadd.f32 0.0, %v1737
    %1739 = vmatmul.f32.gmra.mxu0 %v1701
    %v1740 = vpop.f32.mrf.mxu0
    %v1741 = vadd.f32 0.0, %v1740
    %1742 = vmatmul.f32.gmra.mxu0 %v1703
    %v1743 = vpop.f32.mrf.mxu0
    %v1744 = vadd.f32 0.0, %v1743
    %1745 = vmatmul.f32.gmra.mxu0 %v1705
    %v1746 = vpop.f32.mrf.mxu0
    %v1747 = vadd.f32 0.0, %v1746
    %1748 = vmatmul.f32.gmra.mxu0 %v1707
    %v1749 = vpop.f32.mrf.mxu0
    %v1750 = vadd.f32 0.0, %v1749
    %1751 = vmatmul.f32.gmra.mxu0 %v1709
    %v1752 = vpop.f32.mrf.mxu0
    %v1753 = vadd.f32 0.0, %v1752
    %1754 = vdwg.mxu0
    %v1755 = vsel %vm113, %v1646, 0
    %v1757 = vsel %vm113, %v1647, 0
    %v1759 = vsel %vm113, %v1648, 0
    %v1761 = vsel %vm113, %v1649, 0
    %v1763 = vsel %vm113, %v1650, 0
    %v1765 = vsel %vm113, %v1651, 0
    %v1767 = vsel %vm113, %v1652, 0
    %v1769 = vsel %vm113, %v1653, 0
    %v1772 = vsel %vm130, %v1662, 0
    %1774 = vmatpush.msra.mxu0 0.0
    %1775 = vmatpush.msra.mxu0 0.0
    %1776 = vmatpush.msra.mxu0 0.0
    %1777 = vmatpush.msra.mxu0 0.0
    %1778 = vmatpush.msra.mxu0 0.0
    %1779 = vmatpush.msra.mxu0 0.0
    %1780 = vmatpush.msra.mxu0 0.0
    %1781 = vmatpush.msra.mxu0 %v1772
    %1782 = vmatpush.msra.mxu0 %v1661
    %1783 = vmatpush.msra.mxu0 %v1660
    %1784 = vmatpush.msra.mxu0 %v1659
    %1785 = vmatpush.msra.mxu0 %v1658
    %1786 = vmatpush.msra.mxu0 %v1657
    %1787 = vmatpush.msra.mxu0 %v1656
    %1788 = vmatpush.msra.mxu0 %v1655
    %1789 = vmatpush.msra.mxu0 %v1654
    %1790 = vmatmul.f32.gmra.mxu0 %v1755
    %v1791 = vpop.f32.mrf.mxu0
    %v1792 = vadd.f32 %v1732, %v1791
    %1793 = vmatmul.f32.gmra.mxu0 %v1757
    %v1794 = vpop.f32.mrf.mxu0
    %v1795 = vadd.f32 %v1735, %v1794
    %1796 = vmatmul.f32.gmra.mxu0 %v1759
    %v1797 = vpop.f32.mrf.mxu0
    %v1798 = vadd.f32 %v1738, %v1797
    %1799 = vmatmul.f32.gmra.mxu0 %v1761
    %v1800 = vpop.f32.mrf.mxu0
    %v1801 = vadd.f32 %v1741, %v1800
    %1802 = vmatmul.f32.gmra.mxu0 %v1763
    %v1803 = vpop.f32.mrf.mxu0
    %v1804 = vadd.f32 %v1744, %v1803
    %1805 = vmatmul.f32.gmra.mxu0 %v1765
    %v1806 = vpop.f32.mrf.mxu0
    %v1807 = vadd.f32 %v1747, %v1806
    %1808 = vmatmul.f32.gmra.mxu0 %v1767
    %v1809 = vpop.f32.mrf.mxu0
    %v1810 = vadd.f32 %v1750, %v1809
    %1811 = vmatmul.f32.gmra.mxu0 %v1769
    %v1812 = vpop.f32.mrf.mxu0
    %v1813 = vadd.f32 %v1753, %v1812
    %1814 = vdwg.mxu0
    %v1815 = vld [vmem:[%s235] sm:$0xff]
    %v1816 = vld [vmem:[%s235 + $0x8] sm:$0xff]
    %v1817 = vld [vmem:[%s235 + $0x10] sm:$0xff]
    %v1818 = vld [vmem:[%s235 + $0x18] sm:$0xff]
    %v1819 = vld [vmem:[%s235 + $0x20] sm:$0xff]
    %v1820 = vld [vmem:[%s235 + $0x28] sm:$0xff]
    %v1821 = vld [vmem:[%s235 + $0x30] sm:$0xff]
    %v1822 = vld [vmem:[%s235 + $0x38] sm:$0xff]
    %v1823 = vld [vmem:[%s235 + $0x40] sm:$0x1]
    %v1824 = vrot.slane %v1646, 2
    %v1825 = vrot.slane %v1647, 2
    %v1826 = vsel %vm245, %v1824, %v1825
    %v1827 = vrot.slane %v1648, 2
    %v1828 = vsel %vm245, %v1825, %v1827
    %v1829 = vrot.slane %v1649, 2
    %v1830 = vsel %vm245, %v1827, %v1829
    %v1831 = vrot.slane %v1650, 2
    %v1832 = vsel %vm245, %v1829, %v1831
    %v1833 = vrot.slane %v1651, 2
    %v1834 = vsel %vm245, %v1831, %v1833
    %v1835 = vrot.slane %v1652, 2
    %v1836 = vsel %vm245, %v1833, %v1835
    %v1837 = vrot.slane %v1653, 2
    %v1838 = vsel %vm245, %v1835, %v1837
    %v1839 = vsel %vm113, %v1826, 0
    %v1841 = vsel %vm113, %v1828, 0
    %v1843 = vsel %vm113, %v1830, 0
    %v1845 = vsel %vm113, %v1832, 0
    %v1847 = vsel %vm113, %v1834, 0
    %v1849 = vsel %vm113, %v1836, 0
    %v1851 = vsel %vm113, %v1838, 0
    %v1853 = vsel %vm113, %v1837, 0
    %v1856 = vsel %vm130, %v1823, 0
    %1858 = vmatpush.msra.mxu0 0.0
    %1859 = vmatpush.msra.mxu0 0.0
    %1860 = vmatpush.msra.mxu0 0.0
    %1861 = vmatpush.msra.mxu0 0.0
    %1862 = vmatpush.msra.mxu0 0.0
    %1863 = vmatpush.msra.mxu0 0.0
    %1864 = vmatpush.msra.mxu0 0.0
    %1865 = vmatpush.msra.mxu0 %v1856
    %1866 = vmatpush.msra.mxu0 %v1822
    %1867 = vmatpush.msra.mxu0 %v1821
    %1868 = vmatpush.msra.mxu0 %v1820
    %1869 = vmatpush.msra.mxu0 %v1819
    %1870 = vmatpush.msra.mxu0 %v1818
    %1871 = vmatpush.msra.mxu0 %v1817
    %1872 = vmatpush.msra.mxu0 %v1816
    %1873 = vmatpush.msra.mxu0 %v1815
    %1874 = vmatmul.f32.gmra.mxu0 %v1839
    %v1875 = vpop.f32.mrf.mxu0
    %v1876 = vadd.f32 0.0, %v1875
    %1877 = vmatmul.f32.gmra.mxu0 %v1841
    %v1878 = vpop.f32.mrf.mxu0
    %v1879 = vadd.f32 0.0, %v1878
    %1880 = vmatmul.f32.gmra.mxu0 %v1843
    %v1881 = vpop.f32.mrf.mxu0
    %v1882 = vadd.f32 0.0, %v1881
    %1883 = vmatmul.f32.gmra.mxu0 %v1845
    %v1884 = vpop.f32.mrf.mxu0
    %v1885 = vadd.f32 0.0, %v1884
    %1886 = vmatmul.f32.gmra.mxu0 %v1847
    %v1887 = vpop.f32.mrf.mxu0
    %v1888 = vadd.f32 0.0, %v1887
    %1889 = vmatmul.f32.gmra.mxu0 %v1849
    %v1890 = vpop.f32.mrf.mxu0
    %v1891 = vadd.f32 0.0, %v1890
    %1892 = vmatmul.f32.gmra.mxu0 %v1851
    %v1893 = vpop.f32.mrf.mxu0
    %v1894 = vadd.f32 0.0, %v1893
    %1895 = vmatmul.f32.gmra.mxu0 %v1853
    %v1896 = vpop.f32.mrf.mxu0
    %v1897 = vadd.f32 0.0, %v1896
    %1898 = vdwg.mxu0
    %v1899 = vadd.f32 %v1792, %v1876
    %v1900 = vadd.f32 %v1795, %v1879
    %v1901 = vadd.f32 %v1798, %v1882
    %v1902 = vadd.f32 %v1801, %v1885
    %v1903 = vadd.f32 %v1804, %v1888
    %v1904 = vadd.f32 %v1807, %v1891
    %v1905 = vadd.f32 %v1810, %v1894
    %v1906 = vadd.f32 %v1813, %v1897
    %v1907 = vld [vmem:[%s329] sm:$0xff]
    %v1908 = vld [vmem:[%s329 + $0x8] sm:$0xff]
    %v1909 = vld [vmem:[%s329 + $0x10] sm:$0xff]
    %v1910 = vld [vmem:[%s329 + $0x18] sm:$0xff]
    %v1911 = vld [vmem:[%s329 + $0x20] sm:$0xff]
    %v1912 = vld [vmem:[%s329 + $0x28] sm:$0xff]
    %v1913 = vld [vmem:[%s329 + $0x30] sm:$0xff]
    %v1914 = vld [vmem:[%s329 + $0x38] sm:$0xff]
    %v1915 = vld [vmem:[%s329 + $0x40] sm:$0x1]
    %v1916 = vrot.slane %v1646, 3
    %v1917 = vrot.slane %v1647, 3
    %v1918 = vsel %vm339, %v1916, %v1917
    %v1919 = vrot.slane %v1648, 3
    %v1920 = vsel %vm339, %v1917, %v1919
    %v1921 = vrot.slane %v1649, 3
    %v1922 = vsel %vm339, %v1919, %v1921
    %v1923 = vrot.slane %v1650, 3
    %v1924 = vsel %vm339, %v1921, %v1923
    %v1925 = vrot.slane %v1651, 3
    %v1926 = vsel %vm339, %v1923, %v1925
    %v1927 = vrot.slane %v1652, 3
    %v1928 = vsel %vm339, %v1925, %v1927
    %v1929 = vrot.slane %v1653, 3
    %v1930 = vsel %vm339, %v1927, %v1929
    %v1931 = vsel %vm113, %v1918, 0
    %v1933 = vsel %vm113, %v1920, 0
    %v1935 = vsel %vm113, %v1922, 0
    %v1937 = vsel %vm113, %v1924, 0
    %v1939 = vsel %vm113, %v1926, 0
    %v1941 = vsel %vm113, %v1928, 0
    %v1943 = vsel %vm113, %v1930, 0
    %v1945 = vsel %vm113, %v1929, 0
    %v1948 = vsel %vm130, %v1915, 0
    %1950 = vmatpush.msra.mxu0 0.0
    %1951 = vmatpush.msra.mxu0 0.0
    %1952 = vmatpush.msra.mxu0 0.0
    %1953 = vmatpush.msra.mxu0 0.0
    %1954 = vmatpush.msra.mxu0 0.0
    %1955 = vmatpush.msra.mxu0 0.0
    %1956 = vmatpush.msra.mxu0 0.0
    %1957 = vmatpush.msra.mxu0 %v1948
    %1958 = vmatpush.msra.mxu0 %v1914
    %1959 = vmatpush.msra.mxu0 %v1913
    %1960 = vmatpush.msra.mxu0 %v1912
    %1961 = vmatpush.msra.mxu0 %v1911
    %1962 = vmatpush.msra.mxu0 %v1910
    %1963 = vmatpush.msra.mxu0 %v1909
    %1964 = vmatpush.msra.mxu0 %v1908
    %1965 = vmatpush.msra.mxu0 %v1907
    %1966 = vmatmul.f32.gmra.mxu0 %v1931
    %v1967 = vpop.f32.mrf.mxu0
    %v1968 = vadd.f32 0.0, %v1967
    %1969 = vmatmul.f32.gmra.mxu0 %v1933
    %v1970 = vpop.f32.mrf.mxu0
    %v1971 = vadd.f32 0.0, %v1970
    %1972 = vmatmul.f32.gmra.mxu0 %v1935
    %v1973 = vpop.f32.mrf.mxu0
    %v1974 = vadd.f32 0.0, %v1973
    %1975 = vmatmul.f32.gmra.mxu0 %v1937
    %v1976 = vpop.f32.mrf.mxu0
    %v1977 = vadd.f32 0.0, %v1976
    %1978 = vmatmul.f32.gmra.mxu0 %v1939
    %v1979 = vpop.f32.mrf.mxu0
    %v1980 = vadd.f32 0.0, %v1979
    %1981 = vmatmul.f32.gmra.mxu0 %v1941
    %v1982 = vpop.f32.mrf.mxu0
    %v1983 = vadd.f32 0.0, %v1982
    %1984 = vmatmul.f32.gmra.mxu0 %v1943
    %v1985 = vpop.f32.mrf.mxu0
    %v1986 = vadd.f32 0.0, %v1985
    %1987 = vmatmul.f32.gmra.mxu0 %v1945
    %v1988 = vpop.f32.mrf.mxu0
    %v1989 = vadd.f32 0.0, %v1988
    %1990 = vdwg.mxu0
    %v1991 = vadd.f32 %v1899, %v1968
    %v1992 = vadd.f32 %v1900, %v1971
    %v1993 = vadd.f32 %v1901, %v1974
    %v1994 = vadd.f32 %v1902, %v1977
    %v1995 = vadd.f32 %v1903, %v1980
    %v1996 = vadd.f32 %v1904, %v1983
    %v1997 = vadd.f32 %v1905, %v1986
    %v1998 = vadd.f32 %v1906, %v1989
    %v1999 = vld [vmem:[%s423] sm:$0xff]
    %v2000 = vld [vmem:[%s423 + $0x8] sm:$0xff]
    %v2001 = vld [vmem:[%s423 + $0x10] sm:$0xff]
    %v2002 = vld [vmem:[%s423 + $0x18] sm:$0xff]
    %v2003 = vld [vmem:[%s423 + $0x20] sm:$0xff]
    %v2004 = vld [vmem:[%s423 + $0x28] sm:$0xff]
    %v2005 = vld [vmem:[%s423 + $0x30] sm:$0xff]
    %v2006 = vld [vmem:[%s423 + $0x38] sm:$0xff]
    %v2007 = vld [vmem:[%s423 + $0x40] sm:$0x1]
    %v2008 = vrot.slane %v1646, 4
    %v2009 = vrot.slane %v1647, 4
    %v2010 = vsel %vm433, %v2008, %v2009
    %v2011 = vrot.slane %v1648, 4
    %v2012 = vsel %vm433, %v2009, %v2011
    %v2013 = vrot.slane %v1649, 4
    %v2014 = vsel %vm433, %v2011, %v2013
    %v2015 = vrot.slane %v1650, 4
    %v2016 = vsel %vm433, %v2013, %v2015
    %v2017 = vrot.slane %v1651, 4
    %v2018 = vsel %vm433, %v2015, %v2017
    %v2019 = vrot.slane %v1652, 4
    %v2020 = vsel %vm433, %v2017, %v2019
    %v2021 = vrot.slane %v1653, 4
    %v2022 = vsel %vm433, %v2019, %v2021
    %v2023 = vsel %vm113, %v2010, 0
    %v2025 = vsel %vm113, %v2012, 0
    %v2027 = vsel %vm113, %v2014, 0
    %v2029 = vsel %vm113, %v2016, 0
    %v2031 = vsel %vm113, %v2018, 0
    %v2033 = vsel %vm113, %v2020, 0
    %v2035 = vsel %vm113, %v2022, 0
    %v2037 = vsel %vm113, %v2021, 0
    %v2040 = vsel %vm130, %v2007, 0
    %2042 = vmatpush.msra.mxu0 0.0
    %2043 = vmatpush.msra.mxu0 0.0
    %2044 = vmatpush.msra.mxu0 0.0
    %2045 = vmatpush.msra.mxu0 0.0
    %2046 = vmatpush.msra.mxu0 0.0
    %2047 = vmatpush.msra.mxu0 0.0
    %2048 = vmatpush.msra.mxu0 0.0
    %2049 = vmatpush.msra.mxu0 %v2040
    %2050 = vmatpush.msra.mxu0 %v2006
    %2051 = vmatpush.msra.mxu0 %v2005
    %2052 = vmatpush.msra.mxu0 %v2004
    %2053 = vmatpush.msra.mxu0 %v2003
    %2054 = vmatpush.msra.mxu0 %v2002
    %2055 = vmatpush.msra.mxu0 %v2001
    %2056 = vmatpush.msra.mxu0 %v2000
    %2057 = vmatpush.msra.mxu0 %v1999
    %2058 = vmatmul.f32.gmra.mxu0 %v2023
    %v2059 = vpop.f32.mrf.mxu0
    %v2060 = vadd.f32 0.0, %v2059
    %2061 = vmatmul.f32.gmra.mxu0 %v2025
    %v2062 = vpop.f32.mrf.mxu0
    %v2063 = vadd.f32 0.0, %v2062
    %2064 = vmatmul.f32.gmra.mxu0 %v2027
    %v2065 = vpop.f32.mrf.mxu0
    %v2066 = vadd.f32 0.0, %v2065
    %2067 = vmatmul.f32.gmra.mxu0 %v2029
    %v2068 = vpop.f32.mrf.mxu0
    %v2069 = vadd.f32 0.0, %v2068
    %2070 = vmatmul.f32.gmra.mxu0 %v2031
    %v2071 = vpop.f32.mrf.mxu0
    %v2072 = vadd.f32 0.0, %v2071
    %2073 = vmatmul.f32.gmra.mxu0 %v2033
    %v2074 = vpop.f32.mrf.mxu0
    %v2075 = vadd.f32 0.0, %v2074
    %2076 = vmatmul.f32.gmra.mxu0 %v2035
    %v2077 = vpop.f32.mrf.mxu0
    %v2078 = vadd.f32 0.0, %v2077
    %2079 = vmatmul.f32.gmra.mxu0 %v2037
    %v2080 = vpop.f32.mrf.mxu0
    %v2081 = vadd.f32 0.0, %v2080
    %2082 = vdwg.mxu0
    %v2083 = vadd.f32 %v1991, %v2060
    %v2084 = vadd.f32 %v1992, %v2063
    %v2085 = vadd.f32 %v1993, %v2066
    %v2086 = vadd.f32 %v1994, %v2069
    %v2087 = vadd.f32 %v1995, %v2072
    %v2088 = vadd.f32 %v1996, %v2075
    %v2089 = vadd.f32 %v1997, %v2078
    %v2090 = vadd.f32 %v1998, %v2081
    %v2091 = vadd.f32 %v2083, %v517
    %v2092 = vadd.f32 %v2084, %v517
    %v2093 = vadd.f32 %v2085, %v517
    %v2094 = vadd.f32 %v2086, %v517
    %v2095 = vadd.f32 %v2087, %v517
    %v2096 = vadd.f32 %v2088, %v517
    %v2097 = vadd.f32 %v2089, %v517
    %v2098 = vadd.f32 %v2090, %v517
    %vm2099 = vcmp.gt.f32.partialorder %v2091, 0.0
    %vm2100 = vcmp.gt.f32.partialorder %v2092, 0.0
    %vm2101 = vcmp.gt.f32.partialorder %v2093, 0.0
    %vm2102 = vcmp.gt.f32.partialorder %v2094, 0.0
    %vm2103 = vcmp.gt.f32.partialorder %v2095, 0.0
    %vm2104 = vcmp.gt.f32.partialorder %v2096, 0.0
    %vm2105 = vcmp.gt.f32.partialorder %v2097, 0.0
    %vm2106 = vcmp.gt.f32.partialorder %v2098, 0.0
    %v2107 = vmin.f32 %v2091, 0.0
    %v2108 = vmin.f32 %v2092, 0.0
    %v2109 = vmin.f32 %v2093, 0.0
    %v2110 = vmin.f32 %v2094, 0.0
    %v2111 = vmin.f32 %v2095, 0.0
    %v2112 = vmin.f32 %v2096, 0.0
    %v2113 = vmin.f32 %v2097, 0.0
    %v2114 = vmin.f32 %v2098, 0.0
    %v2115 = vmul.f32 %v2107, 1.442695
    %v2116 = vpow.pop %v2115
    %v2117 = vmul.f32 %v2108, 1.442695
    %v2118 = vpow.pop %v2117
    %v2119 = vmul.f32 %v2109, 1.442695
    %v2120 = vpow.pop %v2119
    %v2121 = vmul.f32 %v2110, 1.442695
    %v2122 = vpow.pop %v2121
    %v2123 = vmul.f32 %v2111, 1.442695
    %v2124 = vpow.pop %v2123
    %v2125 = vmul.f32 %v2112, 1.442695
    %v2126 = vpow.pop %v2125
    %v2127 = vmul.f32 %v2113, 1.442695
    %v2128 = vpow.pop %v2127
    %v2129 = vmul.f32 %v2114, 1.442695
    %v2130 = vpow.pop %v2129
    %v2131 = vsub.f32 %v2116, 1.0
    %v2132 = vsub.f32 %v2118, 1.0
    %v2133 = vsub.f32 %v2120, 1.0
    %v2134 = vsub.f32 %v2122, 1.0
    %v2135 = vsub.f32 %v2124, 1.0
    %v2136 = vsub.f32 %v2126, 1.0
    %v2137 = vsub.f32 %v2128, 1.0
    %v2138 = vsub.f32 %v2130, 1.0
    %v2139 = vsel %vm2099, %v2091, %v2131
    %v2140 = vsel %vm2100, %v2092, %v2132
    %v2141 = vsel %vm2101, %v2093, %v2133
    %v2142 = vsel %vm2102, %v2094, %v2134
    %v2143 = vsel %vm2103, %v2095, %v2135
    %v2144 = vsel %vm2104, %v2096, %v2136
    %v2145 = vsel %vm2105, %v2097, %v2137
    %v2146 = vsel %vm2106, %v2098, %v2138
    %v2147 = vld [vmem:[%s4] sm:$0xff]
    %v2148 = vld [vmem:[%s4 + $0x8] sm:$0xff]
    %v2149 = vld [vmem:[%s4 + $0x10] sm:$0xff]
    %v2150 = vld [vmem:[%s4 + $0x18] sm:$0xff]
    %v2151 = vld [vmem:[%s4 + $0x20] sm:$0xff]
    %v2152 = vld [vmem:[%s4 + $0x28] sm:$0xff]
    %v2153 = vld [vmem:[%s4 + $0x30] sm:$0xff]
    %v2154 = vld [vmem:[%s4 + $0x38] sm:$0xff]
    %v2155 = vld [vmem:[%s4 + $0x40] sm:$0xff]
    %v2156 = vld [vmem:[%s4 + $0x48] sm:$0xff]
    %v2157 = vld [vmem:[%s4 + $0x50] sm:$0xff]
    %v2158 = vld [vmem:[%s4 + $0x58] sm:$0xff]
    %v2159 = vld [vmem:[%s4 + $0x60] sm:$0x1]
    %v2160 = vld [vmem:[%s587] sm:$0xff]
    %v2161 = vld [vmem:[%s587 + $0x8] sm:$0xff]
    %v2162 = vld [vmem:[%s587 + $0x10] sm:$0xff]
    %v2163 = vld [vmem:[%s587 + $0x18] sm:$0xff]
    %v2164 = vld [vmem:[%s587 + $0x20] sm:$0xff]
    %v2165 = vld [vmem:[%s587 + $0x28] sm:$0xff]
    %v2166 = vld [vmem:[%s587 + $0x30] sm:$0xff]
    %v2167 = vld [vmem:[%s587 + $0x38] sm:$0xff]
    %v2168 = vld [vmem:[%s587 + $0x40] sm:$0xff]
    %v2169 = vld [vmem:[%s587 + $0x48] sm:$0xff]
    %v2170 = vld [vmem:[%s587 + $0x50] sm:$0xff]
    %v2171 = vld [vmem:[%s587 + $0x58] sm:$0xff]
    %v2172 = vld [vmem:[%s587 + $0x60] sm:$0x1]
    %v2181 = vrot.slane %v2139, 1
    %v2182 = vrot.slane %v2140, 1
    %v2183 = vsel %vm97, %v2181, %v2182
    %v2184 = vrot.slane %v2141, 1
    %v2185 = vsel %vm97, %v2182, %v2184
    %v2186 = vrot.slane %v2142, 1
    %v2187 = vsel %vm97, %v2184, %v2186
    %v2188 = vrot.slane %v2143, 1
    %v2189 = vsel %vm97, %v2186, %v2188
    %v2190 = vrot.slane %v2144, 1
    %v2191 = vsel %vm97, %v2188, %v2190
    %v2192 = vrot.slane %v2145, 1
    %v2193 = vsel %vm97, %v2190, %v2192
    %v2194 = vrot.slane %v2146, 1
    %v2195 = vsel %vm97, %v2192, %v2194
    %v2196 = vsel %vm624, %v2183, 0
    %v2198 = vsel %vm624, %v2185, 0
    %v2200 = vsel %vm624, %v2187, 0
    %v2202 = vsel %vm624, %v2189, 0
    %v2204 = vsel %vm624, %v2191, 0
    %v2206 = vsel %vm624, %v2193, 0
    %v2208 = vsel %vm624, %v2195, 0
    %v2211 = vsel %vm130, %v2172, 0
    %2213 = vmatpush.msra.mxu0 0.0
    %2214 = vmatpush.msra.mxu0 0.0
    %2215 = vmatpush.msra.mxu0 0.0
    %2216 = vmatpush.msra.mxu0 %v2211
    %2217 = vmatpush.msra.mxu0 %v2171
    %2218 = vmatpush.msra.mxu0 %v2170
    %2219 = vmatpush.msra.mxu0 %v2169
    %2220 = vmatpush.msra.mxu0 %v2168
    %2221 = vmatpush.msra.mxu0 %v2167
    %2222 = vmatpush.msra.mxu0 %v2166
    %2223 = vmatpush.msra.mxu0 %v2165
    %2224 = vmatpush.msra.mxu0 %v2164
    %2225 = vmatpush.msra.mxu0 %v2163
    %2226 = vmatpush.msra.mxu0 %v2162
    %2227 = vmatpush.msra.mxu0 %v2161
    %2228 = vmatpush.msra.mxu0 %v2160
    %2229 = vmatmul.f32.gmra.mxu0 %v2196
    %v2230 = vpop.f32.mrf.mxu0
    %v2231 = vadd.f32 0.0, %v2230
    %2232 = vmatmul.f32.gmra.mxu0 %v2198
    %v2233 = vpop.f32.mrf.mxu0
    %v2234 = vadd.f32 0.0, %v2233
    %2235 = vmatmul.f32.gmra.mxu0 %v2200
    %v2236 = vpop.f32.mrf.mxu0
    %v2237 = vadd.f32 0.0, %v2236
    %2238 = vmatmul.f32.gmra.mxu0 %v2202
    %v2239 = vpop.f32.mrf.mxu0
    %v2240 = vadd.f32 0.0, %v2239
    %2241 = vmatmul.f32.gmra.mxu0 %v2204
    %v2242 = vpop.f32.mrf.mxu0
    %v2243 = vadd.f32 0.0, %v2242
    %2244 = vmatmul.f32.gmra.mxu0 %v2206
    %v2245 = vpop.f32.mrf.mxu0
    %v2246 = vadd.f32 0.0, %v2245
    %2247 = vmatmul.f32.gmra.mxu0 %v2208
    %v2248 = vpop.f32.mrf.mxu0
    %v2249 = vadd.f32 0.0, %v2248
    %2250 = vdwg.mxu0
    %v2251 = vsel %vm624, %v2139, 0
    %v2253 = vsel %vm624, %v2140, 0
    %v2255 = vsel %vm624, %v2141, 0
    %v2257 = vsel %vm624, %v2142, 0
    %v2259 = vsel %vm624, %v2143, 0
    %v2261 = vsel %vm624, %v2144, 0
    %v2263 = vsel %vm624, %v2145, 0
    %v2266 = vsel %vm130, %v2159, 0
    %2268 = vmatpush.msra.mxu0 0.0
    %2269 = vmatpush.msra.mxu0 0.0
    %2270 = vmatpush.msra.mxu0 0.0
    %2271 = vmatpush.msra.mxu0 %v2266
    %2272 = vmatpush.msra.mxu0 %v2158
    %2273 = vmatpush.msra.mxu0 %v2157
    %2274 = vmatpush.msra.mxu0 %v2156
    %2275 = vmatpush.msra.mxu0 %v2155
    %2276 = vmatpush.msra.mxu0 %v2154
    %2277 = vmatpush.msra.mxu0 %v2153
    %2278 = vmatpush.msra.mxu0 %v2152
    %2279 = vmatpush.msra.mxu0 %v2151
    %2280 = vmatpush.msra.mxu0 %v2150
    %2281 = vmatpush.msra.mxu0 %v2149
    %2282 = vmatpush.msra.mxu0 %v2148
    %2283 = vmatpush.msra.mxu0 %v2147
    %2284 = vmatmul.f32.gmra.mxu0 %v2251
    %v2285 = vpop.f32.mrf.mxu0
    %v2286 = vadd.f32 %v2231, %v2285
    %2287 = vmatmul.f32.gmra.mxu0 %v2253
    %v2288 = vpop.f32.mrf.mxu0
    %v2289 = vadd.f32 %v2234, %v2288
    %2290 = vmatmul.f32.gmra.mxu0 %v2255
    %v2291 = vpop.f32.mrf.mxu0
    %v2292 = vadd.f32 %v2237, %v2291
    %2293 = vmatmul.f32.gmra.mxu0 %v2257
    %v2294 = vpop.f32.mrf.mxu0
    %v2295 = vadd.f32 %v2240, %v2294
    %2296 = vmatmul.f32.gmra.mxu0 %v2259
    %v2297 = vpop.f32.mrf.mxu0
    %v2298 = vadd.f32 %v2243, %v2297
    %2299 = vmatmul.f32.gmra.mxu0 %v2261
    %v2300 = vpop.f32.mrf.mxu0
    %v2301 = vadd.f32 %v2246, %v2300
    %2302 = vmatmul.f32.gmra.mxu0 %v2263
    %v2303 = vpop.f32.mrf.mxu0
    %v2304 = vadd.f32 %v2249, %v2303
    %2305 = vdwg.mxu0
    %v2306 = vld [vmem:[%s735] sm:$0xff]
    %v2307 = vld [vmem:[%s735 + $0x8] sm:$0xff]
    %v2308 = vld [vmem:[%s735 + $0x10] sm:$0xff]
    %v2309 = vld [vmem:[%s735 + $0x18] sm:$0xff]
    %v2310 = vld [vmem:[%s735 + $0x20] sm:$0xff]
    %v2311 = vld [vmem:[%s735 + $0x28] sm:$0xff]
    %v2312 = vld [vmem:[%s735 + $0x30] sm:$0xff]
    %v2313 = vld [vmem:[%s735 + $0x38] sm:$0xff]
    %v2314 = vld [vmem:[%s735 + $0x40] sm:$0xff]
    %v2315 = vld [vmem:[%s735 + $0x48] sm:$0xff]
    %v2316 = vld [vmem:[%s735 + $0x50] sm:$0xff]
    %v2317 = vld [vmem:[%s735 + $0x58] sm:$0xff]
    %v2318 = vld [vmem:[%s735 + $0x60] sm:$0x1]
    %v2319 = vrot.slane %v2139, 2
    %v2320 = vrot.slane %v2140, 2
    %v2321 = vsel %vm245, %v2319, %v2320
    %v2322 = vrot.slane %v2141, 2
    %v2323 = vsel %vm245, %v2320, %v2322
    %v2324 = vrot.slane %v2142, 2
    %v2325 = vsel %vm245, %v2322, %v2324
    %v2326 = vrot.slane %v2143, 2
    %v2327 = vsel %vm245, %v2324, %v2326
    %v2328 = vrot.slane %v2144, 2
    %v2329 = vsel %vm245, %v2326, %v2328
    %v2330 = vrot.slane %v2145, 2
    %v2331 = vsel %vm245, %v2328, %v2330
    %v2332 = vrot.slane %v2146, 2
    %v2333 = vsel %vm245, %v2330, %v2332
    %v2334 = vsel %vm624, %v2321, 0
    %v2336 = vsel %vm624, %v2323, 0
    %v2338 = vsel %vm624, %v2325, 0
    %v2340 = vsel %vm624, %v2327, 0
    %v2342 = vsel %vm624, %v2329, 0
    %v2344 = vsel %vm624, %v2331, 0
    %v2346 = vsel %vm624, %v2333, 0
    %v2349 = vsel %vm130, %v2318, 0
    %2351 = vmatpush.msra.mxu0 0.0
    %2352 = vmatpush.msra.mxu0 0.0
    %2353 = vmatpush.msra.mxu0 0.0
    %2354 = vmatpush.msra.mxu0 %v2349
    %2355 = vmatpush.msra.mxu0 %v2317
    %2356 = vmatpush.msra.mxu0 %v2316
    %2357 = vmatpush.msra.mxu0 %v2315
    %2358 = vmatpush.msra.mxu0 %v2314
    %2359 = vmatpush.msra.mxu0 %v2313
    %2360 = vmatpush.msra.mxu0 %v2312
    %2361 = vmatpush.msra.mxu0 %v2311
    %2362 = vmatpush.msra.mxu0 %v2310
    %2363 = vmatpush.msra.mxu0 %v2309
    %2364 = vmatpush.msra.mxu0 %v2308
    %2365 = vmatpush.msra.mxu0 %v2307
    %2366 = vmatpush.msra.mxu0 %v2306
    %2367 = vmatmul.f32.gmra.mxu0 %v2334
    %v2368 = vpop.f32.mrf.mxu0
    %v2369 = vadd.f32 0.0, %v2368
    %2370 = vmatmul.f32.gmra.mxu0 %v2336
    %v2371 = vpop.f32.mrf.mxu0
    %v2372 = vadd.f32 0.0, %v2371
    %2373 = vmatmul.f32.gmra.mxu0 %v2338
    %v2374 = vpop.f32.mrf.mxu0
    %v2375 = vadd.f32 0.0, %v2374
    %2376 = vmatmul.f32.gmra.mxu0 %v2340
    %v2377 = vpop.f32.mrf.mxu0
    %v2378 = vadd.f32 0.0, %v2377
    %2379 = vmatmul.f32.gmra.mxu0 %v2342
    %v2380 = vpop.f32.mrf.mxu0
    %v2381 = vadd.f32 0.0, %v2380
    %2382 = vmatmul.f32.gmra.mxu0 %v2344
    %v2383 = vpop.f32.mrf.mxu0
    %v2384 = vadd.f32 0.0, %v2383
    %2385 = vmatmul.f32.gmra.mxu0 %v2346
    %v2386 = vpop.f32.mrf.mxu0
    %v2387 = vadd.f32 0.0, %v2386
    %2388 = vdwg.mxu0
    %v2389 = vadd.f32 %v2286, %v2369
    %v2390 = vadd.f32 %v2289, %v2372
    %v2391 = vadd.f32 %v2292, %v2375
    %v2392 = vadd.f32 %v2295, %v2378
    %v2393 = vadd.f32 %v2298, %v2381
    %v2394 = vadd.f32 %v2301, %v2384
    %v2395 = vadd.f32 %v2304, %v2387
    %v2396 = vld [vmem:[%s826] sm:$0xff]
    %v2397 = vld [vmem:[%s826 + $0x8] sm:$0xff]
    %v2398 = vld [vmem:[%s826 + $0x10] sm:$0xff]
    %v2399 = vld [vmem:[%s826 + $0x18] sm:$0xff]
    %v2400 = vld [vmem:[%s826 + $0x20] sm:$0xff]
    %v2401 = vld [vmem:[%s826 + $0x28] sm:$0xff]
    %v2402 = vld [vmem:[%s826 + $0x30] sm:$0xff]
    %v2403 = vld [vmem:[%s826 + $0x38] sm:$0xff]
    %v2404 = vld [vmem:[%s826 + $0x40] sm:$0xff]
    %v2405 = vld [vmem:[%s826 + $0x48] sm:$0xff]
    %v2406 = vld [vmem:[%s826 + $0x50] sm:$0xff]
    %v2407 = vld [vmem:[%s826 + $0x58] sm:$0xff]
    %v2408 = vld [vmem:[%s826 + $0x60] sm:$0x1]
    %v2409 = vrot.slane %v2139, 3
    %v2410 = vrot.slane %v2140, 3
    %v2411 = vsel %vm339, %v2409, %v2410
    %v2412 = vrot.slane %v2141, 3
    %v2413 = vsel %vm339, %v2410, %v2412
    %v2414 = vrot.slane %v2142, 3
    %v2415 = vsel %vm339, %v2412, %v2414
    %v2416 = vrot.slane %v2143, 3
    %v2417 = vsel %vm339, %v2414, %v2416
    %v2418 = vrot.slane %v2144, 3
    %v2419 = vsel %vm339, %v2416, %v2418
    %v2420 = vrot.slane %v2145, 3
    %v2421 = vsel %vm339, %v2418, %v2420
    %v2422 = vrot.slane %v2146, 3
    %v2423 = vsel %vm339, %v2420, %v2422
    %v2424 = vsel %vm624, %v2411, 0
    %v2426 = vsel %vm624, %v2413, 0
    %v2428 = vsel %vm624, %v2415, 0
    %v2430 = vsel %vm624, %v2417, 0
    %v2432 = vsel %vm624, %v2419, 0
    %v2434 = vsel %vm624, %v2421, 0
    %v2436 = vsel %vm624, %v2423, 0
    %v2439 = vsel %vm130, %v2408, 0
    %2441 = vmatpush.msra.mxu0 0.0
    %2442 = vmatpush.msra.mxu0 0.0
    %2443 = vmatpush.msra.mxu0 0.0
    %2444 = vmatpush.msra.mxu0 %v2439
    %2445 = vmatpush.msra.mxu0 %v2407
    %2446 = vmatpush.msra.mxu0 %v2406
    %2447 = vmatpush.msra.mxu0 %v2405
    %2448 = vmatpush.msra.mxu0 %v2404
    %2449 = vmatpush.msra.mxu0 %v2403
    %2450 = vmatpush.msra.mxu0 %v2402
    %2451 = vmatpush.msra.mxu0 %v2401
    %2452 = vmatpush.msra.mxu0 %v2400
    %2453 = vmatpush.msra.mxu0 %v2399
    %2454 = vmatpush.msra.mxu0 %v2398
    %2455 = vmatpush.msra.mxu0 %v2397
    %2456 = vmatpush.msra.mxu0 %v2396
    %2457 = vmatmul.f32.gmra.mxu0 %v2424
    %v2458 = vpop.f32.mrf.mxu0
    %v2459 = vadd.f32 0.0, %v2458
    %2460 = vmatmul.f32.gmra.mxu0 %v2426
    %v2461 = vpop.f32.mrf.mxu0
    %v2462 = vadd.f32 0.0, %v2461
    %2463 = vmatmul.f32.gmra.mxu0 %v2428
    %v2464 = vpop.f32.mrf.mxu0
    %v2465 = vadd.f32 0.0, %v2464
    %2466 = vmatmul.f32.gmra.mxu0 %v2430
    %v2467 = vpop.f32.mrf.mxu0
    %v2468 = vadd.f32 0.0, %v2467
    %2469 = vmatmul.f32.gmra.mxu0 %v2432
    %v2470 = vpop.f32.mrf.mxu0
    %v2471 = vadd.f32 0.0, %v2470
    %2472 = vmatmul.f32.gmra.mxu0 %v2434
    %v2473 = vpop.f32.mrf.mxu0
    %v2474 = vadd.f32 0.0, %v2473
    %2475 = vmatmul.f32.gmra.mxu0 %v2436
    %v2476 = vpop.f32.mrf.mxu0
    %v2477 = vadd.f32 0.0, %v2476
    %2478 = vdwg.mxu0
    %v2479 = vadd.f32 %v2389, %v2459
    %v2480 = vadd.f32 %v2390, %v2462
    %v2481 = vadd.f32 %v2391, %v2465
    %v2482 = vadd.f32 %v2392, %v2468
    %v2483 = vadd.f32 %v2393, %v2471
    %v2484 = vadd.f32 %v2394, %v2474
    %v2485 = vadd.f32 %v2395, %v2477
    %v2486 = vld [vmem:[%s917] sm:$0xff]
    %v2487 = vld [vmem:[%s917 + $0x8] sm:$0xff]
    %v2488 = vld [vmem:[%s917 + $0x10] sm:$0xff]
    %v2489 = vld [vmem:[%s917 + $0x18] sm:$0xff]
    %v2490 = vld [vmem:[%s917 + $0x20] sm:$0xff]
    %v2491 = vld [vmem:[%s917 + $0x28] sm:$0xff]
    %v2492 = vld [vmem:[%s917 + $0x30] sm:$0xff]
    %v2493 = vld [vmem:[%s917 + $0x38] sm:$0xff]
    %v2494 = vld [vmem:[%s917 + $0x40] sm:$0xff]
    %v2495 = vld [vmem:[%s917 + $0x48] sm:$0xff]
    %v2496 = vld [vmem:[%s917 + $0x50] sm:$0xff]
    %v2497 = vld [vmem:[%s917 + $0x58] sm:$0xff]
    %v2498 = vld [vmem:[%s917 + $0x60] sm:$0x1]
    %v2499 = vrot.slane %v2139, 4
    %v2500 = vrot.slane %v2140, 4
    %v2501 = vsel %vm433, %v2499, %v2500
    %v2502 = vrot.slane %v2141, 4
    %v2503 = vsel %vm433, %v2500, %v2502
    %v2504 = vrot.slane %v2142, 4
    %v2505 = vsel %vm433, %v2502, %v2504
    %v2506 = vrot.slane %v2143, 4
    %v2507 = vsel %vm433, %v2504, %v2506
    %v2508 = vrot.slane %v2144, 4
    %v2509 = vsel %vm433, %v2506, %v2508
    %v2510 = vrot.slane %v2145, 4
    %v2511 = vsel %vm433, %v2508, %v2510
    %v2512 = vrot.slane %v2146, 4
    %v2513 = vsel %vm433, %v2510, %v2512
    %v2514 = vsel %vm624, %v2501, 0
    %v2516 = vsel %vm624, %v2503, 0
    %v2518 = vsel %vm624, %v2505, 0
    %v2520 = vsel %vm624, %v2507, 0
    %v2522 = vsel %vm624, %v2509, 0
    %v2524 = vsel %vm624, %v2511, 0
    %v2526 = vsel %vm624, %v2513, 0
    %v2529 = vsel %vm130, %v2498, 0
    %2531 = vmatpush.msra.mxu0 0.0
    %2532 = vmatpush.msra.mxu0 0.0
    %2533 = vmatpush.msra.mxu0 0.0
    %2534 = vmatpush.msra.mxu0 %v2529
    %2535 = vmatpush.msra.mxu0 %v2497
    %2536 = vmatpush.msra.mxu0 %v2496
    %2537 = vmatpush.msra.mxu0 %v2495
    %2538 = vmatpush.msra.mxu0 %v2494
    %2539 = vmatpush.msra.mxu0 %v2493
    %2540 = vmatpush.msra.mxu0 %v2492
    %2541 = vmatpush.msra.mxu0 %v2491
    %2542 = vmatpush.msra.mxu0 %v2490
    %2543 = vmatpush.msra.mxu0 %v2489
    %2544 = vmatpush.msra.mxu0 %v2488
    %2545 = vmatpush.msra.mxu0 %v2487
    %2546 = vmatpush.msra.mxu0 %v2486
    %2547 = vmatmul.f32.gmra.mxu0 %v2514
    %v2548 = vpop.f32.mrf.mxu0
    %v2549 = vadd.f32 0.0, %v2548
    %2550 = vmatmul.f32.gmra.mxu0 %v2516
    %v2551 = vpop.f32.mrf.mxu0
    %v2552 = vadd.f32 0.0, %v2551
    %2553 = vmatmul.f32.gmra.mxu0 %v2518
    %v2554 = vpop.f32.mrf.mxu0
    %v2555 = vadd.f32 0.0, %v2554
    %2556 = vmatmul.f32.gmra.mxu0 %v2520
    %v2557 = vpop.f32.mrf.mxu0
    %v2558 = vadd.f32 0.0, %v2557
    %2559 = vmatmul.f32.gmra.mxu0 %v2522
    %v2560 = vpop.f32.mrf.mxu0
    %v2561 = vadd.f32 0.0, %v2560
    %2562 = vmatmul.f32.gmra.mxu0 %v2524
    %v2563 = vpop.f32.mrf.mxu0
    %v2564 = vadd.f32 0.0, %v2563
    %2565 = vmatmul.f32.gmra.mxu0 %v2526
    %v2566 = vpop.f32.mrf.mxu0
    %v2567 = vadd.f32 0.0, %v2566
    %2568 = vdwg.mxu0
    %v2569 = vadd.f32 %v2479, %v2549
    %v2570 = vadd.f32 %v2480, %v2552
    %v2571 = vadd.f32 %v2481, %v2555
    %v2572 = vadd.f32 %v2482, %v2558
    %v2573 = vadd.f32 %v2483, %v2561
    %v2574 = vadd.f32 %v2484, %v2564
    %v2575 = vadd.f32 %v2485, %v2567
    %v2576 = vadd.f32 %v2569, %v1008
    %v2577 = vadd.f32 %v2570, %v1008
    %v2578 = vadd.f32 %v2571, %v1008
    %v2579 = vadd.f32 %v2572, %v1008
    %v2580 = vadd.f32 %v2573, %v1008
    %v2581 = vadd.f32 %v2574, %v1008
    %v2582 = vadd.f32 %v2575, %v1008
    %vm2583 = vcmp.gt.f32.partialorder %v2576, 0.0
    %vm2584 = vcmp.gt.f32.partialorder %v2577, 0.0
    %vm2585 = vcmp.gt.f32.partialorder %v2578, 0.0
    %vm2586 = vcmp.gt.f32.partialorder %v2579, 0.0
    %vm2587 = vcmp.gt.f32.partialorder %v2580, 0.0
    %vm2588 = vcmp.gt.f32.partialorder %v2581, 0.0
    %vm2589 = vcmp.gt.f32.partialorder %v2582, 0.0
    %v2590 = vmin.f32 %v2576, 0.0
    %v2591 = vmin.f32 %v2577, 0.0
    %v2592 = vmin.f32 %v2578, 0.0
    %v2593 = vmin.f32 %v2579, 0.0
    %v2594 = vmin.f32 %v2580, 0.0
    %v2595 = vmin.f32 %v2581, 0.0
    %v2596 = vmin.f32 %v2582, 0.0
    %v2597 = vmul.f32 %v2590, 1.442695
    %v2598 = vpow.pop %v2597
    %v2599 = vmul.f32 %v2591, 1.442695
    %v2600 = vpow.pop %v2599
    %v2601 = vmul.f32 %v2592, 1.442695
    %v2602 = vpow.pop %v2601
    %v2603 = vmul.f32 %v2593, 1.442695
    %v2604 = vpow.pop %v2603
    %v2605 = vmul.f32 %v2594, 1.442695
    %v2606 = vpow.pop %v2605
    %v2607 = vmul.f32 %v2595, 1.442695
    %v2608 = vpow.pop %v2607
    %v2609 = vmul.f32 %v2596, 1.442695
    %v2610 = vpow.pop %v2609
    %v2611 = vsub.f32 %v2598, 1.0
    %v2612 = vsub.f32 %v2600, 1.0
    %v2613 = vsub.f32 %v2602, 1.0
    %v2614 = vsub.f32 %v2604, 1.0
    %v2615 = vsub.f32 %v2606, 1.0
    %v2616 = vsub.f32 %v2608, 1.0
    %v2617 = vsub.f32 %v2610, 1.0
    %v2618 = vsel %vm2583, %v2576, %v2611
    %v2619 = vsel %vm2584, %v2577, %v2612
    %v2620 = vsel %vm2585, %v2578, %v2613
    %v2621 = vsel %vm2586, %v2579, %v2614
    %v2622 = vsel %vm2587, %v2580, %v2615
    %v2623 = vsel %vm2588, %v2581, %v2616
    %v2624 = vsel %vm2589, %v2582, %v2617
    %2625 = vrot.lane.b32.xlu0 %v1646, 95
    %v2626 = vpop.permute.xlu0 %2625
    %2627 = vrot.lane.b32.xlu0 %v1647, 95
    %v2628 = vpop.permute.xlu0 %2627
    %2629 = vrot.lane.b32.xlu0 %v1648, 95
    %v2630 = vpop.permute.xlu0 %2629
    %2631 = vrot.lane.b32.xlu0 %v1649, 95
    %v2632 = vpop.permute.xlu0 %2631
    %2633 = vrot.lane.b32.xlu0 %v1650, 95
    %v2634 = vpop.permute.xlu0 %2633
    %2635 = vrot.lane.b32.xlu0 %v1651, 95
    %v2636 = vpop.permute.xlu0 %2635
    %2637 = vrot.lane.b32.xlu0 %v1652, 95
    %v2638 = vpop.permute.xlu0 %2637
    %v2646 = vsel %vm1079, %v2618, %v2626
    %v2647 = vsel %vm1079, %v2619, %v2628
    %v2648 = vsel %vm1079, %v2620, %v2630
    %v2649 = vsel %vm1079, %v2621, %v2632
    %v2650 = vsel %vm1079, %v2622, %v2634
    %v2651 = vsel %vm1079, %v2623, %v2636
    %v2652 = vsel %vm1079, %v2624, %v2638
    %v2653 = vld [vmem:[#allocation5] sm:$0xff]
    %v2654 = vld [vmem:[#allocation5 + $0x8] sm:$0xff]
    %v2655 = vld [vmem:[#allocation5 + $0x10] sm:$0xff]
    %v2656 = vld [vmem:[#allocation5 + $0x18] sm:$0xff]
    %v2657 = vld [vmem:[#allocation5 + $0x20] sm:$0x1]
    %v2658 = vld [vmem:[%s1092] sm:$0xff]
    %v2659 = vld [vmem:[%s1092 + $0x8] sm:$0xff]
    %v2660 = vld [vmem:[%s1092 + $0x10] sm:$0xff]
    %v2661 = vld [vmem:[%s1092 + $0x18] sm:$0xff]
    %v2662 = vld [vmem:[%s1092 + $0x20] sm:$0x1]
    %v2670 = vrot.slane %v2646, 1
    %v2671 = vrot.slane %v2647, 1
    %v2672 = vsel %vm97, %v2670, %v2671
    %v2673 = vrot.slane %v2648, 1
    %v2674 = vsel %vm97, %v2671, %v2673
    %v2675 = vrot.slane %v2649, 1
    %v2676 = vsel %vm97, %v2673, %v2675
    %v2677 = vrot.slane %v2650, 1
    %v2678 = vsel %vm97, %v2675, %v2677
    %v2679 = vrot.slane %v2651, 1
    %v2680 = vsel %vm97, %v2677, %v2679
    %v2681 = vrot.slane %v2652, 1
    %v2682 = vsel %vm97, %v2679, %v2681
    %v2683 = vsel %vm1118, %v2672, 0
    %v2685 = vsel %vm1118, %v2674, 0
    %v2687 = vsel %vm1118, %v2676, 0
    %v2689 = vsel %vm1118, %v2678, 0
    %v2691 = vsel %vm1118, %v2680, 0
    %v2693 = vsel %vm1118, %v2682, 0
    %v2695 = vsel %vm1118, %v2681, 0
    %v2698 = vsel %vm130, %v2662, 0
    %2700 = vmatpush.msra.mxu0 0.0
    %2701 = vmatpush.msra.mxu0 0.0
    %2702 = vmatpush.msra.mxu0 0.0
    %2703 = vmatpush.msra.mxu0 0.0
    %2704 = vmatpush.msra.mxu0 0.0
    %2705 = vmatpush.msra.mxu0 0.0
    %2706 = vmatpush.msra.mxu0 0.0
    %2707 = vmatpush.msra.mxu0 0.0
    %2708 = vmatpush.msra.mxu0 0.0
    %2709 = vmatpush.msra.mxu0 0.0
    %2710 = vmatpush.msra.mxu0 0.0
    %2711 = vmatpush.msra.mxu0 %v2698
    %2712 = vmatpush.msra.mxu0 %v2661
    %2713 = vmatpush.msra.mxu0 %v2660
    %2714 = vmatpush.msra.mxu0 %v2659
    %2715 = vmatpush.msra.mxu0 %v2658
    %2716 = vmatmul.f32.gmra.mxu0 %v2683
    %v2717 = vpop.f32.mrf.mxu0
    %v2718 = vadd.f32 0.0, %v2717
    %2719 = vmatmul.f32.gmra.mxu0 %v2685
    %v2720 = vpop.f32.mrf.mxu0
    %v2721 = vadd.f32 0.0, %v2720
    %2722 = vmatmul.f32.gmra.mxu0 %v2687
    %v2723 = vpop.f32.mrf.mxu0
    %v2724 = vadd.f32 0.0, %v2723
    %2725 = vmatmul.f32.gmra.mxu0 %v2689
    %v2726 = vpop.f32.mrf.mxu0
    %v2727 = vadd.f32 0.0, %v2726
    %2728 = vmatmul.f32.gmra.mxu0 %v2691
    %v2729 = vpop.f32.mrf.mxu0
    %v2730 = vadd.f32 0.0, %v2729
    %2731 = vmatmul.f32.gmra.mxu0 %v2693
    %v2732 = vpop.f32.mrf.mxu0
    %v2733 = vadd.f32 0.0, %v2732
    %2734 = vmatmul.f32.gmra.mxu0 %v2695
    %v2735 = vpop.f32.mrf.mxu0
    %v2736 = vadd.f32 0.0, %v2735
    %2737 = vdwg.mxu0
    %v2738 = vsel %vm1118, %v2646, 0
    %v2740 = vsel %vm1118, %v2647, 0
    %v2742 = vsel %vm1118, %v2648, 0
    %v2744 = vsel %vm1118, %v2649, 0
    %v2746 = vsel %vm1118, %v2650, 0
    %v2748 = vsel %vm1118, %v2651, 0
    %v2750 = vsel %vm1118, %v2652, 0
    %v2753 = vsel %vm130, %v2657, 0
    %2755 = vmatpush.msra.mxu0 0.0
    %2756 = vmatpush.msra.mxu0 0.0
    %2757 = vmatpush.msra.mxu0 0.0
    %2758 = vmatpush.msra.mxu0 0.0
    %2759 = vmatpush.msra.mxu0 0.0
    %2760 = vmatpush.msra.mxu0 0.0
    %2761 = vmatpush.msra.mxu0 0.0
    %2762 = vmatpush.msra.mxu0 0.0
    %2763 = vmatpush.msra.mxu0 0.0
    %2764 = vmatpush.msra.mxu0 0.0
    %2765 = vmatpush.msra.mxu0 0.0
    %2766 = vmatpush.msra.mxu0 %v2753
    %2767 = vmatpush.msra.mxu0 %v2656
    %2768 = vmatpush.msra.mxu0 %v2655
    %2769 = vmatpush.msra.mxu0 %v2654
    %2770 = vmatpush.msra.mxu0 %v2653
    %2771 = vmatmul.f32.gmra.mxu0 %v2738
    %v2772 = vpop.f32.mrf.mxu0
    %v2773 = vadd.f32 %v2718, %v2772
    %2774 = vmatmul.f32.gmra.mxu0 %v2740
    %v2775 = vpop.f32.mrf.mxu0
    %v2776 = vadd.f32 %v2721, %v2775
    %2777 = vmatmul.f32.gmra.mxu0 %v2742
    %v2778 = vpop.f32.mrf.mxu0
    %v2779 = vadd.f32 %v2724, %v2778
    %2780 = vmatmul.f32.gmra.mxu0 %v2744
    %v2781 = vpop.f32.mrf.mxu0
    %v2782 = vadd.f32 %v2727, %v2781
    %2783 = vmatmul.f32.gmra.mxu0 %v2746
    %v2784 = vpop.f32.mrf.mxu0
    %v2785 = vadd.f32 %v2730, %v2784
    %2786 = vmatmul.f32.gmra.mxu0 %v2748
    %v2787 = vpop.f32.mrf.mxu0
    %v2788 = vadd.f32 %v2733, %v2787
    %2789 = vmatmul.f32.gmra.mxu0 %v2750
    %v2790 = vpop.f32.mrf.mxu0
    %v2791 = vadd.f32 %v2736, %v2790
    %2792 = vdwg.mxu0
    %v2793 = vld [vmem:[%s1229] sm:$0xff]
    %v2794 = vld [vmem:[%s1229 + $0x8] sm:$0xff]
    %v2795 = vld [vmem:[%s1229 + $0x10] sm:$0xff]
    %v2796 = vld [vmem:[%s1229 + $0x18] sm:$0xff]
    %v2797 = vld [vmem:[%s1229 + $0x20] sm:$0x1]
    %v2798 = vrot.slane %v2646, 2
    %v2799 = vrot.slane %v2647, 2
    %v2800 = vsel %vm245, %v2798, %v2799
    %v2801 = vrot.slane %v2648, 2
    %v2802 = vsel %vm245, %v2799, %v2801
    %v2803 = vrot.slane %v2649, 2
    %v2804 = vsel %vm245, %v2801, %v2803
    %v2805 = vrot.slane %v2650, 2
    %v2806 = vsel %vm245, %v2803, %v2805
    %v2807 = vrot.slane %v2651, 2
    %v2808 = vsel %vm245, %v2805, %v2807
    %v2809 = vrot.slane %v2652, 2
    %v2810 = vsel %vm245, %v2807, %v2809
    %v2811 = vsel %vm1118, %v2800, 0
    %v2813 = vsel %vm1118, %v2802, 0
    %v2815 = vsel %vm1118, %v2804, 0
    %v2817 = vsel %vm1118, %v2806, 0
    %v2819 = vsel %vm1118, %v2808, 0
    %v2821 = vsel %vm1118, %v2810, 0
    %v2823 = vsel %vm1118, %v2809, 0
    %v2826 = vsel %vm130, %v2797, 0
    %2828 = vmatpush.msra.mxu0 0.0
    %2829 = vmatpush.msra.mxu0 0.0
    %2830 = vmatpush.msra.mxu0 0.0
    %2831 = vmatpush.msra.mxu0 0.0
    %2832 = vmatpush.msra.mxu0 0.0
    %2833 = vmatpush.msra.mxu0 0.0
    %2834 = vmatpush.msra.mxu0 0.0
    %2835 = vmatpush.msra.mxu0 0.0
    %2836 = vmatpush.msra.mxu0 0.0
    %2837 = vmatpush.msra.mxu0 0.0
    %2838 = vmatpush.msra.mxu0 0.0
    %2839 = vmatpush.msra.mxu0 %v2826
    %2840 = vmatpush.msra.mxu0 %v2796
    %2841 = vmatpush.msra.mxu0 %v2795
    %2842 = vmatpush.msra.mxu0 %v2794
    %2843 = vmatpush.msra.mxu0 %v2793
    %2844 = vmatmul.f32.gmra.mxu0 %v2811
    %v2845 = vpop.f32.mrf.mxu0
    %v2846 = vadd.f32 0.0, %v2845
    %2847 = vmatmul.f32.gmra.mxu0 %v2813
    %v2848 = vpop.f32.mrf.mxu0
    %v2849 = vadd.f32 0.0, %v2848
    %2850 = vmatmul.f32.gmra.mxu0 %v2815
    %v2851 = vpop.f32.mrf.mxu0
    %v2852 = vadd.f32 0.0, %v2851
    %2853 = vmatmul.f32.gmra.mxu0 %v2817
    %v2854 = vpop.f32.mrf.mxu0
    %v2855 = vadd.f32 0.0, %v2854
    %2856 = vmatmul.f32.gmra.mxu0 %v2819
    %v2857 = vpop.f32.mrf.mxu0
    %v2858 = vadd.f32 0.0, %v2857
    %2859 = vmatmul.f32.gmra.mxu0 %v2821
    %v2860 = vpop.f32.mrf.mxu0
    %v2861 = vadd.f32 0.0, %v2860
    %2862 = vmatmul.f32.gmra.mxu0 %v2823
    %v2863 = vpop.f32.mrf.mxu0
    %v2864 = vadd.f32 0.0, %v2863
    %2865 = vdwg.mxu0
    %v2866 = vadd.f32 %v2773, %v2846
    %v2867 = vadd.f32 %v2776, %v2849
    %v2868 = vadd.f32 %v2779, %v2852
    %v2869 = vadd.f32 %v2782, %v2855
    %v2870 = vadd.f32 %v2785, %v2858
    %v2871 = vadd.f32 %v2788, %v2861
    %v2872 = vadd.f32 %v2791, %v2864
    %v2873 = vld [vmem:[%s1310] sm:$0xff]
    %v2874 = vld [vmem:[%s1310 + $0x8] sm:$0xff]
    %v2875 = vld [vmem:[%s1310 + $0x10] sm:$0xff]
    %v2876 = vld [vmem:[%s1310 + $0x18] sm:$0xff]
    %v2877 = vld [vmem:[%s1310 + $0x20] sm:$0x1]
    %v2878 = vrot.slane %v2646, 3
    %v2879 = vrot.slane %v2647, 3
    %v2880 = vsel %vm339, %v2878, %v2879
    %v2881 = vrot.slane %v2648, 3
    %v2882 = vsel %vm339, %v2879, %v2881
    %v2883 = vrot.slane %v2649, 3
    %v2884 = vsel %vm339, %v2881, %v2883
    %v2885 = vrot.slane %v2650, 3
    %v2886 = vsel %vm339, %v2883, %v2885
    %v2887 = vrot.slane %v2651, 3
    %v2888 = vsel %vm339, %v2885, %v2887
    %v2889 = vrot.slane %v2652, 3
    %v2890 = vsel %vm339, %v2887, %v2889
    %v2891 = vsel %vm1118, %v2880, 0
    %v2893 = vsel %vm1118, %v2882, 0
    %v2895 = vsel %vm1118, %v2884, 0
    %v2897 = vsel %vm1118, %v2886, 0
    %v2899 = vsel %vm1118, %v2888, 0
    %v2901 = vsel %vm1118, %v2890, 0
    %v2903 = vsel %vm1118, %v2889, 0
    %v2906 = vsel %vm130, %v2877, 0
    %2908 = vmatpush.msra.mxu0 0.0
    %2909 = vmatpush.msra.mxu0 0.0
    %2910 = vmatpush.msra.mxu0 0.0
    %2911 = vmatpush.msra.mxu0 0.0
    %2912 = vmatpush.msra.mxu0 0.0
    %2913 = vmatpush.msra.mxu0 0.0
    %2914 = vmatpush.msra.mxu0 0.0
    %2915 = vmatpush.msra.mxu0 0.0
    %2916 = vmatpush.msra.mxu0 0.0
    %2917 = vmatpush.msra.mxu0 0.0
    %2918 = vmatpush.msra.mxu0 0.0
    %2919 = vmatpush.msra.mxu0 %v2906
    %2920 = vmatpush.msra.mxu0 %v2876
    %2921 = vmatpush.msra.mxu0 %v2875
    %2922 = vmatpush.msra.mxu0 %v2874
    %2923 = vmatpush.msra.mxu0 %v2873
    %2924 = vmatmul.f32.gmra.mxu0 %v2891
    %v2925 = vpop.f32.mrf.mxu0
    %v2926 = vadd.f32 0.0, %v2925
    %2927 = vmatmul.f32.gmra.mxu0 %v2893
    %v2928 = vpop.f32.mrf.mxu0
    %v2929 = vadd.f32 0.0, %v2928
    %2930 = vmatmul.f32.gmra.mxu0 %v2895
    %v2931 = vpop.f32.mrf.mxu0
    %v2932 = vadd.f32 0.0, %v2931
    %2933 = vmatmul.f32.gmra.mxu0 %v2897
    %v2934 = vpop.f32.mrf.mxu0
    %v2935 = vadd.f32 0.0, %v2934
    %2936 = vmatmul.f32.gmra.mxu0 %v2899
    %v2937 = vpop.f32.mrf.mxu0
    %v2938 = vadd.f32 0.0, %v2937
    %2939 = vmatmul.f32.gmra.mxu0 %v2901
    %v2940 = vpop.f32.mrf.mxu0
    %v2941 = vadd.f32 0.0, %v2940
    %2942 = vmatmul.f32.gmra.mxu0 %v2903
    %v2943 = vpop.f32.mrf.mxu0
    %v2944 = vadd.f32 0.0, %v2943
    %2945 = vdwg.mxu0
    %v2946 = vadd.f32 %v2866, %v2926
    %v2947 = vadd.f32 %v2867, %v2929
    %v2948 = vadd.f32 %v2868, %v2932
    %v2949 = vadd.f32 %v2869, %v2935
    %v2950 = vadd.f32 %v2870, %v2938
    %v2951 = vadd.f32 %v2871, %v2941
    %v2952 = vadd.f32 %v2872, %v2944
    %v2953 = vld [vmem:[%s1391] sm:$0xff]
    %v2954 = vld [vmem:[%s1391 + $0x8] sm:$0xff]
    %v2955 = vld [vmem:[%s1391 + $0x10] sm:$0xff]
    %v2956 = vld [vmem:[%s1391 + $0x18] sm:$0xff]
    %v2957 = vld [vmem:[%s1391 + $0x20] sm:$0x1]
    %v2958 = vrot.slane %v2646, 4
    %v2959 = vrot.slane %v2647, 4
    %v2960 = vsel %vm433, %v2958, %v2959
    %v2961 = vrot.slane %v2648, 4
    %v2962 = vsel %vm433, %v2959, %v2961
    %v2963 = vrot.slane %v2649, 4
    %v2964 = vsel %vm433, %v2961, %v2963
    %v2965 = vrot.slane %v2650, 4
    %v2966 = vsel %vm433, %v2963, %v2965
    %v2967 = vrot.slane %v2651, 4
    %v2968 = vsel %vm433, %v2965, %v2967
    %v2969 = vrot.slane %v2652, 4
    %v2970 = vsel %vm433, %v2967, %v2969
    %v2971 = vsel %vm1118, %v2960, 0
    %v2973 = vsel %vm1118, %v2962, 0
    %v2975 = vsel %vm1118, %v2964, 0
    %v2977 = vsel %vm1118, %v2966, 0
    %v2979 = vsel %vm1118, %v2968, 0
    %v2981 = vsel %vm1118, %v2970, 0
    %v2983 = vsel %vm1118, %v2969, 0
    %v2986 = vsel %vm130, %v2957, 0
    %2988 = vmatpush.msra.mxu0 0.0
    %2989 = vmatpush.msra.mxu0 0.0
    %2990 = vmatpush.msra.mxu0 0.0
    %2991 = vmatpush.msra.mxu0 0.0
    %2992 = vmatpush.msra.mxu0 0.0
    %2993 = vmatpush.msra.mxu0 0.0
    %2994 = vmatpush.msra.mxu0 0.0
    %2995 = vmatpush.msra.mxu0 0.0
    %2996 = vmatpush.msra.mxu0 0.0
    %2997 = vmatpush.msra.mxu0 0.0
    %2998 = vmatpush.msra.mxu0 0.0
    %2999 = vmatpush.msra.mxu0 %v2986
    %3000 = vmatpush.msra.mxu0 %v2956
    %3001 = vmatpush.msra.mxu0 %v2955
    %3002 = vmatpush.msra.mxu0 %v2954
    %3003 = vmatpush.msra.mxu0 %v2953
    %3004 = vmatmul.f32.gmra.mxu0 %v2971
    %v3005 = vpop.f32.mrf.mxu0
    %v3006 = vadd.f32 0.0, %v3005
    %3007 = vmatmul.f32.gmra.mxu0 %v2973
    %v3008 = vpop.f32.mrf.mxu0
    %v3009 = vadd.f32 0.0, %v3008
    %3010 = vmatmul.f32.gmra.mxu0 %v2975
    %v3011 = vpop.f32.mrf.mxu0
    %v3012 = vadd.f32 0.0, %v3011
    %3013 = vmatmul.f32.gmra.mxu0 %v2977
    %v3014 = vpop.f32.mrf.mxu0
    %v3015 = vadd.f32 0.0, %v3014
    %3016 = vmatmul.f32.gmra.mxu0 %v2979
    %v3017 = vpop.f32.mrf.mxu0
    %v3018 = vadd.f32 0.0, %v3017
    %3019 = vmatmul.f32.gmra.mxu0 %v2981
    %v3020 = vpop.f32.mrf.mxu0
    %v3021 = vadd.f32 0.0, %v3020
    %3022 = vmatmul.f32.gmra.mxu0 %v2983
    %v3023 = vpop.f32.mrf.mxu0
    %v3024 = vadd.f32 0.0, %v3023
    %3025 = vdwg.mxu0
    %v3026 = vadd.f32 %v2946, %v3006
    %v3027 = vadd.f32 %v2947, %v3009
    %v3028 = vadd.f32 %v2948, %v3012
    %v3029 = vadd.f32 %v2949, %v3015
    %v3030 = vadd.f32 %v2950, %v3018
    %v3031 = vadd.f32 %v2951, %v3021
    %v3032 = vadd.f32 %v2952, %v3024
    %v3033 = vadd.f32 %v3026, %v1472
    %v3034 = vadd.f32 %v3027, %v1472
    %v3035 = vadd.f32 %v3028, %v1472
    %v3036 = vadd.f32 %v3029, %v1472
    %v3037 = vadd.f32 %v3030, %v1472
    %v3038 = vadd.f32 %v3031, %v1472
    %v3039 = vadd.f32 %v3032, %v1472
    %vm3040 = vcmp.gt.f32.partialorder %v3033, 0.0
    %vm3041 = vcmp.gt.f32.partialorder %v3034, 0.0
    %vm3042 = vcmp.gt.f32.partialorder %v3035, 0.0
    %vm3043 = vcmp.gt.f32.partialorder %v3036, 0.0
    %vm3044 = vcmp.gt.f32.partialorder %v3037, 0.0
    %vm3045 = vcmp.gt.f32.partialorder %v3038, 0.0
    %vm3046 = vcmp.gt.f32.partialorder %v3039, 0.0
    %v3047 = vmin.f32 %v3033, 0.0
    %v3048 = vmin.f32 %v3034, 0.0
    %v3049 = vmin.f32 %v3035, 0.0
    %v3050 = vmin.f32 %v3036, 0.0
    %v3051 = vmin.f32 %v3037, 0.0
    %v3052 = vmin.f32 %v3038, 0.0
    %v3053 = vmin.f32 %v3039, 0.0
    %v3054 = vmul.f32 %v3047, 1.442695
    %v3055 = vpow.pop %v3054
    %v3056 = vmul.f32 %v3048, 1.442695
    %v3057 = vpow.pop %v3056
    %v3058 = vmul.f32 %v3049, 1.442695
    %v3059 = vpow.pop %v3058
    %v3060 = vmul.f32 %v3050, 1.442695
    %v3061 = vpow.pop %v3060
    %v3062 = vmul.f32 %v3051, 1.442695
    %v3063 = vpow.pop %v3062
    %v3064 = vmul.f32 %v3052, 1.442695
    %v3065 = vpow.pop %v3064
    %v3066 = vmul.f32 %v3053, 1.442695
    %v3067 = vpow.pop %v3066
    %v3068 = vsub.f32 %v3055, 1.0
    %v3069 = vsub.f32 %v3057, 1.0
    %v3070 = vsub.f32 %v3059, 1.0
    %v3071 = vsub.f32 %v3061, 1.0
    %v3072 = vsub.f32 %v3063, 1.0
    %v3073 = vsub.f32 %v3065, 1.0
    %v3074 = vsub.f32 %v3067, 1.0
    %v3075 = vsel %vm3040, %v3033, %v3068
    %v3076 = vsel %vm3041, %v3034, %v3069
    %v3077 = vsel %vm3042, %v3035, %v3070
    %v3078 = vsel %vm3043, %v3036, %v3071
    %v3079 = vsel %vm3044, %v3037, %v3072
    %v3080 = vsel %vm3045, %v3038, %v3073
    %v3081 = vsel %vm3046, %v3039, %v3074
    %3082 = vst.msk [vmem:[#allocation2] sm:$0xff] %vm1522, %v3075
    %3083 = vst.msk [vmem:[#allocation2 + $0x8] sm:$0xff] %vm1522, %v3076
    %3084 = vst.msk [vmem:[#allocation2 + $0x10] sm:$0xff] %vm1522, %v3077
    %3085 = vst.msk [vmem:[#allocation2 + $0x18] sm:$0xff] %vm1522, %v3078
    %3086 = vst.msk [vmem:[#allocation2 + $0x20] sm:$0xff] %vm1522, %v3079
    %3087 = vst.msk [vmem:[#allocation2 + $0x28] sm:$0xff] %vm1522, %v3080
    %3088 = vst.msk [vmem:[#allocation2 + $0x30] sm:$0xf] %vm1529, %v3081
    %v3089 = vld [vmem:[#allocation2] ss:$2 sm:$0xff]
    %v3090 = vld [vmem:[%s1532] ss:$2 sm:$0xff]
    %v3091 = vld [vmem:[%s1534] ss:$2 sm:$0xff]
    %v3092 = vld [vmem:[%s1536] ss:$2 sm:$0x3]
    %v3093 = vld [vmem:[%s1538] ss:$2 sm:$0xff]
    %v3094 = vld [vmem:[%s1540] ss:$2 sm:$0xff]
    %v3095 = vld [vmem:[%s1542] ss:$2 sm:$0xff]
    %v3096 = vld [vmem:[%s1544] ss:$2 sm:$0x3]
    %v3097 = vmax.f32 %v3089, %v3093
    %v3098 = vmax.f32 %v3090, %v3094
    %v3099 = vmax.f32 %v3091, %v3095
    %v3100 = vmax.f32 %v3092, %v3096
    %v3102 = vsel %vm1522, %v3097, 0
    %v3105 = vsel %vm1522, %v3098, 0
    %v3108 = vsel %vm1522, %v3099, 0
    %v3111 = vsel %vm1522, %v3100, 0
    %3113 = vmatpush.msra.mxu0 0.0
    %3114 = vmatpush.msra.mxu0 0.0
    %3115 = vmatpush.msra.mxu0 0.0
    %3116 = vmatpush.msra.mxu0 0.0
    %3117 = vmatpush.msra.mxu0 0.0
    %3118 = vmatpush.msra.mxu0 0.0
    %3119 = vmatpush.msra.mxu0 0.0
    %3120 = vmatpush.msra.mxu0 0.0
    %3121 = vmatpush.msra.mxu0 %v61
    %3122 = vmatpush.msra.mxu0 %v60
    %3123 = vmatpush.msra.mxu0 %v59
    %3124 = vmatpush.msra.mxu0 %v58
    %3125 = vmatpush.msra.mxu0 %v57
    %3126 = vmatpush.msra.mxu0 %v56
    %3127 = vmatpush.msra.mxu0 %v55
    %3128 = vmatpush.msra.mxu0 %v54
    %3129 = vmatmul.f32.gmra.mxu0 %v3102
    %v3130 = vpop.f32.mrf.mxu0
    %v3131 = vadd.f32 %v1550, %v3130
    %3132 = vmatmul.f32.gmra.mxu0 %v3105
    %v3133 = vpop.f32.mrf.mxu0
    %v3134 = vadd.f32 %v1550, %v3133
    %3135 = vmatmul.f32.gmra.mxu0 %v3108
    %v3136 = vpop.f32.mrf.mxu0
    %v3137 = vadd.f32 %v1550, %v3136
    %3138 = vmatmul.f32.gmra.mxu0 %v3111
    %v3139 = vpop.f32.mrf.mxu0
    %v3140 = vadd.f32 %v1550, %v3139
    %3141 = vdwg.mxu0
    %vm3142 = vcmp.gt.f32.partialorder %v3131, 0.0
    %vm3143 = vcmp.gt.f32.partialorder %v3134, 0.0
    %vm3144 = vcmp.gt.f32.partialorder %v3137, 0.0
    %vm3145 = vcmp.gt.f32.partialorder %v3140, 0.0
    %v3146 = vmin.f32 %v3131, 0.0
    %v3147 = vmin.f32 %v3134, 0.0
    %v3148 = vmin.f32 %v3137, 0.0
    %v3149 = vmin.f32 %v3140, 0.0
    %v3150 = vmul.f32 %v3146, 1.442695
    %v3151 = vpow.pop %v3150
    %v3152 = vmul.f32 %v3147, 1.442695
    %v3153 = vpow.pop %v3152
    %v3154 = vmul.f32 %v3148, 1.442695
    %v3155 = vpow.pop %v3154
    %v3156 = vmul.f32 %v3149, 1.442695
    %v3157 = vpow.pop %v3156
    %v3158 = vsub.f32 %v3151, 1.0
    %v3159 = vsub.f32 %v3153, 1.0
    %v3160 = vsub.f32 %v3155, 1.0
    %v3161 = vsub.f32 %v3157, 1.0
    %v3162 = vsel %vm3142, %v3131, %v3158
    %v3163 = vsel %vm3143, %v3134, %v3159
    %v3164 = vsel %vm3144, %v3137, %v3160
    %v3165 = vsel %vm3145, %v3140, %v3161
    %3166 = vst.msk [vmem:[#allocation3] sm:$0xff] %vm1616, %v3162
    %3167 = vst.msk [vmem:[#allocation3 + $0x8] sm:$0xff] %vm1616, %v3163
    %3168 = vst.msk [vmem:[#allocation3 + $0x10] sm:$0xff] %vm1616, %v3164
    %3169 = vst.msk [vmem:[#allocation3 + $0x18] sm:$0x3] %vm1620, %v3165
    %v3170 = vld [vmem:[#allocation3] ss:$2 sm:$0xff]
    %v3171 = vld [vmem:[%s1623] ss:$2 sm:$0x1f]
    %v3172 = vld [vmem:[%s1625] ss:$2 sm:$0xff]
    %v3173 = vld [vmem:[%s1627] ss:$2 sm:$0x1f]
    %v3174 = vmax.f32 %v3170, %v3172
    %v3175 = vmax.f32 %v3171, %v3173
    %3178 = vrot.lane.b32.xlu0 %v3174, 1
    %v3179 = vpop.permute.xlu0 %3178
    %3180 = vrot.lane.b32.xlu0 %v3175, 1
    %v3181 = vpop.permute.xlu0 %3180
    %vm3184 = vcmask 15368
    %3185 = vst.msk [vmem:[#allocation4] sm:$0xff] %vm3184, %v3179
    %vm3186 = vcmask 12296
    %3187 = vst.msk [vmem:[#allocation4 + $0x8] sm:$0x1f] %vm3186, %v3181
    %3188 = vst.msk [vmem:[#allocation4 + $0xd] sm:$0xff] %vm3184, %v3174
    %3189 = vst.msk [vmem:[#allocation4 + $0x15] sm:$0x1f] %vm3186, %v3175
    %v3190 = vld [vmem:[#allocation4] sm:$0xff]
    %v3191 = vld [vmem:[#allocation4 + $0x8] sm:$0xff]
    %v3192 = vld [vmem:[#allocation4 + $0x10] sm:$0xff]
    %v3193 = vld [vmem:[#allocation4 + $0x18] sm:$0x3]
    %v3194 = vld [vmem:[%s7] sm:$0xff]
    %v3195 = vld [vmem:[%s7 + $0x8] sm:$0xff]
    %v3196 = vld [vmem:[%s7 + $0x10] sm:$0xff]
    %v3197 = vld [vmem:[%s7 + $0x18] sm:$0xff]
    %v3198 = vld [vmem:[%s7 + $0x20] sm:$0xff]
    %v3199 = vld [vmem:[%s7 + $0x28] sm:$0xff]
    %v3200 = vld [vmem:[%s7 + $0x30] sm:$0xff]
    %v3201 = vld [vmem:[%s7 + $0x38] sm:$0xff]
    %s3202 = scalar_lea.vmem %s7, 64
    %v3203 = vld [vmem:[%s3202] sm:$0xff]
    %v3204 = vld [vmem:[%s3202 + $0x8] sm:$0xff]
    %v3205 = vld [vmem:[%s3202 + $0x10] sm:$0xff]
    %v3206 = vld [vmem:[%s3202 + $0x18] sm:$0xff]
    %v3207 = vld [vmem:[%s3202 + $0x20] sm:$0xff]
    %v3208 = vld [vmem:[%s3202 + $0x28] sm:$0xff]
    %v3209 = vld [vmem:[%s3202 + $0x30] sm:$0xff]
    %v3210 = vld [vmem:[%s3202 + $0x38] sm:$0xff]
    %s3211 = scalar_lea.vmem %s7, 128
    %v3212 = vld [vmem:[%s3211] sm:$0xff]
    %v3213 = vld [vmem:[%s3211 + $0x8] sm:$0xff]
    %v3214 = vld [vmem:[%s3211 + $0x10] sm:$0xff]
    %v3215 = vld [vmem:[%s3211 + $0x18] sm:$0xff]
    %s3216 = scalar_lea.vmem %s7, 192
    %v3217 = vld [vmem:[%s3216] sm:$0xff]
    %3219 = vset.pattern.permute.xlu0 0
    %3220 = vperm.xlu0 %3219, %v46
    %v3221 = vpop.permute.xlu0 %3220
    %3224 = vset.pattern.permute.xlu0 0
    %3225 = vperm.xlu0 %3224, %v47
    %v3226 = vpop.permute.xlu0 %3225
    %3229 = vset.pattern.permute.xlu0 0
    %3230 = vperm.xlu0 %3229, %v48
    %v3231 = vpop.permute.xlu0 %3230
    %3234 = vset.pattern.permute.xlu0 0
    %3235 = vperm.xlu0 %3234, %v49
    %v3236 = vpop.permute.xlu0 %3235
    %3239 = vset.pattern.permute.xlu0 0
    %3240 = vperm.xlu0 %3239, %v50
    %v3241 = vpop.permute.xlu0 %3240
    %3244 = vset.pattern.permute.xlu0 0
    %3245 = vperm.xlu0 %3244, %v51
    %v3246 = vpop.permute.xlu0 %3245
    %3249 = vset.pattern.permute.xlu0 0
    %3250 = vperm.xlu0 %3249, %v52
    %v3251 = vpop.permute.xlu0 %3250
    %3254 = vset.pattern.permute.xlu0 0
    %3255 = vperm.xlu0 %3254, %v53
    %v3256 = vpop.permute.xlu0 %3255
    %vm3258 = vcmask 211968
    %v3260 = vsel %vm3258, %v3194, 0
    %v3263 = vsel %vm3258, %v3195, 0
    %v3266 = vsel %vm3258, %v3196, 0
    %v3269 = vsel %vm3258, %v3197, 0
    %v3272 = vsel %vm3258, %v3198, 0
    %v3275 = vsel %vm3258, %v3199, 0
    %v3278 = vsel %vm3258, %v3200, 0
    %v3281 = vsel %vm3258, %v3201, 0
    %vm3283 = vcmask 1041408
    %v3285 = vsel %vm3283, %v3193, 0
    %3287 = vmatpush.msra.mxu0 0.0
    %3288 = vmatpush.msra.mxu0 0.0
    %3289 = vmatpush.msra.mxu0 0.0
    %3290 = vmatpush.msra.mxu0 0.0
    %3291 = vmatpush.msra.mxu0 0.0
    %3292 = vmatpush.msra.mxu0 0.0
    %3293 = vmatpush.msra.mxu0 0.0
    %3294 = vmatpush.msra.mxu0 0.0
    %3295 = vmatpush.msra.mxu0 0.0
    %3296 = vmatpush.msra.mxu0 0.0
    %3297 = vmatpush.msra.mxu0 0.0
    %3298 = vmatpush.msra.mxu0 0.0
    %3299 = vmatpush.msra.mxu0 %v3285
    %3300 = vmatpush.msra.mxu0 %v3192
    %3301 = vmatpush.msra.mxu0 %v3191
    %3302 = vmatpush.msra.mxu0 %v3190
    %3303 = vmatmul.f32.gmra.mxu0 %v3260
    %v3304 = vpop.f32.mrf.mxu0
    %v3305 = vadd.f32 %v3221, %v3304
    %3306 = vmatmul.f32.gmra.mxu0 %v3263
    %v3307 = vpop.f32.mrf.mxu0
    %v3308 = vadd.f32 %v3226, %v3307
    %3309 = vmatmul.f32.gmra.mxu0 %v3266
    %v3310 = vpop.f32.mrf.mxu0
    %v3311 = vadd.f32 %v3231, %v3310
    %3312 = vmatmul.f32.gmra.mxu0 %v3269
    %v3313 = vpop.f32.mrf.mxu0
    %v3314 = vadd.f32 %v3236, %v3313
    %3315 = vmatmul.f32.gmra.mxu0 %v3272
    %v3316 = vpop.f32.mrf.mxu0
    %v3317 = vadd.f32 %v3241, %v3316
    %3318 = vmatmul.f32.gmra.mxu0 %v3275
    %v3319 = vpop.f32.mrf.mxu0
    %v3320 = vadd.f32 %v3246, %v3319
    %3321 = vmatmul.f32.gmra.mxu0 %v3278
    %v3322 = vpop.f32.mrf.mxu0
    %v3323 = vadd.f32 %v3251, %v3322
    %3324 = vmatmul.f32.gmra.mxu0 %v3281
    %v3325 = vpop.f32.mrf.mxu0
    %v3326 = vadd.f32 %v3256, %v3325
    %3327 = vdwg.mxu0
    %vm3328 = vcmp.gt.f32.partialorder %v3305, 0.0
    %vm3329 = vcmp.gt.f32.partialorder %v3308, 0.0
    %vm3330 = vcmp.gt.f32.partialorder %v3311, 0.0
    %vm3331 = vcmp.gt.f32.partialorder %v3314, 0.0
    %vm3332 = vcmp.gt.f32.partialorder %v3317, 0.0
    %vm3333 = vcmp.gt.f32.partialorder %v3320, 0.0
    %vm3334 = vcmp.gt.f32.partialorder %v3323, 0.0
    %vm3335 = vcmp.gt.f32.partialorder %v3326, 0.0
    %v3336 = vmin.f32 %v3305, 0.0
    %v3337 = vmin.f32 %v3308, 0.0
    %v3338 = vmin.f32 %v3311, 0.0
    %v3339 = vmin.f32 %v3314, 0.0
    %v3340 = vmin.f32 %v3317, 0.0
    %v3341 = vmin.f32 %v3320, 0.0
    %v3342 = vmin.f32 %v3323, 0.0
    %v3343 = vmin.f32 %v3326, 0.0
    %v3344 = vmul.f32 %v3336, 1.442695
    %v3345 = vpow.pop %v3344
    %v3346 = vmul.f32 %v3337, 1.442695
    %v3347 = vpow.pop %v3346
    %v3348 = vmul.f32 %v3338, 1.442695
    %v3349 = vpow.pop %v3348
    %v3350 = vmul.f32 %v3339, 1.442695
    %v3351 = vpow.pop %v3350
    %v3352 = vmul.f32 %v3340, 1.442695
    %v3353 = vpow.pop %v3352
    %v3354 = vmul.f32 %v3341, 1.442695
    %v3355 = vpow.pop %v3354
    %v3356 = vmul.f32 %v3342, 1.442695
    %v3357 = vpow.pop %v3356
    %v3358 = vmul.f32 %v3343, 1.442695
    %v3359 = vpow.pop %v3358
    %v3360 = vsub.f32 %v3345, 1.0
    %v3361 = vsub.f32 %v3347, 1.0
    %v3362 = vsub.f32 %v3349, 1.0
    %v3363 = vsub.f32 %v3351, 1.0
    %v3364 = vsub.f32 %v3353, 1.0
    %v3365 = vsub.f32 %v3355, 1.0
    %v3366 = vsub.f32 %v3357, 1.0
    %v3367 = vsub.f32 %v3359, 1.0
    %v3368 = vsel %vm3328, %v3305, %v3360
    %v3369 = vsel %vm3329, %v3308, %v3361
    %v3370 = vsel %vm3330, %v3311, %v3362
    %v3371 = vsel %vm3331, %v3314, %v3363
    %v3372 = vsel %vm3332, %v3317, %v3364
    %v3373 = vsel %vm3333, %v3320, %v3365
    %v3374 = vsel %vm3334, %v3323, %v3366
    %v3375 = vsel %vm3335, %v3326, %v3367
    %3376 = vset.pattern.permute.xlu0 1
    %3377 = vperm.xlu0 %3376, %v46
    %v3378 = vpop.permute.xlu0 %3377
    %3380 = vset.pattern.permute.xlu0 1
    %3381 = vperm.xlu0 %3380, %v47
    %v3382 = vpop.permute.xlu0 %3381
    %3384 = vset.pattern.permute.xlu0 1
    %3385 = vperm.xlu0 %3384, %v48
    %v3386 = vpop.permute.xlu0 %3385
    %3388 = vset.pattern.permute.xlu0 1
    %3389 = vperm.xlu0 %3388, %v49
    %v3390 = vpop.permute.xlu0 %3389
    %3392 = vset.pattern.permute.xlu0 1
    %3393 = vperm.xlu0 %3392, %v50
    %v3394 = vpop.permute.xlu0 %3393
    %3396 = vset.pattern.permute.xlu0 1
    %3397 = vperm.xlu0 %3396, %v51
    %v3398 = vpop.permute.xlu0 %3397
    %3400 = vset.pattern.permute.xlu0 1
    %3401 = vperm.xlu0 %3400, %v52
    %v3402 = vpop.permute.xlu0 %3401
    %3404 = vset.pattern.permute.xlu0 1
    %3405 = vperm.xlu0 %3404, %v53
    %v3406 = vpop.permute.xlu0 %3405
    %v3409 = vsel %vm1522, %v3203, 0
    %v3412 = vsel %vm1522, %v3204, 0
    %v3415 = vsel %vm1522, %v3205, 0
    %v3418 = vsel %vm1522, %v3206, 0
    %v3421 = vsel %vm1522, %v3207, 0
    %v3424 = vsel %vm1522, %v3208, 0
    %v3427 = vsel %vm1522, %v3209, 0
    %v3430 = vsel %vm1522, %v3210, 0
    %3432 = vmatpush.msra.mxu0 0.0
    %3433 = vmatpush.msra.mxu0 0.0
    %3434 = vmatpush.msra.mxu0 0.0
    %3435 = vmatpush.msra.mxu0 0.0
    %3436 = vmatpush.msra.mxu0 0.0
    %3437 = vmatpush.msra.mxu0 0.0
    %3438 = vmatpush.msra.mxu0 0.0
    %3439 = vmatpush.msra.mxu0 0.0
    %3440 = vmatpush.msra.mxu0 %v3375
    %3441 = vmatpush.msra.mxu0 %v3374
    %3442 = vmatpush.msra.mxu0 %v3373
    %3443 = vmatpush.msra.mxu0 %v3372
    %3444 = vmatpush.msra.mxu0 %v3371
    %3445 = vmatpush.msra.mxu0 %v3370
    %3446 = vmatpush.msra.mxu0 %v3369
    %3447 = vmatpush.msra.mxu0 %v3368
    %3448 = vmatmul.f32.gmra.mxu0 %v3409
    %v3449 = vpop.f32.mrf.mxu0
    %v3450 = vadd.f32 %v3378, %v3449
    %3451 = vmatmul.f32.gmra.mxu0 %v3412
    %v3452 = vpop.f32.mrf.mxu0
    %v3453 = vadd.f32 %v3382, %v3452
    %3454 = vmatmul.f32.gmra.mxu0 %v3415
    %v3455 = vpop.f32.mrf.mxu0
    %v3456 = vadd.f32 %v3386, %v3455
    %3457 = vmatmul.f32.gmra.mxu0 %v3418
    %v3458 = vpop.f32.mrf.mxu0
    %v3459 = vadd.f32 %v3390, %v3458
    %3460 = vmatmul.f32.gmra.mxu0 %v3421
    %v3461 = vpop.f32.mrf.mxu0
    %v3462 = vadd.f32 %v3394, %v3461
    %3463 = vmatmul.f32.gmra.mxu0 %v3424
    %v3464 = vpop.f32.mrf.mxu0
    %v3465 = vadd.f32 %v3398, %v3464
    %3466 = vmatmul.f32.gmra.mxu0 %v3427
    %v3467 = vpop.f32.mrf.mxu0
    %v3468 = vadd.f32 %v3402, %v3467
    %3469 = vmatmul.f32.gmra.mxu0 %v3430
    %v3470 = vpop.f32.mrf.mxu0
    %v3471 = vadd.f32 %v3406, %v3470
    %3472 = vdwg.mxu0
    %vm3473 = vcmp.gt.f32.partialorder %v3450, 0.0
    %vm3474 = vcmp.gt.f32.partialorder %v3453, 0.0
    %vm3475 = vcmp.gt.f32.partialorder %v3456, 0.0
    %vm3476 = vcmp.gt.f32.partialorder %v3459, 0.0
    %vm3477 = vcmp.gt.f32.partialorder %v3462, 0.0
    %vm3478 = vcmp.gt.f32.partialorder %v3465, 0.0
    %vm3479 = vcmp.gt.f32.partialorder %v3468, 0.0
    %vm3480 = vcmp.gt.f32.partialorder %v3471, 0.0
    %v3481 = vmin.f32 %v3450, 0.0
    %v3482 = vmin.f32 %v3453, 0.0
    %v3483 = vmin.f32 %v3456, 0.0
    %v3484 = vmin.f32 %v3459, 0.0
    %v3485 = vmin.f32 %v3462, 0.0
    %v3486 = vmin.f32 %v3465, 0.0
    %v3487 = vmin.f32 %v3468, 0.0
    %v3488 = vmin.f32 %v3471, 0.0
    %v3489 = vmul.f32 %v3481, 1.442695
    %v3490 = vpow.pop %v3489
    %v3491 = vmul.f32 %v3482, 1.442695
    %v3492 = vpow.pop %v3491
    %v3493 = vmul.f32 %v3483, 1.442695
    %v3494 = vpow.pop %v3493
    %v3495 = vmul.f32 %v3484, 1.442695
    %v3496 = vpow.pop %v3495
    %v3497 = vmul.f32 %v3485, 1.442695
    %v3498 = vpow.pop %v3497
    %v3499 = vmul.f32 %v3486, 1.442695
    %v3500 = vpow.pop %v3499
    %v3501 = vmul.f32 %v3487, 1.442695
    %v3502 = vpow.pop %v3501
    %v3503 = vmul.f32 %v3488, 1.442695
    %v3504 = vpow.pop %v3503
    %v3505 = vsub.f32 %v3490, 1.0
    %v3506 = vsub.f32 %v3492, 1.0
    %v3507 = vsub.f32 %v3494, 1.0
    %v3508 = vsub.f32 %v3496, 1.0
    %v3509 = vsub.f32 %v3498, 1.0
    %v3510 = vsub.f32 %v3500, 1.0
    %v3511 = vsub.f32 %v3502, 1.0
    %v3512 = vsub.f32 %v3504, 1.0
    %v3513 = vsel %vm3473, %v3450, %v3505
    %v3514 = vsel %vm3474, %v3453, %v3506
    %v3515 = vsel %vm3475, %v3456, %v3507
    %v3516 = vsel %vm3476, %v3459, %v3508
    %v3517 = vsel %vm3477, %v3462, %v3509
    %v3518 = vsel %vm3478, %v3465, %v3510
    %v3519 = vsel %vm3479, %v3468, %v3511
    %v3520 = vsel %vm3480, %v3471, %v3512
    %3521 = vset.pattern.permute.xlu0 2
    %3522 = vperm.xlu0 %3521, %v46
    %v3523 = vpop.permute.xlu0 %3522
    %3525 = vset.pattern.permute.xlu0 2
    %3526 = vperm.xlu0 %3525, %v47
    %v3527 = vpop.permute.xlu0 %3526
    %3529 = vset.pattern.permute.xlu0 2
    %3530 = vperm.xlu0 %3529, %v48
    %v3531 = vpop.permute.xlu0 %3530
    %3533 = vset.pattern.permute.xlu0 2
    %3534 = vperm.xlu0 %3533, %v49
    %v3535 = vpop.permute.xlu0 %3534
    %v3538 = vsel %vm1522, %v3212, 0
    %v3541 = vsel %vm1522, %v3213, 0
    %v3544 = vsel %vm1522, %v3214, 0
    %v3547 = vsel %vm1522, %v3215, 0
    %3549 = vmatpush.msra.mxu0 0.0
    %3550 = vmatpush.msra.mxu0 0.0
    %3551 = vmatpush.msra.mxu0 0.0
    %3552 = vmatpush.msra.mxu0 0.0
    %3553 = vmatpush.msra.mxu0 0.0
    %3554 = vmatpush.msra.mxu0 0.0
    %3555 = vmatpush.msra.mxu0 0.0
    %3556 = vmatpush.msra.mxu0 0.0
    %3557 = vmatpush.msra.mxu0 %v3520
    %3558 = vmatpush.msra.mxu0 %v3519
    %3559 = vmatpush.msra.mxu0 %v3518
    %3560 = vmatpush.msra.mxu0 %v3517
    %3561 = vmatpush.msra.mxu0 %v3516
    %3562 = vmatpush.msra.mxu0 %v3515
    %3563 = vmatpush.msra.mxu0 %v3514
    %3564 = vmatpush.msra.mxu0 %v3513
    %3565 = vmatmul.f32.gmra.mxu0 %v3538
    %v3566 = vpop.f32.mrf.mxu0
    %v3567 = vadd.f32 %v3523, %v3566
    %3568 = vmatmul.f32.gmra.mxu0 %v3541
    %v3569 = vpop.f32.mrf.mxu0
    %v3570 = vadd.f32 %v3527, %v3569
    %3571 = vmatmul.f32.gmra.mxu0 %v3544
    %v3572 = vpop.f32.mrf.mxu0
    %v3573 = vadd.f32 %v3531, %v3572
    %3574 = vmatmul.f32.gmra.mxu0 %v3547
    %v3575 = vpop.f32.mrf.mxu0
    %v3576 = vadd.f32 %v3535, %v3575
    %3577 = vdwg.mxu0
    %vm3578 = vcmp.gt.f32.partialorder %v3567, 0.0
    %vm3579 = vcmp.gt.f32.partialorder %v3570, 0.0
    %vm3580 = vcmp.gt.f32.partialorder %v3573, 0.0
    %vm3581 = vcmp.gt.f32.partialorder %v3576, 0.0
    %v3582 = vmin.f32 %v3567, 0.0
    %v3583 = vmin.f32 %v3570, 0.0
    %v3584 = vmin.f32 %v3573, 0.0
    %v3585 = vmin.f32 %v3576, 0.0
    %v3586 = vmul.f32 %v3582, 1.442695
    %v3587 = vpow.pop %v3586
    %v3588 = vmul.f32 %v3583, 1.442695
    %v3589 = vpow.pop %v3588
    %v3590 = vmul.f32 %v3584, 1.442695
    %v3591 = vpow.pop %v3590
    %v3592 = vmul.f32 %v3585, 1.442695
    %v3593 = vpow.pop %v3592
    %v3594 = vsub.f32 %v3587, 1.0
    %v3595 = vsub.f32 %v3589, 1.0
    %v3596 = vsub.f32 %v3591, 1.0
    %v3597 = vsub.f32 %v3593, 1.0
    %v3598 = vsel %vm3578, %v3567, %v3594
    %v3599 = vsel %vm3579, %v3570, %v3595
    %v3600 = vsel %vm3580, %v3573, %v3596
    %v3601 = vsel %vm3581, %v3576, %v3597
    %3602 = vset.pattern.permute.xlu0 3
    %3603 = vperm.xlu0 %3602, %v46
    %v3604 = vpop.permute.xlu0 %3603
    %v3607 = vsel %vm1079, %v3217, 0
    %3609 = vmatpush.msra.mxu0 0.0
    %3610 = vmatpush.msra.mxu0 0.0
    %3611 = vmatpush.msra.mxu0 0.0
    %3612 = vmatpush.msra.mxu0 0.0
    %3613 = vmatpush.msra.mxu0 0.0
    %3614 = vmatpush.msra.mxu0 0.0
    %3615 = vmatpush.msra.mxu0 0.0
    %3616 = vmatpush.msra.mxu0 0.0
    %3617 = vmatpush.msra.mxu0 0.0
    %3618 = vmatpush.msra.mxu0 0.0
    %3619 = vmatpush.msra.mxu0 0.0
    %3620 = vmatpush.msra.mxu0 0.0
    %3621 = vmatpush.msra.mxu0 %v3601
    %3622 = vmatpush.msra.mxu0 %v3600
    %3623 = vmatpush.msra.mxu0 %v3599
    %3624 = vmatpush.msra.mxu0 %v3598
    %3625 = vmatmul.f32.gmra.mxu0 %v3607
    %v3626 = vpop.f32.mrf.mxu0
    %v3627 = vadd.f32 %v3604, %v3626
    %3628 = vdwg.mxu0
    %3629 = vst.msk [vmem:[%s8] sm:$0x3] %vm1620, %v3627
    // Predicated region
    $region38: #{nn_forward_pallas.1} parent=1 // pred_check
      _
    $region39: #{nn_forward_pallas.1} parent=1 // pred_check_branch
      %3631 = sbr.rel (0) target = $region41
    $region40: #{nn_forward_pallas.1} parent=1 // pred_region
      _
    $region41: #{nn_forward_pallas.1} parent=1 // pred_fallthru
      _
    // Predicated region
    $region42: #{nn_forward_pallas.1} parent=1 // pred_check
      _
    $region43: #{nn_forward_pallas.1} parent=1 // pred_check_branch
      %3633 = sbr.rel (0) target = $region45
    $region44: #{nn_forward_pallas.1} parent=1 // pred_region
      _
    $region45: #{nn_forward_pallas.1} parent=1 // pred_fallthru
      _
    %3634 = vsyncpa [#allocation6], 1

</llo_original>
